<compile_context>
chip_gen: v7x
topology: tpu7x:2x2x1
jax: 0.10.0
libtpu: 0.0.40
codegen_flags: <defaults>
</compile_context>

<pallas_src>
import functools

import jax
import jax.numpy as jnp
from jax.experimental import pallas as pl
from jax.experimental.pallas import tpu as pltpu

BN_EPS = 1e-4
_LANE = 128
_SUBLANE_BF16 = 16


# ----------------------------------------------------------------------------
# Shape / tiling helpers
# ----------------------------------------------------------------------------
def _round_up(x, m):
    return (x + m - 1) // m * m


def _choose_rows_per_tile(ho, wo, target=512):
    """Largest tr dividing Ho with (tr*Wo) sublane-aligned and tr*Wo <= target."""
    best = None
    for tr in range(1, ho + 1):
        if ho % tr:
            continue
        if (tr * wo) % _SUBLANE_BF16:
            continue
        if best is None or tr * wo <= target:
            best = tr
    if best is None:
        raise ValueError(f"unsupported spatial shape for conv2 tiling: Ho={ho} Wo={wo}")
    return best


def _flat_tile(m, base, target=1024):
    """Grow the flat streaming tile (multiples of base) toward ~1024 rows."""
    t = base
    while t * 2 <= target and m % (t * 2) == 0:
        t *= 2
    return t


@functools.lru_cache(maxsize=1)
def _vmem_limit_bytes():
    """Generation-aware scoped-VMEM request (v7x has only 64 MiB physical)."""
    default = 32 * 1024 * 1024
    try:
        phys = int(pltpu.get_tpu_info().vmem_capacity_bytes)
    except Exception:
        return default
    return int(min(max(phys // 2, default), 64 * 1024 * 1024))


def _compiler_params(n_grid_dims):
    return pltpu.CompilerParams(
        dimension_semantics=("parallel",) * n_grid_dims,
        vmem_limit_bytes=_vmem_limit_bytes(),
    )


# ----------------------------------------------------------------------------
# Pallas kernels
# ----------------------------------------------------------------------------
def _conv13_kernel(p_ref, w_ref, b3_ref, y1_ref, sk_ref, st_ref, *, mid_p):
    """Fused conv1|conv3 matmul; bf16 outputs; partial BN1 stats from f32."""
    y = jnp.dot(p_ref[...], w_ref[...], preferred_element_type=jnp.float32)
    y1 = y[:, :mid_p]                                    # pre-BN conv1 output
    y1_ref[...] = y1.astype(jnp.bfloat16)
    sk_ref[...] = (y[:, mid_p:] + b3_ref[...]).astype(jnp.bfloat16)   # skip branch
    st_ref[0] = jnp.concatenate(
        [jnp.sum(y1, axis=0, keepdims=True),
         jnp.sum(y1 * y1, axis=0, keepdims=True)], axis=0)


def _conv2_kernel(y_c_ref, y_p_ref, y_n_ref, sc_ref, sh_ref, w2_ref,
                  y2_ref, st_ref, *, wo, n_rb):
    """In-kernel 3x3 stride-1 conv with fused BN1+SiLU input activation.

    The tile is a group of whole image rows (tm = tr * wo flat positions).
    Halo rows r0-1 / r0+tr come from the clamped previous/next row-block; they
    are zeroed (exactly) at the image top/bottom edges.  Left/right padding is
    handled with per-tap column masks.  Partial BN2 stats come from the f32
    accumulator before the bf16 cast.
    """
    rb = pl.program_id(1)
    tm, mid_p = y_c_ref.shape
    cout_p = y2_ref.shape[-1]
    sc = sc_ref[...]                                     # (1, mid_p) f32
    sh = sh_ref[...]

    def bn1_silu(v, gate=None):
        z = v.astype(jnp.float32) * sc + sh
        a = z * jax.nn.sigmoid(z)
        if gate is not None:
            a = a * gate
        return a.astype(jnp.bfloat16)

    gate_t = jnp.where(rb > 0, 1.0, 0.0)
    gate_b = jnp.where(rb < n_rb - 1, 1.0, 0.0)
    a_mid = bn1_silu(y_c_ref[...])                       # image rows r0 .. r0+tr-1
    a_top = bn1_silu(y_p_ref[tm - wo:tm, :], gate_t)     # image row r0-1 (0 at top edge)
    a_bot = bn1_silu(y_n_ref[0:wo, :], gate_b)           # image row r0+tr (0 at bottom)

    zrow = jnp.zeros((1, mid_p), jnp.bfloat16)
    # slab rows: [pad, row r0-1, tile rows, row r0+tr, pad]
    slab = jnp.concatenate([zrow, a_top, a_mid, a_bot, zrow], axis=0)

    col = jax.lax.broadcasted_iota(jnp.int32, (tm, 1), 0) % wo
    col_ok = {0: col > 0, 1: None, 2: col < wo - 1}

    acc = jnp.zeros((tm, cout_p), jnp.float32)
    for kh in range(3):
        for kw in range(3):
            start = kh * wo + kw
            tap = slab[start:start + tm, :]
            if col_ok[kw] is not None:
                tap = jnp.where(col_ok[kw], tap, jnp.zeros_like(tap))
            acc = acc + jnp.dot(tap, w2_ref[kh, kw],
                                preferred_element_type=jnp.float32)

    y2_ref[...] = acc.astype(jnp.bfloat16)
    st_ref[0] = jnp.concatenate(
        [jnp.sum(acc, axis=0, keepdims=True),
         jnp.sum(acc * acc, axis=0, keepdims=True)], axis=0)


def _bn_skip_silu_kernel(y_ref, sk_ref, sc_ref, sh_ref, o_ref):
    """out = SiLU(y * scale + shift + skip)."""
    z = (y_ref[...].astype(jnp.float32) * sc_ref[...] + sh_ref[...]
         + sk_ref[...].astype(jnp.float32))
    o_ref[...] = (z * jax.nn.sigmoid(z)).astype(o_ref.dtype)


# ----------------------------------------------------------------------------
# pallas_call wrappers (weights stay resident via constant index maps)
# ----------------------------------------------------------------------------
def _call_conv13(p13, w13, b3, mid_p, cout_p, tm):
    m, k1 = p13.shape
    grid = m // tm
    kern = functools.partial(_conv13_kernel, mid_p=mid_p)
    return pl.pallas_call(
        kern,
        out_shape=(jax.ShapeDtypeStruct((m, mid_p), jnp.bfloat16),
                   jax.ShapeDtypeStruct((m, cout_p), jnp.bfloat16),
                   jax.ShapeDtypeStruct((grid, 2, mid_p), jnp.float32)),
        grid=(grid,),
        in_specs=[pl.BlockSpec((tm, k1), lambda i: (i, 0)),
                  pl.BlockSpec((k1, mid_p + cout_p), lambda i: (0, 0)),
                  pl.BlockSpec((1, cout_p), lambda i: (0, 0))],
        out_specs=(pl.BlockSpec((tm, mid_p), lambda i: (i, 0)),
                   pl.BlockSpec((tm, cout_p), lambda i: (i, 0)),
                   pl.BlockSpec((1, 2, mid_p), lambda i: (i, 0, 0))),
        compiler_params=_compiler_params(1),
    )(p13, w13, b3)


def _call_conv2(y1, sc1, sh1, w2, *, n, n_rb, wo, tm, mid_p, cout_p):
    m = y1.shape[0]
    kern = functools.partial(_conv2_kernel, wo=wo, n_rb=n_rb)
    return pl.pallas_call(
        kern,
        out_shape=(jax.ShapeDtypeStruct((m, cout_p), jnp.bfloat16),
                   jax.ShapeDtypeStruct((n * n_rb, 2, cout_p), jnp.float32)),
        grid=(n, n_rb),
        in_specs=[
            # current row-block
            pl.BlockSpec((tm, mid_p), lambda b, r: (b * n_rb + r, 0)),
            # previous / next row-blocks (clamped within the image) for halos
            pl.BlockSpec((tm, mid_p),
                         lambda b, r: (b * n_rb + jnp.maximum(r - 1, 0), 0)),
            pl.BlockSpec((tm, mid_p),
                         lambda b, r: (b * n_rb + jnp.minimum(r + 1, n_rb - 1), 0)),
            pl.BlockSpec((1, mid_p), lambda b, r: (0, 0)),
            pl.BlockSpec((1, mid_p), lambda b, r: (0, 0)),
            pl.BlockSpec((3, 3, mid_p, cout_p), lambda b, r: (0, 0, 0, 0)),
        ],
        out_specs=(pl.BlockSpec((tm, cout_p), lambda b, r: (b * n_rb + r, 0)),
                   pl.BlockSpec((1, 2, cout_p), lambda b, r: (b * n_rb + r, 0, 0))),
        compiler_params=_compiler_params(2),
    )(y1, y1, y1, sc1, sh1, w2)


def _call_bn_skip_silu(y2, skip, sc2, sh2, tm, out_dtype):
    m, cp = y2.shape
    grid = m // tm
    return pl.pallas_call(
        _bn_skip_silu_kernel,
        out_shape=jax.ShapeDtypeStruct((m, cp), out_dtype),
        grid=(grid,),
        in_specs=[pl.BlockSpec((tm, cp), lambda i: (i, 0)),
                  pl.BlockSpec((tm, cp), lambda i: (i, 0)),
                  pl.BlockSpec((1, cp), lambda i: (0, 0)),
                  pl.BlockSpec((1, cp), lambda i: (0, 0))],
        out_specs=pl.BlockSpec((tm, cp), lambda i: (i, 0)),
        compiler_params=_compiler_params(1),
    )(y2, skip, sc2, sh2)


# ----------------------------------------------------------------------------
# Plain-JAX glue: im2col (stride-2 only), padding, BN finalize
# ----------------------------------------------------------------------------
def _im2col(x_nhwc, ksize, stride, pad):
    """(kh, kw, ci)-ordered patches: (N, Ho, Wo, K*K*Cin)."""
    N, H, W, C = x_nhwc.shape
    xp = jnp.pad(x_nhwc, ((0, 0), (pad, pad), (pad, pad), (0, 0)))
    Ho = (H + 2 * pad - ksize) // stride + 1
    Wo = (W + 2 * pad - ksize) // stride + 1
    taps = []
    for kh in range(ksize):
        for kw in range(ksize):
            taps.append(
                xp[:, kh: kh + stride * Ho: stride, kw: kw + stride * Wo: stride, :])
    return jnp.concatenate(taps, axis=-1), (N, Ho, Wo)


def _flatten_hwio(w_hwio):
    kh, kw, ci, co = w_hwio.shape
    return w_hwio.reshape(kh * kw * ci, co)


def _pad_vec(v, n):
    return jnp.pad(v, (0, n - v.shape[0]))


def _pad_cols(a, n):
    return jnp.pad(a, ((0, 0), (0, n - a.shape[1])))


def _pad_hwio(w, ci_p, co_p):
    kh, kw, ci, co = w.shape
    return jnp.pad(w, ((0, 0), (0, 0), (0, ci_p - ci), (0, co_p - co)))


def _bn_scale_shift(partial_stats, m_true, gamma_p, beta_p):
    """Reduce per-tile partial (sum, sum_sq) -> BN scale/shift (1, Cp)."""
    s = jnp.sum(partial_stats[:, 0, :], axis=0)
    ss = jnp.sum(partial_stats[:, 1, :], axis=0)
    mean = s / m_true
    var = jnp.maximum(ss / m_true - mean * mean, 0.0)     # biased variance
    scale = gamma_p * jax.lax.rsqrt(var + BN_EPS)
    shift = beta_p - mean * scale
    return scale[None, :], shift[None, :]


def init_params(key, channel_in, channel_out, kernel_size=3):
    """Deterministic synthetic parameters (shapes match the PyTorch module)."""
    mid = channel_out // 2
    ks = jax.random.split(key, 6)
    scale = 0.1
    return {
        "w1": scale * jax.random.normal(ks[0], (kernel_size, kernel_size, channel_in, mid), jnp.float32),
        "b1": scale * jax.random.normal(ks[1], (mid,), jnp.float32),
        "w2": scale * jax.random.normal(ks[2], (kernel_size, kernel_size, mid, channel_out), jnp.float32),
        "b2": scale * jax.random.normal(ks[3], (channel_out,), jnp.float32),
        "w3": scale * jax.random.normal(ks[4], (kernel_size, kernel_size, channel_in, channel_out), jnp.float32),
        "b3": scale * jax.random.normal(ks[5], (channel_out,), jnp.float32),
        "g1": jnp.ones((mid,), jnp.float32),
        "be1": jnp.zeros((mid,), jnp.float32),
        "g2": jnp.ones((channel_out,), jnp.float32),
        "be2": jnp.zeros((channel_out,), jnp.float32),
    }


@functools.partial(jax.jit, static_argnames=("kernel_size",))
def res_down_forward(x_nchw, params, kernel_size=3):
    """ResDown forward pass.  Input/output in NCHW (PyTorch convention)."""
    assert kernel_size == 3, "in-kernel conv2 path is specialized to 3x3"
    pad = kernel_size // 2
    x = jnp.transpose(x_nchw, (0, 2, 3, 1)).astype(jnp.bfloat16)      # NHWC bf16

    mid = params["w1"].shape[-1]
    cout = params["w2"].shape[-1]
    mid_p = _round_up(mid, _LANE)
    cout_p = _round_up(cout, _LANE)

    # --- shared stride-2 im2col (conv1 & conv3 both consume it) -------------
    # TODO(synk): for small Cin this 2.25x patch blow-up could also be folded
    #             into the kernel as 9 strided matmuls over the raw input.
    p13, (N, Ho, Wo) = _im2col(x, kernel_size, stride=2, pad=pad)
    m = N * Ho * Wo
    tr = _choose_rows_per_tile(Ho, Wo)
    n_rb = Ho // tr
    tm_c = tr * Wo                        # conv2 row-group tile
    tm_f = _flat_tile(m, tm_c)            # tile for the flat streaming passes
    p13 = p13.reshape(m, -1)              # free reshape; no M padding anywhere

    # Fused [W1 | W3] weights; b1 dropped (cancels under training-mode BN1).
    w13 = jnp.concatenate(
        [_pad_cols(_flatten_hwio(params["w1"]), mid_p),
         _pad_cols(_flatten_hwio(params["w3"]), cout_p)], axis=1).astype(jnp.bfloat16)
    b3 = _pad_vec(params["b3"], cout_p)[None]                         # (1, cout_p)

    # Stage A: conv1|conv3 matmul + partial BN1 stats (bf16 outputs).
    y1, skip, st1 = _call_conv13(p13, w13, b3, mid_p, cout_p, tm_f)

    # Finalize BN1 (tiny XLA reduction over per-tile partials).
    sc1, sh1 = _bn_scale_shift(st1, m, _pad_vec(params["g1"], mid_p),
                               _pad_vec(params["be1"], mid_p))

    # Stage B: in-kernel 3x3 conv2 with fused BN1+SiLU on its input and
    # partial BN2 stats on its output (b2 dropped: cancels under BN2).
    w2 = _pad_hwio(params["w2"], mid_p, cout_p).astype(jnp.bfloat16)  # (3,3,mid_p,cout_p)
    y2, st2 = _call_conv2(y1, sc1, sh1, w2, n=N, n_rb=n_rb, wo=Wo,
                          tm=tm_c, mid_p=mid_p, cout_p=cout_p)

    # Stage C: finalize BN2, add skip, SiLU.
    sc2, sh2 = _bn_scale_shift(st2, m, _pad_vec(params["g2"], cout_p),
                               _pad_vec(params["be2"], cout_p))
    out = _call_bn_skip_silu(y2, skip, sc2, sh2, tm_f, jnp.float32)   # (m, cout_p)

    out = out.reshape(N, Ho, Wo, cout_p)[..., :cout]
    return jnp.transpose(out, (0, 3, 1, 2))                           # -> NCHW


# ----------------------------------------------------------------------------
# Pure-JAX reference (f32 BN, bf16 conv operands like the kernels, with biases)
# ----------------------------------------------------------------------------
def _ref_forward(x_nchw, params):
    x = jnp.transpose(x_nchw, (0, 2, 3, 1)).astype(jnp.float32)

    def conv(xin, w, b, s):
        y = jax.lax.conv_general_dilated(
            xin.astype(jnp.bfloat16), w.astype(jnp.bfloat16), (s, s), ((1, 1), (1, 1)),
            dimension_numbers=("NHWC", "HWIO", "NHWC"),
            preferred_element_type=jnp.float32)
        return y + b

    def bn(y, g, be):
        mu = y.mean(axis=(0, 1, 2), keepdims=True)
        v = ((y - mu) ** 2).mean(axis=(0, 1, 2), keepdims=True)
        return g * (y - mu) * jax.lax.rsqrt(v + BN_EPS) + be

    silu = lambda z: z * jax.nn.sigmoid(z)

    skip = conv(x, params["w3"], params["b3"], 2)
    h = silu(bn(conv(x, params["w1"], params["b1"], 2), params["g1"], params["be1"]))
    y = conv(h, params["w2"], params["b2"], 1)
    out = silu(bn(y, params["g2"], params["be2"]) + skip)
    return jnp.transpose(out, (0, 3, 1, 2))


# ----------------------------------------------------------------------------
if __name__ == "__main__":
    key = jax.random.PRNGKey(0)
    k_x1, k_x2, k_p = jax.random.split(key, 3)

    N, C_IN, C_OUT, H, W = 2, 4, 8, 16, 16
    params = init_params(k_p, C_IN, C_OUT, kernel_size=3)

    def _check(x):
        out = jax.block_until_ready(res_down_forward(x, params))
        assert out.shape == (x.shape[0], C_OUT, x.shape[2] // 2, x.shape[3] // 2), out.shape
        ref = jax.block_until_ready(_ref_forward(x, params))
        err = float(jnp.max(jnp.abs(out - ref)))
        # bf16 matmul operands + bf16 intermediates -> a few e-3..e-2 level diffs.
        tol = 1e-2 + 1e-2 * float(jnp.max(jnp.abs(ref)))
        assert err < tol, (err, tol)

    # Primary small case (single row-block per image).
    _check(jax.random.normal(k_x1, (N, C_IN, H, W), jnp.float32))
    # Larger spatial case so the conv2 halo path (multiple row-blocks) is exercised.
    _check(jax.random.normal(k_x2, (N, C_IN, 64, 64), jnp.float32))

    print("KERNEL_OK")
</pallas_src>

<mosaic_0001>
module attributes {stable_mosaic.version = 11 : i64} {
  func.func @_conv13_kernel(%arg0: i32, %arg1: memref<128x36xbf16, #tpu.memory_space<vmem>>, %arg2: memref<36x256xbf16, #tpu.memory_space<vmem>>, %arg3: memref<1x128xf32, #tpu.memory_space<vmem>>, %arg4: memref<128x128xbf16, #tpu.memory_space<vmem>>, %arg5: memref<128x128xbf16, #tpu.memory_space<vmem>>, %arg6: memref<1x2x128xf32, #tpu.memory_space<vmem>>) attributes {dimension_semantics = [#tpu.dimension_semantics<parallel>], iteration_bounds = array<i64: 1>, scalar_prefetch = 0 : i64, scratch_operands = 0 : i64, tpu.core_type = #tpu.core_type<tc>, window_params = [{transform_indices = @transform_0, window_bounds = array<i64: 128, 36>}, {pipeline_mode = #tpu.pipeline_mode<synchronous>, transform_indices = @transform_1, window_bounds = array<i64: 36, 256>}, {pipeline_mode = #tpu.pipeline_mode<synchronous>, transform_indices = @transform_2, window_bounds = array<i64: 1, 128>}, {transform_indices = @transform_3, window_bounds = array<i64: 128, 128>}, {transform_indices = @transform_4, window_bounds = array<i64: 128, 128>}, {transform_indices = @transform_5, window_bounds = array<i64: 1, 2, 128>}]} {
    %c0 = arith.constant 0 : index
    %c0_0 = arith.constant 0 : index
    %0 = vector.load %arg1[%c0, %c0_0] : memref<128x36xbf16, #tpu.memory_space<vmem>>, vector<128x36xbf16>
    %c0_1 = arith.constant 0 : index
    %c0_2 = arith.constant 0 : index
    %1 = vector.load %arg2[%c0_1, %c0_2] : memref<36x256xbf16, #tpu.memory_space<vmem>>, vector<36x256xbf16>
    %cst = arith.constant dense<0.000000e+00> : vector<128x256xf32>
    %2 = tpu.matmul %0, %1, %cst {dimension_numbers = #tpu.dot_dimension_numbers<[1], [0], [0], [1], [0, 0, 1, 1], [], []>} : vector<128x36xbf16>, vector<36x256xbf16>, vector<128x256xf32> -> vector<128x256xf32>
    %3 = vector.extract_strided_slice %2 {offsets = [0, 0], sizes = [128, 128], strides = [1, 1]} : vector<128x256xf32> to vector<128x128xf32>
    %4 = arith.truncf %3 : vector<128x128xf32> to vector<128x128xbf16>
    %c0_3 = arith.constant 0 : index
    %c0_4 = arith.constant 0 : index
    %5 = vector.load %arg4[%c0_3, %c0_4] : memref<128x128xbf16, #tpu.memory_space<vmem>>, vector<128x128xbf16>
    tpu.vector_store %arg4[%c0_3, %c0_4], %4 {strides = array<i32>} : memref<128x128xbf16, #tpu.memory_space<vmem>>, vector<128x128xbf16>,
    %6 = vector.extract_strided_slice %2 {offsets = [0, 128], sizes = [128, 128], strides = [1, 1]} : vector<128x256xf32> to vector<128x128xf32>
    %c0_5 = arith.constant 0 : index
    %c0_6 = arith.constant 0 : index
    %7 = vector.load %arg3[%c0_5, %c0_6] : memref<1x128xf32, #tpu.memory_space<vmem>>, vector<1x128xf32>
    %8 = vector.broadcast %7 : vector<1x128xf32> to vector<128x128xf32>
    %9 = arith.addf %6, %8 : vector<128x128xf32>
    %10 = arith.truncf %9 : vector<128x128xf32> to vector<128x128xbf16>
    %c0_7 = arith.constant 0 : index
    %c0_8 = arith.constant 0 : index
    %11 = vector.load %arg5[%c0_7, %c0_8] : memref<128x128xbf16, #tpu.memory_space<vmem>>, vector<128x128xbf16>
    tpu.vector_store %arg5[%c0_7, %c0_8], %10 {strides = array<i32>} : memref<128x128xbf16, #tpu.memory_space<vmem>>, vector<128x128xbf16>,
    %cst_9 = arith.constant dense<0.000000e+00> : vector<128xf32>
    %12 = vector.multi_reduction <add>, %3, %cst_9 [0] : vector<128x128xf32> to vector<128xf32>
    %13 = vector.shape_cast %12 : vector<128xf32> to vector<1x128xf32>
    %14 = arith.mulf %3, %3 : vector<128x128xf32>
    %cst_10 = arith.constant dense<0.000000e+00> : vector<128xf32>
    %15 = vector.multi_reduction <add>, %14, %cst_10 [0] : vector<128x128xf32> to vector<128xf32>
    %16 = vector.shape_cast %15 : vector<128xf32> to vector<1x128xf32>
    %17 = tpu.concatenate %13, %16 in 0 : vector<1x128xf32>, vector<1x128xf32> -> vector<2x128xf32>
    %c0_11 = arith.constant 0 : index
    %c0_12 = arith.constant 0 : index
    %c0_13 = arith.constant 0 : index
    %18 = vector.load %arg6[%c0_11, %c0_12, %c0_13] : memref<1x2x128xf32, #tpu.memory_space<vmem>>, vector<1x2x128xf32>
    %19 = vector.shape_cast %18 : vector<1x2x128xf32> to vector<2x128xf32>
    %20 = vector.shape_cast %17 : vector<2x128xf32> to vector<1x2x128xf32>
    tpu.vector_store %arg6[%c0_11, %c0_12, %c0_13], %20 {strides = array<i32>} : memref<1x2x128xf32, #tpu.memory_space<vmem>>, vector<1x2x128xf32>,
    return
  }
  func.func @transform_0(%arg0: i32) -> (i32, i32) {
    %c0_i32 = arith.constant 0 : i32
    %c0_i32_0 = arith.constant 0 : i32
    return %arg0, %c0_i32 : i32, i32
  }
  func.func @transform_1(%arg0: i32) -> (i32, i32) {
    %c0_i32 = arith.constant 0 : i32
    %c0_i32_0 = arith.constant 0 : i32
    %c0_i32_1 = arith.constant 0 : i32
    return %c0_i32, %c0_i32_0 : i32, i32
  }
  func.func @transform_2(%arg0: i32) -> (i32, i32) {
    %c0_i32 = arith.constant 0 : i32
    %c0_i32_0 = arith.constant 0 : i32
    %c0_i32_1 = arith.constant 0 : i32
    return %c0_i32, %c0_i32_0 : i32, i32
  }
  func.func @transform_3(%arg0: i32) -> (i32, i32) {
    %c0_i32 = arith.constant 0 : i32
    %c0_i32_0 = arith.constant 0 : i32
    return %arg0, %c0_i32 : i32, i32
  }
  func.func @transform_4(%arg0: i32) -> (i32, i32) {
    %c0_i32 = arith.constant 0 : i32
    %c0_i32_0 = arith.constant 0 : i32
    return %arg0, %c0_i32 : i32, i32
  }
  func.func @transform_5(%arg0: i32) -> (i32, i32, i32) {
    %c0_i32 = arith.constant 0 : i32
    %c0_i32_0 = arith.constant 0 : i32
    %c0_i32_1 = arith.constant 0 : i32
    return %arg0, %c0_i32, %c0_i32_0 : i32, i32, i32
  }
}

module attributes {stable_mosaic.version = 11 : i64} {
  func.func @_conv2_kernel(%arg0: i32, %arg1: i32, %arg2: memref<64x128xbf16, #tpu.memory_space<vmem>>, %arg3: memref<64x128xbf16, #tpu.memory_space<vmem>>, %arg4: memref<64x128xbf16, #tpu.memory_space<vmem>>, %arg5: memref<1x128xf32, #tpu.memory_space<vmem>>, %arg6: memref<1x128xf32, #tpu.memory_space<vmem>>, %arg7: memref<3x3x128x128xbf16, #tpu.memory_space<vmem>>, %arg8: memref<64x128xbf16, #tpu.memory_space<vmem>>, %arg9: memref<1x2x128xf32, #tpu.memory_space<vmem>>) attributes {dimension_semantics = [#tpu.dimension_semantics<parallel>, #tpu.dimension_semantics<parallel>], iteration_bounds = array<i64: 2, 1>, scalar_prefetch = 0 : i64, scratch_operands = 0 : i64, tpu.core_type = #tpu.core_type<tc>, window_params = [{transform_indices = @transform_0, window_bounds = array<i64: 64, 128>}, {transform_indices = @transform_1, window_bounds = array<i64: 64, 128>}, {transform_indices = @transform_2, window_bounds = array<i64: 64, 128>}, {pipeline_mode = #tpu.pipeline_mode<synchronous>, transform_indices = @transform_3, window_bounds = array<i64: 1, 128>}, {pipeline_mode = #tpu.pipeline_mode<synchronous>, transform_indices = @transform_4, window_bounds = array<i64: 1, 128>}, {pipeline_mode = #tpu.pipeline_mode<synchronous>, transform_indices = @transform_5, window_bounds = array<i64: 3, 3, 128, 128>}, {transform_indices = @transform_6, window_bounds = array<i64: 64, 128>}, {transform_indices = @transform_7, window_bounds = array<i64: 1, 2, 128>}]} {
    %c0 = arith.constant 0 : index
    %c0_0 = arith.constant 0 : index
    %0 = vector.load %arg5[%c0, %c0_0] : memref<1x128xf32, #tpu.memory_space<vmem>>, vector<1x128xf32>
    %c0_1 = arith.constant 0 : index
    %c0_2 = arith.constant 0 : index
    %1 = vector.load %arg6[%c0_1, %c0_2] : memref<1x128xf32, #tpu.memory_space<vmem>>, vector<1x128xf32>
    %c0_i32 = arith.constant 0 : i32
    %2 = arith.cmpi sgt, %arg1, %c0_i32 : i32
    %cst = arith.constant 1.000000e+00 : f32
    %cst_3 = arith.constant 0.000000e+00 : f32
    %3 = arith.select %2, %cst, %cst_3 : f32
    %c0_i32_4 = arith.constant 0 : i32
    %4 = arith.cmpi slt, %arg1, %c0_i32_4 : i32
    %cst_5 = arith.constant 1.000000e+00 : f32
    %cst_6 = arith.constant 0.000000e+00 : f32
    %5 = arith.select %4, %cst_5, %cst_6 : f32
    %c0_7 = arith.constant 0 : index
    %c0_8 = arith.constant 0 : index
    %6 = vector.load %arg2[%c0_7, %c0_8] : memref<64x128xbf16, #tpu.memory_space<vmem>>, vector<64x128xbf16>
    %7 = arith.extf %6 : vector<64x128xbf16> to vector<64x128xf32>
    %8 = vector.broadcast %0 : vector<1x128xf32> to vector<64x128xf32>
    %9 = arith.mulf %7, %8 : vector<64x128xf32>
    %10 = vector.broadcast %1 : vector<1x128xf32> to vector<64x128xf32>
    %11 = arith.addf %9, %10 : vector<64x128xf32>
    %12 = arith.negf %11 : vector<64x128xf32>
    %13 = math.exp %12 : vector<64x128xf32>
    %cst_9 = arith.constant 1.000000e+00 : f32
    %14 = vector.broadcast %cst_9 : f32 to vector<64x128xf32>
    %15 = arith.addf %14, %13 : vector<64x128xf32>
    %16 = arith.divf %14, %15 : vector<64x128xf32>
    %17 = arith.mulf %11, %16 : vector<64x128xf32>
    %18 = arith.truncf %17 : vector<64x128xf32> to vector<64x128xbf16>
    %c56 = arith.constant 56 : index
    %c0_10 = arith.constant 0 : index
    %19 = vector.load %arg3[%c56, %c0_10] : memref<64x128xbf16, #tpu.memory_space<vmem>>, vector<8x128xbf16>
    %20 = arith.extf %19 : vector<8x128xbf16> to vector<8x128xf32>
    %21 = vector.broadcast %0 : vector<1x128xf32> to vector<8x128xf32>
    %22 = arith.mulf %20, %21 : vector<8x128xf32>
    %23 = vector.broadcast %1 : vector<1x128xf32> to vector<8x128xf32>
    %24 = arith.addf %22, %23 : vector<8x128xf32>
    %25 = arith.negf %24 : vector<8x128xf32>
    %26 = math.exp %25 : vector<8x128xf32>
    %cst_11 = arith.constant 1.000000e+00 : f32
    %27 = vector.broadcast %cst_11 : f32 to vector<8x128xf32>
    %28 = arith.addf %27, %26 : vector<8x128xf32>
    %29 = arith.divf %27, %28 : vector<8x128xf32>
    %30 = arith.mulf %24, %29 : vector<8x128xf32>
    %31 = vector.broadcast %3 : f32 to vector<8x128xf32>
    %32 = arith.mulf %30, %31 : vector<8x128xf32>
    %33 = arith.truncf %32 : vector<8x128xf32> to vector<8x128xbf16>
    %c0_12 = arith.constant 0 : index
    %c0_13 = arith.constant 0 : index
    %34 = vector.load %arg4[%c0_12, %c0_13] : memref<64x128xbf16, #tpu.memory_space<vmem>>, vector<8x128xbf16>
    %35 = arith.extf %34 : vector<8x128xbf16> to vector<8x128xf32>
    %36 = vector.broadcast %0 : vector<1x128xf32> to vector<8x128xf32>
    %37 = arith.mulf %35, %36 : vector<8x128xf32>
    %38 = vector.broadcast %1 : vector<1x128xf32> to vector<8x128xf32>
    %39 = arith.addf %37, %38 : vector<8x128xf32>
    %40 = arith.negf %39 : vector<8x128xf32>
    %41 = math.exp %40 : vector<8x128xf32>
    %cst_14 = arith.constant 1.000000e+00 : f32
    %42 = vector.broadcast %cst_14 : f32 to vector<8x128xf32>
    %43 = arith.addf %42, %41 : vector<8x128xf32>
    %44 = arith.divf %42, %43 : vector<8x128xf32>
    %45 = arith.mulf %39, %44 : vector<8x128xf32>
    %46 = vector.broadcast %5 : f32 to vector<8x128xf32>
    %47 = arith.mulf %45, %46 : vector<8x128xf32>
    %48 = arith.truncf %47 : vector<8x128xf32> to vector<8x128xbf16>
    %cst_15 = arith.constant 0.000000e+00 : bf16
    %49 = vector.broadcast %cst_15 : bf16 to vector<1x128xbf16>
    %50 = tpu.concatenate %49, %33, %18, %48, %49 in 0 : vector<1x128xbf16>, vector<8x128xbf16>, vector<64x128xbf16>, vector<8x128xbf16>, vector<1x128xbf16> -> vector<82x128xbf16>
    %51 = tpu.iota {dimensions = array<i32: 0>} : vector<64x1xi32>
    %c8_i32 = arith.constant 8 : i32
    %c0_i32_16 = arith.constant 0 : i32
    %52 = arith.cmpi eq, %c8_i32, %c0_i32_16 : i32
    %c1_i32 = arith.constant 1 : i32
    %53 = arith.select %52, %c1_i32, %c8_i32 : i32
    %54 = vector.broadcast %53 : i32 to vector<64x1xi32>
    %55 = arith.remsi %51, %54 : vector<64x1xi32>
    %c0_i32_17 = arith.constant 0 : i32
    %56 = vector.broadcast %c0_i32_17 : i32 to vector<64x1xi32>
    %57 = arith.cmpi ne, %55, %56 : vector<64x1xi32>
    %c0_i32_18 = arith.constant 0 : i32
    %58 = vector.broadcast %c0_i32_18 : i32 to vector<64x1xi32>
    %59 = arith.cmpi slt, %55, %58 : vector<64x1xi32>
    %c0_i32_19 = arith.constant 0 : i32
    %60 = arith.cmpi slt, %53, %c0_i32_19 : i32
    %61 = vector.broadcast %60 : i1 to vector<64x1xi1>
    %62 = vector.broadcast %61 : vector<64x1xi1> to vector<64x1xi1>
    %63 = arith.xori %59, %62 : vector<64x1xi1>
    %64 = arith.andi %63, %57 : vector<64x1xi1>
    %65 = vector.broadcast %53 : i32 to vector<64x1xi32>
    %66 = arith.addi %55, %65 : vector<64x1xi32>
    %67 = arith.select %64, %66, %55 : vector<64x1xi1>, vector<64x1xi32>
    %c0_i32_20 = arith.constant 0 : i32
    %68 = vector.broadcast %c0_i32_20 : i32 to vector<64x1xi32>
    %69 = arith.cmpi sgt, %67, %68 : vector<64x1xi32>
    %c7_i32 = arith.constant 7 : i32
    %70 = vector.broadcast %c7_i32 : i32 to vector<64x1xi32>
    %71 = arith.cmpi slt, %67, %70 : vector<64x1xi32>
    %cst_21 = arith.constant 0.000000e+00 : f32
    %72 = vector.broadcast %cst_21 : f32 to vector<64x128xf32>
    %73 = vector.extract_strided_slice %50 {offsets = [0, 0], sizes = [64, 128], strides = [1, 1]} : vector<82x128xbf16> to vector<64x128xbf16>
    %cst_22 = arith.constant 0.000000e+00 : bf16
    %74 = vector.broadcast %cst_22 : bf16 to vector<64x128xbf16>
    %75 = vector.shape_cast %69 : vector<64x1xi1> to vector<64x1xi1>
    %76 = vector.broadcast %75 : vector<64x1xi1> to vector<64x128xi1>
    %77 = arith.select %76, %73, %74 : vector<64x128xi1>, vector<64x128xbf16>
    %c0_23 = arith.constant 0 : index
    %c0_24 = arith.constant 0 : index
    %c0_25 = arith.constant 0 : index
    %c0_26 = arith.constant 0 : index
    %78 = vector.load %arg7[%c0_23, %c0_24, %c0_25, %c0_26] : memref<3x3x128x128xbf16, #tpu.memory_space<vmem>>, vector<1x1x128x128xbf16>
    %79 = vector.shape_cast %78 : vector<1x1x128x128xbf16> to vector<128x128xbf16>
    %cst_27 = arith.constant dense<0.000000e+00> : vector<64x128xf32>
    %80 = tpu.matmul %77, %79, %cst_27 {dimension_numbers = #tpu.dot_dimension_numbers<[1], [0], [0], [1], [0, 0, 1, 1], [], []>} : vector<64x128xbf16>, vector<128x128xbf16>, vector<64x128xf32> -> vector<64x128xf32>
    %81 = arith.addf %72, %80 : vector<64x128xf32>
    %82 = vector.extract_strided_slice %50 {offsets = [1, 0], sizes = [64, 128], strides = [1, 1]} : vector<82x128xbf16> to vector<64x128xbf16>
    %c0_28 = arith.constant 0 : index
    %c1 = arith.constant 1 : index
    %c0_29 = arith.constant 0 : index
    %c0_30 = arith.constant 0 : index
    %83 = vector.load %arg7[%c0_28, %c1, %c0_29, %c0_30] : memref<3x3x128x128xbf16, #tpu.memory_space<vmem>>, vector<1x1x128x128xbf16>
    %84 = vector.shape_cast %83 : vector<1x1x128x128xbf16> to vector<128x128xbf16>
    %cst_31 = arith.constant dense<0.000000e+00> : vector<64x128xf32>
    %85 = tpu.matmul %82, %84, %cst_31 {dimension_numbers = #tpu.dot_dimension_numbers<[1], [0], [0], [1], [0, 0, 1, 1], [], []>} : vector<64x128xbf16>, vector<128x128xbf16>, vector<64x128xf32> -> vector<64x128xf32>
    %86 = arith.addf %81, %85 : vector<64x128xf32>
    %87 = vector.extract_strided_slice %50 {offsets = [2, 0], sizes = [64, 128], strides = [1, 1]} : vector<82x128xbf16> to vector<64x128xbf16>
    %cst_32 = arith.constant 0.000000e+00 : bf16
    %88 = vector.broadcast %cst_32 : bf16 to vector<64x128xbf16>
    %89 = vector.shape_cast %71 : vector<64x1xi1> to vector<64x1xi1>
    %90 = vector.broadcast %89 : vector<64x1xi1> to vector<64x128xi1>
    %91 = arith.select %90, %87, %88 : vector<64x128xi1>, vector<64x128xbf16>
    %c0_33 = arith.constant 0 : index
    %c2 = arith.constant 2 : index
    %c0_34 = arith.constant 0 : index
    %c0_35 = arith.constant 0 : index
    %92 = vector.load %arg7[%c0_33, %c2, %c0_34, %c0_35] : memref<3x3x128x128xbf16, #tpu.memory_space<vmem>>, vector<1x1x128x128xbf16>
    %93 = vector.shape_cast %92 : vector<1x1x128x128xbf16> to vector<128x128xbf16>
    %cst_36 = arith.constant dense<0.000000e+00> : vector<64x128xf32>
    %94 = tpu.matmul %91, %93, %cst_36 {dimension_numbers = #tpu.dot_dimension_numbers<[1], [0], [0], [1], [0, 0, 1, 1], [], []>} : vector<64x128xbf16>, vector<128x128xbf16>, vector<64x128xf32> -> vector<64x128xf32>
    %95 = arith.addf %86, %94 : vector<64x128xf32>
    %96 = vector.extract_strided_slice %50 {offsets = [8, 0], sizes = [64, 128], strides = [1, 1]} : vector<82x128xbf16> to vector<64x128xbf16>
    %cst_37 = arith.constant 0.000000e+00 : bf16
    %97 = vector.broadcast %cst_37 : bf16 to vector<64x128xbf16>
    %98 = vector.shape_cast %69 : vector<64x1xi1> to vector<64x1xi1>
    %99 = vector.broadcast %98 : vector<64x1xi1> to vector<64x128xi1>
    %100 = arith.select %99, %96, %97 : vector<64x128xi1>, vector<64x128xbf16>
    %c1_38 = arith.constant 1 : index
    %c0_39 = arith.constant 0 : index
    %c0_40 = arith.constant 0 : index
    %c0_41 = arith.constant 0 : index
    %101 = vector.load %arg7[%c1_38, %c0_39, %c0_40, %c0_41] : memref<3x3x128x128xbf16, #tpu.memory_space<vmem>>, vector<1x1x128x128xbf16>
    %102 = vector.shape_cast %101 : vector<1x1x128x128xbf16> to vector<128x128xbf16>
    %cst_42 = arith.constant dense<0.000000e+00> : vector<64x128xf32>
    %103 = tpu.matmul %100, %102, %cst_42 {dimension_numbers = #tpu.dot_dimension_numbers<[1], [0], [0], [1], [0, 0, 1, 1], [], []>} : vector<64x128xbf16>, vector<128x128xbf16>, vector<64x128xf32> -> vector<64x128xf32>
    %104 = arith.addf %95, %103 : vector<64x128xf32>
    %105 = vector.extract_strided_slice %50 {offsets = [9, 0], sizes = [64, 128], strides = [1, 1]} : vector<82x128xbf16> to vector<64x128xbf16>
    %c1_43 = arith.constant 1 : index
    %c1_44 = arith.constant 1 : index
    %c0_45 = arith.constant 0 : index
    %c0_46 = arith.constant 0 : index
    %106 = vector.load %arg7[%c1_43, %c1_44, %c0_45, %c0_46] : memref<3x3x128x128xbf16, #tpu.memory_space<vmem>>, vector<1x1x128x128xbf16>
    %107 = vector.shape_cast %106 : vector<1x1x128x128xbf16> to vector<128x128xbf16>
    %cst_47 = arith.constant dense<0.000000e+00> : vector<64x128xf32>
    %108 = tpu.matmul %105, %107, %cst_47 {dimension_numbers = #tpu.dot_dimension_numbers<[1], [0], [0], [1], [0, 0, 1, 1], [], []>} : vector<64x128xbf16>, vector<128x128xbf16>, vector<64x128xf32> -> vector<64x128xf32>
    %109 = arith.addf %104, %108 : vector<64x128xf32>
    %110 = vector.extract_strided_slice %50 {offsets = [10, 0], sizes = [64, 128], strides = [1, 1]} : vector<82x128xbf16> to vector<64x128xbf16>
    %cst_48 = arith.constant 0.000000e+00 : bf16
    %111 = vector.broadcast %cst_48 : bf16 to vector<64x128xbf16>
    %112 = vector.shape_cast %71 : vector<64x1xi1> to vector<64x1xi1>
    %113 = vector.broadcast %112 : vector<64x1xi1> to vector<64x128xi1>
    %114 = arith.select %113, %110, %111 : vector<64x128xi1>, vector<64x128xbf16>
    %c1_49 = arith.constant 1 : index
    %c2_50 = arith.constant 2 : index
    %c0_51 = arith.constant 0 : index
    %c0_52 = arith.constant 0 : index
    %115 = vector.load %arg7[%c1_49, %c2_50, %c0_51, %c0_52] : memref<3x3x128x128xbf16, #tpu.memory_space<vmem>>, vector<1x1x128x128xbf16>
    %116 = vector.shape_cast %115 : vector<1x1x128x128xbf16> to vector<128x128xbf16>
    %cst_53 = arith.constant dense<0.000000e+00> : vector<64x128xf32>
    %117 = tpu.matmul %114, %116, %cst_53 {dimension_numbers = #tpu.dot_dimension_numbers<[1], [0], [0], [1], [0, 0, 1, 1], [], []>} : vector<64x128xbf16>, vector<128x128xbf16>, vector<64x128xf32> -> vector<64x128xf32>
    %118 = arith.addf %109, %117 : vector<64x128xf32>
    %119 = vector.extract_strided_slice %50 {offsets = [16, 0], sizes = [64, 128], strides = [1, 1]} : vector<82x128xbf16> to vector<64x128xbf16>
    %cst_54 = arith.constant 0.000000e+00 : bf16
    %120 = vector.broadcast %cst_54 : bf16 to vector<64x128xbf16>
    %121 = vector.shape_cast %69 : vector<64x1xi1> to vector<64x1xi1>
    %122 = vector.broadcast %121 : vector<64x1xi1> to vector<64x128xi1>
    %123 = arith.select %122, %119, %120 : vector<64x128xi1>, vector<64x128xbf16>
    %c2_55 = arith.constant 2 : index
    %c0_56 = arith.constant 0 : index
    %c0_57 = arith.constant 0 : index
    %c0_58 = arith.constant 0 : index
    %124 = vector.load %arg7[%c2_55, %c0_56, %c0_57, %c0_58] : memref<3x3x128x128xbf16, #tpu.memory_space<vmem>>, vector<1x1x128x128xbf16>
    %125 = vector.shape_cast %124 : vector<1x1x128x128xbf16> to vector<128x128xbf16>
    %cst_59 = arith.constant dense<0.000000e+00> : vector<64x128xf32>
    %126 = tpu.matmul %123, %125, %cst_59 {dimension_numbers = #tpu.dot_dimension_numbers<[1], [0], [0], [1], [0, 0, 1, 1], [], []>} : vector<64x128xbf16>, vector<128x128xbf16>, vector<64x128xf32> -> vector<64x128xf32>
    %127 = arith.addf %118, %126 : vector<64x128xf32>
    %128 = vector.extract_strided_slice %50 {offsets = [17, 0], sizes = [64, 128], strides = [1, 1]} : vector<82x128xbf16> to vector<64x128xbf16>
    %c2_60 = arith.constant 2 : index
    %c1_61 = arith.constant 1 : index
    %c0_62 = arith.constant 0 : index
    %c0_63 = arith.constant 0 : index
    %129 = vector.load %arg7[%c2_60, %c1_61, %c0_62, %c0_63] : memref<3x3x128x128xbf16, #tpu.memory_space<vmem>>, vector<1x1x128x128xbf16>
    %130 = vector.shape_cast %129 : vector<1x1x128x128xbf16> to vector<128x128xbf16>
    %cst_64 = arith.constant dense<0.000000e+00> : vector<64x128xf32>
    %131 = tpu.matmul %128, %130, %cst_64 {dimension_numbers = #tpu.dot_dimension_numbers<[1], [0], [0], [1], [0, 0, 1, 1], [], []>} : vector<64x128xbf16>, vector<128x128xbf16>, vector<64x128xf32> -> vector<64x128xf32>
    %132 = arith.addf %127, %131 : vector<64x128xf32>
    %133 = vector.extract_strided_slice %50 {offsets = [18, 0], sizes = [64, 128], strides = [1, 1]} : vector<82x128xbf16> to vector<64x128xbf16>
    %cst_65 = arith.constant 0.000000e+00 : bf16
    %134 = vector.broadcast %cst_65 : bf16 to vector<64x128xbf16>
    %135 = vector.shape_cast %71 : vector<64x1xi1> to vector<64x1xi1>
    %136 = vector.broadcast %135 : vector<64x1xi1> to vector<64x128xi1>
    %137 = arith.select %136, %133, %134 : vector<64x128xi1>, vector<64x128xbf16>
    %c2_66 = arith.constant 2 : index
    %c2_67 = arith.constant 2 : index
    %c0_68 = arith.constant 0 : index
    %c0_69 = arith.constant 0 : index
    %138 = vector.load %arg7[%c2_66, %c2_67, %c0_68, %c0_69] : memref<3x3x128x128xbf16, #tpu.memory_space<vmem>>, vector<1x1x128x128xbf16>
    %139 = vector.shape_cast %138 : vector<1x1x128x128xbf16> to vector<128x128xbf16>
    %cst_70 = arith.constant dense<0.000000e+00> : vector<64x128xf32>
    %140 = tpu.matmul %137, %139, %cst_70 {dimension_numbers = #tpu.dot_dimension_numbers<[1], [0], [0], [1], [0, 0, 1, 1], [], []>} : vector<64x128xbf16>, vector<128x128xbf16>, vector<64x128xf32> -> vector<64x128xf32>
    %141 = arith.addf %132, %140 : vector<64x128xf32>
    %142 = arith.truncf %141 : vector<64x128xf32> to vector<64x128xbf16>
    %c0_71 = arith.constant 0 : index
    %c0_72 = arith.constant 0 : index
    %143 = vector.load %arg8[%c0_71, %c0_72] : memref<64x128xbf16, #tpu.memory_space<vmem>>, vector<64x128xbf16>
    tpu.vector_store %arg8[%c0_71, %c0_72], %142 {strides = array<i32>} : memref<64x128xbf16, #tpu.memory_space<vmem>>, vector<64x128xbf16>,
    %cst_73 = arith.constant dense<0.000000e+00> : vector<128xf32>
    %144 = vector.multi_reduction <add>, %141, %cst_73 [0] : vector<64x128xf32> to vector<128xf32>
    %145 = vector.shape_cast %144 : vector<128xf32> to vector<1x128xf32>
    %146 = arith.mulf %141, %141 : vector<64x128xf32>
    %cst_74 = arith.constant dense<0.000000e+00> : vector<128xf32>
    %147 = vector.multi_reduction <add>, %146, %cst_74 [0] : vector<64x128xf32> to vector<128xf32>
    %148 = vector.shape_cast %147 : vector<128xf32> to vector<1x128xf32>
    %149 = tpu.concatenate %145, %148 in 0 : vector<1x128xf32>, vector<1x128xf32> -> vector<2x128xf32>
    %c0_75 = arith.constant 0 : index
    %c0_76 = arith.constant 0 : index
    %c0_77 = arith.constant 0 : index
    %150 = vector.load %arg9[%c0_75, %c0_76, %c0_77] : memref<1x2x128xf32, #tpu.memory_space<vmem>>, vector<1x2x128xf32>
    %151 = vector.shape_cast %150 : vector<1x2x128xf32> to vector<2x128xf32>
    %152 = vector.shape_cast %149 : vector<2x128xf32> to vector<1x2x128xf32>
    tpu.vector_store %arg9[%c0_75, %c0_76, %c0_77], %152 {strides = array<i32>} : memref<1x2x128xf32, #tpu.memory_space<vmem>>, vector<1x2x128xf32>,
    return
  }
  func.func @transform_0(%arg0: i32, %arg1: i32) -> (i32, i32) {
    %c1_i32 = arith.constant 1 : i32
    %0 = arith.muli %arg0, %c1_i32 : i32
    %1 = arith.addi %0, %arg1 : i32
    %c0_i32 = arith.constant 0 : i32
    %c0_i32_0 = arith.constant 0 : i32
    return %1, %c0_i32 : i32, i32
  }
  func.func @transform_1(%arg0: i32, %arg1: i32) -> (i32, i32) {
    %c1_i32 = arith.constant 1 : i32
    %0 = arith.muli %arg0, %c1_i32 : i32
    %c1_i32_0 = arith.constant 1 : i32
    %1 = arith.subi %arg1, %c1_i32_0 : i32
    %c0_i32 = arith.constant 0 : i32
    %2 = arith.maxsi %1, %c0_i32 : i32
    %3 = arith.addi %0, %2 : i32
    %c0_i32_1 = arith.constant 0 : i32
    %c0_i32_2 = arith.constant 0 : i32
    return %3, %c0_i32_1 : i32, i32
  }
  func.func @transform_2(%arg0: i32, %arg1: i32) -> (i32, i32) {
    %c1_i32 = arith.constant 1 : i32
    %0 = arith.muli %arg0, %c1_i32 : i32
    %c1_i32_0 = arith.constant 1 : i32
    %1 = arith.addi %arg1, %c1_i32_0 : i32
    %c0_i32 = arith.constant 0 : i32
    %2 = arith.minsi %1, %c0_i32 : i32
    %3 = arith.addi %0, %2 : i32
    %c0_i32_1 = arith.constant 0 : i32
    %c0_i32_2 = arith.constant 0 : i32
    return %3, %c0_i32_1 : i32, i32
  }
  func.func @transform_3(%arg0: i32, %arg1: i32) -> (i32, i32) {
    %c0_i32 = arith.constant 0 : i32
    %c0_i32_0 = arith.constant 0 : i32
    %c0_i32_1 = arith.constant 0 : i32
    return %c0_i32, %c0_i32_0 : i32, i32
  }
  func.func @transform_4(%arg0: i32, %arg1: i32) -> (i32, i32) {
    %c0_i32 = arith.constant 0 : i32
    %c0_i32_0 = arith.constant 0 : i32
    %c0_i32_1 = arith.constant 0 : i32
    return %c0_i32, %c0_i32_0 : i32, i32
  }
  func.func @transform_5(%arg0: i32, %arg1: i32) -> (i32, i32, i32, i32) {
    %c0_i32 = arith.constant 0 : i32
    %c0_i32_0 = arith.constant 0 : i32
    %c0_i32_1 = arith.constant 0 : i32
    %c0_i32_2 = arith.constant 0 : i32
    %c0_i32_3 = arith.constant 0 : i32
    return %c0_i32, %c0_i32_0, %c0_i32_1, %c0_i32_2 : i32, i32, i32, i32
  }
  func.func @transform_6(%arg0: i32, %arg1: i32) -> (i32, i32) {
    %c1_i32 = arith.constant 1 : i32
    %0 = arith.muli %arg0, %c1_i32 : i32
    %1 = arith.addi %0, %arg1 : i32
    %c0_i32 = arith.constant 0 : i32
    %c0_i32_0 = arith.constant 0 : i32
    return %1, %c0_i32 : i32, i32
  }
  func.func @transform_7(%arg0: i32, %arg1: i32) -> (i32, i32, i32) {
    %c1_i32 = arith.constant 1 : i32
    %0 = arith.muli %arg0, %c1_i32 : i32
    %1 = arith.addi %0, %arg1 : i32
    %c0_i32 = arith.constant 0 : i32
    %c0_i32_0 = arith.constant 0 : i32
    %c0_i32_1 = arith.constant 0 : i32
    return %1, %c0_i32, %c0_i32_0 : i32, i32, i32
  }
}

module attributes {stable_mosaic.version = 11 : i64} {
  func.func @_bn_skip_silu_kernel(%arg0: i32, %arg1: memref<128x128xbf16, #tpu.memory_space<vmem>>, %arg2: memref<128x128xbf16, #tpu.memory_space<vmem>>, %arg3: memref<1x128xf32, #tpu.memory_space<vmem>>, %arg4: memref<1x128xf32, #tpu.memory_space<vmem>>, %arg5: memref<128x128xf32, #tpu.memory_space<vmem>>) attributes {dimension_semantics = [#tpu.dimension_semantics<parallel>], iteration_bounds = array<i64: 1>, scalar_prefetch = 0 : i64, scratch_operands = 0 : i64, tpu.core_type = #tpu.core_type<tc>, window_params = [{transform_indices = @transform_0, window_bounds = array<i64: 128, 128>}, {transform_indices = @transform_1, window_bounds = array<i64: 128, 128>}, {pipeline_mode = #tpu.pipeline_mode<synchronous>, transform_indices = @transform_2, window_bounds = array<i64: 1, 128>}, {pipeline_mode = #tpu.pipeline_mode<synchronous>, transform_indices = @transform_3, window_bounds = array<i64: 1, 128>}, {transform_indices = @transform_4, window_bounds = array<i64: 128, 128>}]} {
    %c0 = arith.constant 0 : index
    %c0_0 = arith.constant 0 : index
    %0 = vector.load %arg1[%c0, %c0_0] : memref<128x128xbf16, #tpu.memory_space<vmem>>, vector<128x128xbf16>
    %1 = arith.extf %0 : vector<128x128xbf16> to vector<128x128xf32>
    %c0_1 = arith.constant 0 : index
    %c0_2 = arith.constant 0 : index
    %2 = vector.load %arg3[%c0_1, %c0_2] : memref<1x128xf32, #tpu.memory_space<vmem>>, vector<1x128xf32>
    %3 = vector.broadcast %2 : vector<1x128xf32> to vector<128x128xf32>
    %4 = arith.mulf %1, %3 : vector<128x128xf32>
    %c0_3 = arith.constant 0 : index
    %c0_4 = arith.constant 0 : index
    %5 = vector.load %arg4[%c0_3, %c0_4] : memref<1x128xf32, #tpu.memory_space<vmem>>, vector<1x128xf32>
    %6 = vector.broadcast %5 : vector<1x128xf32> to vector<128x128xf32>
    %7 = arith.addf %4, %6 : vector<128x128xf32>
    %c0_5 = arith.constant 0 : index
    %c0_6 = arith.constant 0 : index
    %8 = vector.load %arg2[%c0_5, %c0_6] : memref<128x128xbf16, #tpu.memory_space<vmem>>, vector<128x128xbf16>
    %9 = arith.extf %8 : vector<128x128xbf16> to vector<128x128xf32>
    %10 = arith.addf %7, %9 : vector<128x128xf32>
    %11 = arith.negf %10 : vector<128x128xf32>
    %12 = math.exp %11 : vector<128x128xf32>
    %cst = arith.constant 1.000000e+00 : f32
    %13 = vector.broadcast %cst : f32 to vector<128x128xf32>
    %14 = arith.addf %13, %12 : vector<128x128xf32>
    %15 = arith.divf %13, %14 : vector<128x128xf32>
    %16 = arith.mulf %10, %15 : vector<128x128xf32>
    %c0_7 = arith.constant 0 : index
    %c0_8 = arith.constant 0 : index
    %17 = vector.load %arg5[%c0_7, %c0_8] : memref<128x128xf32, #tpu.memory_space<vmem>>, vector<128x128xf32>
    tpu.vector_store %arg5[%c0_7, %c0_8], %16 {strides = array<i32>} : memref<128x128xf32, #tpu.memory_space<vmem>>, vector<128x128xf32>,
    return
  }
  func.func @transform_0(%arg0: i32) -> (i32, i32) {
    %c0_i32 = arith.constant 0 : i32
    %c0_i32_0 = arith.constant 0 : i32
    return %arg0, %c0_i32 : i32, i32
  }
  func.func @transform_1(%arg0: i32) -> (i32, i32) {
    %c0_i32 = arith.constant 0 : i32
    %c0_i32_0 = arith.constant 0 : i32
    return %arg0, %c0_i32 : i32, i32
  }
  func.func @transform_2(%arg0: i32) -> (i32, i32) {
    %c0_i32 = arith.constant 0 : i32
    %c0_i32_0 = arith.constant 0 : i32
    %c0_i32_1 = arith.constant 0 : i32
    return %c0_i32, %c0_i32_0 : i32, i32
  }
  func.func @transform_3(%arg0: i32) -> (i32, i32) {
    %c0_i32 = arith.constant 0 : i32
    %c0_i32_0 = arith.constant 0 : i32
    %c0_i32_1 = arith.constant 0 : i32
    return %c0_i32, %c0_i32_0 : i32, i32
  }
  func.func @transform_4(%arg0: i32) -> (i32, i32) {
    %c0_i32 = arith.constant 0 : i32
    %c0_i32_0 = arith.constant 0 : i32
    return %arg0, %c0_i32 : i32, i32
  }
}

</mosaic_0001>

<llo_original>
// kernel: res_down_forward.3
$region0: #{res_down_forward.3}
  #allocation0 [shape = 'u32[]', space=smem, size = 0x4, offset = 0x4, fixed_abs, tag = 'smem constant byte address 0x4 - core index']
  #allocation1 [shape = 'u32[144,128]{1,0:T(1,128)}', space=vmem, size = 0x12000, scoped, tag = 'internal scratch']
  %s0 = inlined_call_operand.vmem [shape: bf16[128,36], index: 0, kind: input, shape index: {}]
  %s1 = inlined_call_operand.vmem [shape: bf16[36,256], index: 1, kind: input, shape index: {}]
  %s2 = inlined_call_operand.vmem [shape: f32[1,128], index: 2, kind: input, shape index: {}]
  %s3 = inlined_call_operand.vmem [shape: bf16[128,128], index: 3, kind: output, shape index: {0}]
  %s4 = inlined_call_operand.vmem [shape: bf16[128,128], index: 4, kind: output, shape index: {1}]
  %s5 = inlined_call_operand.vmem [shape: f32[1,2,128], index: 5, kind: output, shape index: {2}]
  %6 = xla_tuple %s3, %s4, %s5
  %s7 = sld [smem:[#allocation0]]
  $region38: #{res_down_forward.3} parent=0
    _
  %s9 = ssub.s32 1, %s7
  %s10 = scalar_select 0, %s9, %s7
  // Predicated region
  $region2: #{res_down_forward.3} parent=0 // pred_check
    _
  $region3: #{res_down_forward.3} parent=0 // pred_check_branch
    %12 = sbr.rel (0) target = $region5
  $region4: #{res_down_forward.3} parent=0 // pred_region
    _
  $region5: #{res_down_forward.3} parent=0 // pred_fallthru
    _
  // Predicated region
  $region6: #{res_down_forward.3} parent=0 // pred_check
    _
  $region7: #{res_down_forward.3} parent=0 // pred_check_branch
    %14 = sbr.rel (0) target = $region9
  $region8: #{res_down_forward.3} parent=0 // pred_region
    _
  $region9: #{res_down_forward.3} parent=0 // pred_fallthru
    _
  // Predicated region
  $region10: #{res_down_forward.3} parent=0 // pred_check
    _
  $region11: #{res_down_forward.3} parent=0 // pred_check_branch
    %16 = sbr.rel (0) target = $region13
  $region12: #{res_down_forward.3} parent=0 // pred_region
    _
  $region13: #{res_down_forward.3} parent=0 // pred_fallthru
    _
  %v18 = vld [vmem:[%s0] sm:$0xf]
  %v19 = vld [vmem:[%s0 + $0x4] sm:$0xf]
  %v20 = vld [vmem:[%s0 + $0x8] sm:$0xf]
  %v21 = vld [vmem:[%s0 + $0xc] sm:$0xf]
  %v22 = vld [vmem:[%s0 + $0x10] sm:$0xf]
  %v23 = vld [vmem:[%s0 + $0x14] sm:$0xf]
  %v24 = vld [vmem:[%s0 + $0x18] sm:$0xf]
  %v25 = vld [vmem:[%s0 + $0x1c] sm:$0xf]
  %v26 = vld [vmem:[%s0 + $0x20] sm:$0xf]
  %v27 = vld [vmem:[%s0 + $0x24] sm:$0xf]
  %v28 = vld [vmem:[%s0 + $0x28] sm:$0xf]
  %v29 = vld [vmem:[%s0 + $0x2c] sm:$0xf]
  %v30 = vld [vmem:[%s0 + $0x30] sm:$0xf]
  %v31 = vld [vmem:[%s0 + $0x34] sm:$0xf]
  %v32 = vld [vmem:[%s0 + $0x38] sm:$0xf]
  %v33 = vld [vmem:[%s0 + $0x3c] sm:$0xf]
  %v34 = vld [vmem:[%s1] sm:$0xff]
  %v35 = vld [vmem:[%s1 + $0x8] sm:$0xff]
  %v36 = vld [vmem:[%s1 + $0x10] sm:$0xff]
  %v37 = vld [vmem:[%s1 + $0x18] sm:$0xff]
  %v38 = vld [vmem:[%s1 + $0x20] sm:$0x33]
  %v55 = vunpack.c.l.b16 %v18
  %v56 = vunpack.c.l.b16 %v19
  %v57 = vunpack.c.l.b16 %v20
  %v58 = vunpack.c.l.b16 %v21
  %v59 = vunpack.c.l.b16 %v22
  %v60 = vunpack.c.l.b16 %v23
  %v61 = vunpack.c.l.b16 %v24
  %v62 = vunpack.c.l.b16 %v25
  %v63 = vunpack.c.l.b16 %v26
  %v64 = vunpack.c.l.b16 %v27
  %v65 = vunpack.c.l.b16 %v28
  %v66 = vunpack.c.l.b16 %v29
  %v67 = vunpack.c.l.b16 %v30
  %v68 = vunpack.c.l.b16 %v31
  %v69 = vunpack.c.l.b16 %v32
  %v70 = vunpack.c.l.b16 %v33
  %v71 = vpack.c.b16 %v56, %v55
  %v72 = vpack.c.b16 %v58, %v57
  %v73 = vpack.c.b16 %v60, %v59
  %v74 = vpack.c.b16 %v62, %v61
  %v75 = vpack.c.b16 %v64, %v63
  %v76 = vpack.c.b16 %v66, %v65
  %v77 = vpack.c.b16 %v68, %v67
  %v78 = vpack.c.b16 %v70, %v69
  %v84 = vunpack.c.l.b16 %v34
  %v85 = vunpack.c.h.b16 %v34
  %v86 = vunpack.c.l.b16 %v35
  %v87 = vunpack.c.h.b16 %v35
  %v88 = vunpack.c.l.b16 %v36
  %v89 = vunpack.c.h.b16 %v36
  %v90 = vunpack.c.l.b16 %v37
  %v91 = vunpack.c.h.b16 %v37
  %v92 = vunpack.c.l.b16 %v38
  %v93 = vunpack.c.h.b16 %v38
  %v94 = vpack.c.b16 %v86, %v84
  %v95 = vpack.c.b16 %v87, %v85
  %v96 = vpack.c.b16 %v90, %v88
  %v97 = vpack.c.b16 %v91, %v89
  %v98 = vpack.c.b16 %v92, %v92
  %v99 = vpack.c.b16 %v93, %v93
  %vm104 = vcmask 293888
  %v106 = vsel %vm104, %v71, 0
  %v109 = vsel %vm104, %v72, 0
  %v112 = vsel %vm104, %v73, 0
  %v115 = vsel %vm104, %v74, 0
  %v118 = vsel %vm104, %v75, 0
  %v121 = vsel %vm104, %v76, 0
  %v124 = vsel %vm104, %v77, 0
  %v127 = vsel %vm104, %v78, 0
  %vm129 = vcmask 1041408
  %v131 = vsel %vm129, %v98, 0
  %v134 = vsel %vm129, %v99, 0
  %136 = vmatprep.subr.bf16.mxu0 %v95
  %137 = vmatpush1.bf16.msra.mxu0 %v94
  %138 = vmatprep.subr.bf16.mxu0 %v97
  %139 = vmatpush1.bf16.msra.mxu0 %v96
  %140 = vmatprep.subr.bf16.mxu0 %v134
  %141 = vmatpush1.bf16.msra.mxu0 %v131
  %142 = vmatprep.subr.bf16.mxu0 0
  %143 = vmatpush1.bf16.msra.mxu0 0
  %144 = vmatprep.subr.bf16.mxu0 0
  %145 = vmatpush1.bf16.msra.mxu0 0
  %146 = vmatprep.subr.bf16.mxu0 0
  %147 = vmatpush1.bf16.msra.mxu0 0
  %148 = vmatprep.subr.bf16.mxu0 0
  %149 = vmatpush1.bf16.msra.mxu0 0
  %150 = vmatprep.subr.bf16.mxu0 0
  %151 = vmatpush1.bf16.msra.mxu0 0
  %152 = vmatprep.subr.bf16.mxu0 0
  %153 = vmatpush1.bf16.msra.mxu0 0
  %154 = vmatprep.subr.bf16.mxu0 0
  %155 = vmatpush1.bf16.msra.mxu0 0
  %156 = vmatprep.subr.bf16.mxu0 0
  %157 = vmatpush1.bf16.msra.mxu0 0
  %158 = vmatprep.subr.bf16.mxu0 0
  %159 = vmatpush1.bf16.msra.mxu0 0
  %160 = vmatprep.subr.bf16.mxu0 0
  %161 = vmatpush1.bf16.msra.mxu0 0
  %162 = vmatprep.subr.bf16.mxu0 0
  %163 = vmatpush1.bf16.msra.mxu0 0
  %164 = vmatprep.subr.bf16.mxu0 0
  %165 = vmatpush1.bf16.msra.mxu0 0
  %166 = vmatprep.subr.bf16.mxu0 0
  %167 = vmatpush1.bf16.msra.mxu0 0
  %168 = vmatprep.mubr.bf16.mxu0 0
  %169 = vmatmul.mubr.bf16.gmra.mrb[0].mxu0 %v106
  %v170 = vpop.f32.mrb[0].mxu0
  %v171 = vadd.f32 0.0, %v170
  %v172 = vpop.f32.mrb[0].mxu0
  %v173 = vadd.f32 0.0, %v172
  %v174 = vpop.f32.mrb[0].mxu0
  %v175 = vadd.f32 0.0, %v174
  %v176 = vpop.f32.mrb[0].mxu0
  %v177 = vadd.f32 0.0, %v176
  %178 = vmatprep.mubr.bf16.mxu0 0
  %179 = vmatmul.mubr.bf16.gmra.mrb[0].mxu0 %v109
  %v180 = vpop.f32.mrb[0].mxu0
  %v181 = vadd.f32 0.0, %v180
  %v182 = vpop.f32.mrb[0].mxu0
  %v183 = vadd.f32 0.0, %v182
  %v184 = vpop.f32.mrb[0].mxu0
  %v185 = vadd.f32 0.0, %v184
  %v186 = vpop.f32.mrb[0].mxu0
  %v187 = vadd.f32 0.0, %v186
  %188 = vmatprep.mubr.bf16.mxu0 0
  %189 = vmatmul.mubr.bf16.gmra.mrb[0].mxu0 %v112
  %v190 = vpop.f32.mrb[0].mxu0
  %v191 = vadd.f32 0.0, %v190
  %v192 = vpop.f32.mrb[0].mxu0
  %v193 = vadd.f32 0.0, %v192
  %v194 = vpop.f32.mrb[0].mxu0
  %v195 = vadd.f32 0.0, %v194
  %v196 = vpop.f32.mrb[0].mxu0
  %v197 = vadd.f32 0.0, %v196
  %198 = vmatprep.mubr.bf16.mxu0 0
  %199 = vmatmul.mubr.bf16.gmra.mrb[0].mxu0 %v115
  %v200 = vpop.f32.mrb[0].mxu0
  %v201 = vadd.f32 0.0, %v200
  %v202 = vpop.f32.mrb[0].mxu0
  %v203 = vadd.f32 0.0, %v202
  %v204 = vpop.f32.mrb[0].mxu0
  %v205 = vadd.f32 0.0, %v204
  %v206 = vpop.f32.mrb[0].mxu0
  %v207 = vadd.f32 0.0, %v206
  %208 = vmatprep.mubr.bf16.mxu0 0
  %209 = vmatmul.mubr.bf16.gmra.mrb[0].mxu0 %v118
  %v210 = vpop.f32.mrb[0].mxu0
  %v211 = vadd.f32 0.0, %v210
  %v212 = vpop.f32.mrb[0].mxu0
  %v213 = vadd.f32 0.0, %v212
  %v214 = vpop.f32.mrb[0].mxu0
  %v215 = vadd.f32 0.0, %v214
  %v216 = vpop.f32.mrb[0].mxu0
  %v217 = vadd.f32 0.0, %v216
  %218 = vmatprep.mubr.bf16.mxu0 0
  %219 = vmatmul.mubr.bf16.gmra.mrb[0].mxu0 %v121
  %v220 = vpop.f32.mrb[0].mxu0
  %v221 = vadd.f32 0.0, %v220
  %v222 = vpop.f32.mrb[0].mxu0
  %v223 = vadd.f32 0.0, %v222
  %v224 = vpop.f32.mrb[0].mxu0
  %v225 = vadd.f32 0.0, %v224
  %v226 = vpop.f32.mrb[0].mxu0
  %v227 = vadd.f32 0.0, %v226
  %228 = vmatprep.mubr.bf16.mxu0 0
  %229 = vmatmul.mubr.bf16.gmra.mrb[0].mxu0 %v124
  %v230 = vpop.f32.mrb[0].mxu0
  %v231 = vadd.f32 0.0, %v230
  %v232 = vpop.f32.mrb[0].mxu0
  %v233 = vadd.f32 0.0, %v232
  %v234 = vpop.f32.mrb[0].mxu0
  %v235 = vadd.f32 0.0, %v234
  %v236 = vpop.f32.mrb[0].mxu0
  %v237 = vadd.f32 0.0, %v236
  %238 = vmatprep.mubr.bf16.mxu0 0
  %239 = vmatmul.mubr.bf16.gmra.mrb[0].mxu0 %v127
  %v240 = vpop.f32.mrb[0].mxu0
  %v241 = vadd.f32 0.0, %v240
  %v242 = vpop.f32.mrb[0].mxu0
  %v243 = vadd.f32 0.0, %v242
  %v244 = vpop.f32.mrb[0].mxu0
  %v245 = vadd.f32 0.0, %v244
  %v246 = vpop.f32.mrb[0].mxu0
  %v247 = vadd.f32 0.0, %v246
  %248 = vdwg.mxu0
  %v249 = vpack.c.bf16 %v175, %v171
  %v250 = vpack.c.bf16 %v185, %v181
  %v251 = vpack.c.bf16 %v195, %v191
  %v252 = vpack.c.bf16 %v205, %v201
  %v253 = vpack.c.bf16 %v215, %v211
  %v254 = vpack.c.bf16 %v225, %v221
  %v255 = vpack.c.bf16 %v235, %v231
  %v256 = vpack.c.bf16 %v245, %v241
  %v265 = vunpack.c.l.b16 %v249
  %v266 = vunpack.c.h.b16 %v249
  %v267 = vunpack.c.l.b16 %v250
  %v268 = vunpack.c.h.b16 %v250
  %v269 = vunpack.c.l.b16 %v251
  %v270 = vunpack.c.h.b16 %v251
  %v271 = vunpack.c.l.b16 %v252
  %v272 = vunpack.c.h.b16 %v252
  %v273 = vunpack.c.l.b16 %v253
  %v274 = vunpack.c.h.b16 %v253
  %v275 = vunpack.c.l.b16 %v254
  %v276 = vunpack.c.h.b16 %v254
  %v277 = vunpack.c.l.b16 %v255
  %v278 = vunpack.c.h.b16 %v255
  %v279 = vunpack.c.l.b16 %v256
  %v280 = vunpack.c.h.b16 %v256
  %v281 = vpack.c.b16 %v265, %v265
  %v282 = vpack.c.b16 %v266, %v266
  %v283 = vpack.c.b16 %v267, %v267
  %v284 = vpack.c.b16 %v268, %v268
  %v285 = vpack.c.b16 %v269, %v269
  %v286 = vpack.c.b16 %v270, %v270
  %v287 = vpack.c.b16 %v271, %v271
  %v288 = vpack.c.b16 %v272, %v272
  %v289 = vpack.c.b16 %v273, %v273
  %v290 = vpack.c.b16 %v274, %v274
  %v291 = vpack.c.b16 %v275, %v275
  %v292 = vpack.c.b16 %v276, %v276
  %v293 = vpack.c.b16 %v277, %v277
  %v294 = vpack.c.b16 %v278, %v278
  %v295 = vpack.c.b16 %v279, %v279
  %v296 = vpack.c.b16 %v280, %v280
  %313 = vst [vmem:[%s3] sm:$0xf] %v281
  %314 = vst [vmem:[%s3 + $0x4] sm:$0xf] %v282
  %315 = vst [vmem:[%s3 + $0x8] sm:$0xf] %v283
  %316 = vst [vmem:[%s3 + $0xc] sm:$0xf] %v284
  %317 = vst [vmem:[%s3 + $0x10] sm:$0xf] %v285
  %318 = vst [vmem:[%s3 + $0x14] sm:$0xf] %v286
  %319 = vst [vmem:[%s3 + $0x18] sm:$0xf] %v287
  %320 = vst [vmem:[%s3 + $0x1c] sm:$0xf] %v288
  %321 = vst [vmem:[%s3 + $0x20] sm:$0xf] %v289
  %322 = vst [vmem:[%s3 + $0x24] sm:$0xf] %v290
  %323 = vst [vmem:[%s3 + $0x28] sm:$0xf] %v291
  %324 = vst [vmem:[%s3 + $0x2c] sm:$0xf] %v292
  %325 = vst [vmem:[%s3 + $0x30] sm:$0xf] %v293
  %326 = vst [vmem:[%s3 + $0x34] sm:$0xf] %v294
  %327 = vst [vmem:[%s3 + $0x38] sm:$0xf] %v295
  %328 = vst [vmem:[%s3 + $0x3c] sm:$0xf] %v296
  %v329 = vld [vmem:[%s2] sm:$0x1]
  %v331 = vlaneseq
  %v332 = vshrl.u32 %v331, 7
  %v333 = vsub.s32 0, %v332
  %v334 = vrot.slane %v329, %v333
  %v336 = vadd.f32 %v173, %v334
  %v337 = vadd.f32 %v177, %v334
  %v338 = vadd.f32 %v183, %v334
  %v339 = vadd.f32 %v187, %v334
  %v340 = vadd.f32 %v193, %v334
  %v341 = vadd.f32 %v197, %v334
  %v342 = vadd.f32 %v203, %v334
  %v343 = vadd.f32 %v207, %v334
  %v344 = vadd.f32 %v213, %v334
  %v345 = vadd.f32 %v217, %v334
  %v346 = vadd.f32 %v223, %v334
  %v347 = vadd.f32 %v227, %v334
  %v348 = vadd.f32 %v233, %v334
  %v349 = vadd.f32 %v237, %v334
  %v350 = vadd.f32 %v243, %v334
  %v351 = vadd.f32 %v247, %v334
  %v352 = vpack.c.bf16 %v337, %v336
  %v353 = vpack.c.bf16 %v339, %v338
  %v354 = vpack.c.bf16 %v341, %v340
  %v355 = vpack.c.bf16 %v343, %v342
  %v356 = vpack.c.bf16 %v345, %v344
  %v357 = vpack.c.bf16 %v347, %v346
  %v358 = vpack.c.bf16 %v349, %v348
  %v359 = vpack.c.bf16 %v351, %v350
  %v368 = vunpack.c.l.b16 %v352
  %v369 = vunpack.c.h.b16 %v352
  %v370 = vunpack.c.l.b16 %v353
  %v371 = vunpack.c.h.b16 %v353
  %v372 = vunpack.c.l.b16 %v354
  %v373 = vunpack.c.h.b16 %v354
  %v374 = vunpack.c.l.b16 %v355
  %v375 = vunpack.c.h.b16 %v355
  %v376 = vunpack.c.l.b16 %v356
  %v377 = vunpack.c.h.b16 %v356
  %v378 = vunpack.c.l.b16 %v357
  %v379 = vunpack.c.h.b16 %v357
  %v380 = vunpack.c.l.b16 %v358
  %v381 = vunpack.c.h.b16 %v358
  %v382 = vunpack.c.l.b16 %v359
  %v383 = vunpack.c.h.b16 %v359
  %v384 = vpack.c.b16 %v368, %v368
  %v385 = vpack.c.b16 %v369, %v369
  %v386 = vpack.c.b16 %v370, %v370
  %v387 = vpack.c.b16 %v371, %v371
  %v388 = vpack.c.b16 %v372, %v372
  %v389 = vpack.c.b16 %v373, %v373
  %v390 = vpack.c.b16 %v374, %v374
  %v391 = vpack.c.b16 %v375, %v375
  %v392 = vpack.c.b16 %v376, %v376
  %v393 = vpack.c.b16 %v377, %v377
  %v394 = vpack.c.b16 %v378, %v378
  %v395 = vpack.c.b16 %v379, %v379
  %v396 = vpack.c.b16 %v380, %v380
  %v397 = vpack.c.b16 %v381, %v381
  %v398 = vpack.c.b16 %v382, %v382
  %v399 = vpack.c.b16 %v383, %v383
  %416 = vst [vmem:[%s4] sm:$0xf] %v384
  %417 = vst [vmem:[%s4 + $0x4] sm:$0xf] %v385
  %418 = vst [vmem:[%s4 + $0x8] sm:$0xf] %v386
  %419 = vst [vmem:[%s4 + $0xc] sm:$0xf] %v387
  %420 = vst [vmem:[%s4 + $0x10] sm:$0xf] %v388
  %421 = vst [vmem:[%s4 + $0x14] sm:$0xf] %v389
  %422 = vst [vmem:[%s4 + $0x18] sm:$0xf] %v390
  %423 = vst [vmem:[%s4 + $0x1c] sm:$0xf] %v391
  %424 = vst [vmem:[%s4 + $0x20] sm:$0xf] %v392
  %425 = vst [vmem:[%s4 + $0x24] sm:$0xf] %v393
  %426 = vst [vmem:[%s4 + $0x28] sm:$0xf] %v394
  %427 = vst [vmem:[%s4 + $0x2c] sm:$0xf] %v395
  %428 = vst [vmem:[%s4 + $0x30] sm:$0xf] %v396
  %429 = vst [vmem:[%s4 + $0x34] sm:$0xf] %v397
  %430 = vst [vmem:[%s4 + $0x38] sm:$0xf] %v398
  %431 = vst [vmem:[%s4 + $0x3c] sm:$0xf] %v399
  %v432 = vadd.f32 %v171, %v175
  %v433 = vadd.f32 %v432, %v181
  %v434 = vadd.f32 %v433, %v185
  %v435 = vadd.f32 %v434, %v191
  %v436 = vadd.f32 %v435, %v195
  %v437 = vadd.f32 %v436, %v201
  %v438 = vadd.f32 %v437, %v205
  %v439 = vadd.f32 %v438, %v211
  %v440 = vadd.f32 %v439, %v215
  %v441 = vadd.f32 %v440, %v221
  %v442 = vadd.f32 %v441, %v225
  %v443 = vadd.f32 %v442, %v231
  %v444 = vadd.f32 %v443, %v235
  %v445 = vadd.f32 %v444, %v241
  %v446 = vadd.f32 %v445, %v245
  %v447 = vrot.slane %v446, 4
  %v448 = vadd.f32 %v446, %v447
  %v449 = vrot.slane %v448, 2
  %v450 = vadd.f32 %v448, %v449
  %v451 = vrot.slane %v450, 1
  %v452 = vadd.f32 %v450, %v451
  %v453 = vmul.f32 %v171, %v171
  %v454 = vmul.f32 %v175, %v175
  %v455 = vmul.f32 %v181, %v181
  %v456 = vmul.f32 %v185, %v185
  %v457 = vmul.f32 %v191, %v191
  %v458 = vmul.f32 %v195, %v195
  %v459 = vmul.f32 %v201, %v201
  %v460 = vmul.f32 %v205, %v205
  %v461 = vmul.f32 %v211, %v211
  %v462 = vmul.f32 %v215, %v215
  %v463 = vmul.f32 %v221, %v221
  %v464 = vmul.f32 %v225, %v225
  %v465 = vmul.f32 %v231, %v231
  %v466 = vmul.f32 %v235, %v235
  %v467 = vmul.f32 %v241, %v241
  %v468 = vmul.f32 %v245, %v245
  %v469 = vadd.f32 %v453, %v454
  %v470 = vadd.f32 %v469, %v455
  %v471 = vadd.f32 %v470, %v456
  %v472 = vadd.f32 %v471, %v457
  %v473 = vadd.f32 %v472, %v458
  %v474 = vadd.f32 %v473, %v459
  %v475 = vadd.f32 %v474, %v460
  %v476 = vadd.f32 %v475, %v461
  %v477 = vadd.f32 %v476, %v462
  %v478 = vadd.f32 %v477, %v463
  %v479 = vadd.f32 %v478, %v464
  %v480 = vadd.f32 %v479, %v465
  %v481 = vadd.f32 %v480, %v466
  %v482 = vadd.f32 %v481, %v467
  %v483 = vadd.f32 %v482, %v468
  %v484 = vrot.slane %v483, 4
  %v485 = vadd.f32 %v483, %v484
  %v486 = vrot.slane %v485, 2
  %v487 = vadd.f32 %v485, %v486
  %v488 = vrot.slane %v487, 1
  %v489 = vadd.f32 %v487, %v488
  %vm490 = vcmask 1040384
  %v491 = vsel %vm490, %v452, %v489
  %492 = vst [vmem:[%s5] sm:$0x3] %v491
  // Predicated region
  $region14: #{res_down_forward.3} parent=0 // pred_check
    _
  $region15: #{res_down_forward.3} parent=0 // pred_check_branch
    %494 = sbr.rel (0) target = $region17
  $region16: #{res_down_forward.3} parent=0 // pred_region
    _
  $region17: #{res_down_forward.3} parent=0 // pred_fallthru
    _
  // Predicated region
  $region18: #{res_down_forward.3} parent=0 // pred_check
    _
  $region19: #{res_down_forward.3} parent=0 // pred_check_branch
    %496 = sbr.rel (0) target = $region21
  $region20: #{res_down_forward.3} parent=0 // pred_region
    _
  $region21: #{res_down_forward.3} parent=0 // pred_fallthru
    _
  // Predicated region
  $region22: #{res_down_forward.3} parent=0 // pred_check
    _
  $region23: #{res_down_forward.3} parent=0 // pred_check_branch
    %498 = sbr.rel (0) target = $region25
  $region24: #{res_down_forward.3} parent=0 // pred_region
    _
  $region25: #{res_down_forward.3} parent=0 // pred_fallthru
    _
  // Predicated region
  $region26: #{res_down_forward.3} parent=0 // pred_check
    _
  $region27: #{res_down_forward.3} parent=0 // pred_check_branch
    %500 = sbr.rel (0) target = $region29
  $region28: #{res_down_forward.3} parent=0 // pred_region
    _
  $region29: #{res_down_forward.3} parent=0 // pred_fallthru
    _
  // Predicated region
  $region30: #{res_down_forward.3} parent=0 // pred_check
    _
  $region31: #{res_down_forward.3} parent=0 // pred_check_branch
    %502 = sbr.rel (0) target = $region33
  $region32: #{res_down_forward.3} parent=0 // pred_region
    _
  $region33: #{res_down_forward.3} parent=0 // pred_fallthru
    _
  // Predicated region
  $region34: #{res_down_forward.3} parent=0 // pred_check
    _
  $region35: #{res_down_forward.3} parent=0 // pred_check_branch
    %504 = sbr.rel (0) target = $region37
  $region36: #{res_down_forward.3} parent=0 // pred_region
    _
  $region37: #{res_down_forward.3} parent=0 // pred_fallthru
    _

// kernel: res_down_forward.5
$region0: #{res_down_forward.5}
  #allocation0 [shape = 'u32[]', space=smem, size = 0x4, offset = 0x4, fixed_abs, tag = 'smem constant byte address 0x4 - core index']
  #allocation1 [shape = 'u32[144,128]{1,0:T(1,128)}', space=vmem, size = 0x12000, scoped, tag = 'internal scratch']
  %s0 = inlined_call_operand.vmem [shape: bf16[128,128], index: 0, kind: input, shape index: {}]
  %s1 = inlined_call_operand.vmem [shape: bf16[128,128], index: 1, kind: input, shape index: {}]
  %s2 = inlined_call_operand.vmem [shape: f32[1,128], index: 2, kind: input, shape index: {}]
  %s3 = inlined_call_operand.vmem [shape: f32[1,128], index: 3, kind: input, shape index: {}]
  %s4 = inlined_call_operand.vmem [shape: f32[128,128], index: 4, kind: output, shape index: {}]
  %s5 = sld [smem:[#allocation0]]
  $region26: #{res_down_forward.5} parent=0
    _
  %s7 = ssub.s32 1, %s5
  %s8 = scalar_select 0, %s7, %s5
  // Predicated region
  $region2: #{res_down_forward.5} parent=0 // pred_check
    _
  $region3: #{res_down_forward.5} parent=0 // pred_check_branch
    %10 = sbr.rel (0) target = $region5
  $region4: #{res_down_forward.5} parent=0 // pred_region
    _
  $region5: #{res_down_forward.5} parent=0 // pred_fallthru
    _
  // Predicated region
  $region6: #{res_down_forward.5} parent=0 // pred_check
    _
  $region7: #{res_down_forward.5} parent=0 // pred_check_branch
    %12 = sbr.rel (0) target = $region9
  $region8: #{res_down_forward.5} parent=0 // pred_region
    _
  $region9: #{res_down_forward.5} parent=0 // pred_fallthru
    _
  // Predicated region
  $region10: #{res_down_forward.5} parent=0 // pred_check
    _
  $region11: #{res_down_forward.5} parent=0 // pred_check_branch
    %14 = sbr.rel (0) target = $region13
  $region12: #{res_down_forward.5} parent=0 // pred_region
    _
  $region13: #{res_down_forward.5} parent=0 // pred_fallthru
    _
  // Predicated region
  $region14: #{res_down_forward.5} parent=0 // pred_check
    _
  $region15: #{res_down_forward.5} parent=0 // pred_check_branch
    %16 = sbr.rel (0) target = $region17
  $region16: #{res_down_forward.5} parent=0 // pred_region
    _
  $region17: #{res_down_forward.5} parent=0 // pred_fallthru
    _
  %v17 = vld [vmem:[%s0] sm:$0xf]
  %v18 = vld [vmem:[%s0 + $0x4] sm:$0xf]
  %v19 = vld [vmem:[%s0 + $0x8] sm:$0xf]
  %v20 = vld [vmem:[%s0 + $0xc] sm:$0xf]
  %v21 = vld [vmem:[%s0 + $0x10] sm:$0xf]
  %v22 = vld [vmem:[%s0 + $0x14] sm:$0xf]
  %v23 = vld [vmem:[%s0 + $0x18] sm:$0xf]
  %v24 = vld [vmem:[%s0 + $0x1c] sm:$0xf]
  %v25 = vld [vmem:[%s0 + $0x20] sm:$0xf]
  %v26 = vld [vmem:[%s0 + $0x24] sm:$0xf]
  %v27 = vld [vmem:[%s0 + $0x28] sm:$0xf]
  %v28 = vld [vmem:[%s0 + $0x2c] sm:$0xf]
  %v29 = vld [vmem:[%s0 + $0x30] sm:$0xf]
  %v30 = vld [vmem:[%s0 + $0x34] sm:$0xf]
  %v31 = vld [vmem:[%s0 + $0x38] sm:$0xf]
  %v32 = vld [vmem:[%s0 + $0x3c] sm:$0xf]
  %v33 = vunpack.c.l.bf16 %v17
  %v34 = vunpack.c.l.bf16 %v18
  %v35 = vunpack.c.l.bf16 %v19
  %v36 = vunpack.c.l.bf16 %v20
  %v37 = vunpack.c.l.bf16 %v21
  %v38 = vunpack.c.l.bf16 %v22
  %v39 = vunpack.c.l.bf16 %v23
  %v40 = vunpack.c.l.bf16 %v24
  %v41 = vunpack.c.l.bf16 %v25
  %v42 = vunpack.c.l.bf16 %v26
  %v43 = vunpack.c.l.bf16 %v27
  %v44 = vunpack.c.l.bf16 %v28
  %v45 = vunpack.c.l.bf16 %v29
  %v46 = vunpack.c.l.bf16 %v30
  %v47 = vunpack.c.l.bf16 %v31
  %v48 = vunpack.c.l.bf16 %v32
  %v49 = vld [vmem:[%s2] sm:$0x1]
  %v51 = vlaneseq
  %v52 = vshrl.u32 %v51, 7
  %v53 = vsub.s32 0, %v52
  %v54 = vrot.slane %v49, %v53
  %v56 = vmul.f32 %v33, %v54
  %v57 = vmul.f32 %v34, %v54
  %v58 = vmul.f32 %v35, %v54
  %v59 = vmul.f32 %v36, %v54
  %v60 = vmul.f32 %v37, %v54
  %v61 = vmul.f32 %v38, %v54
  %v62 = vmul.f32 %v39, %v54
  %v63 = vmul.f32 %v40, %v54
  %v64 = vmul.f32 %v41, %v54
  %v65 = vmul.f32 %v42, %v54
  %v66 = vmul.f32 %v43, %v54
  %v67 = vmul.f32 %v44, %v54
  %v68 = vmul.f32 %v45, %v54
  %v69 = vmul.f32 %v46, %v54
  %v70 = vmul.f32 %v47, %v54
  %v71 = vmul.f32 %v48, %v54
  %v72 = vld [vmem:[%s3] sm:$0x1]
  %v74 = vlaneseq
  %v75 = vshrl.u32 %v74, 7
  %v76 = vsub.s32 0, %v75
  %v77 = vrot.slane %v72, %v76
  %v79 = vadd.f32 %v56, %v77
  %v80 = vadd.f32 %v57, %v77
  %v81 = vadd.f32 %v58, %v77
  %v82 = vadd.f32 %v59, %v77
  %v83 = vadd.f32 %v60, %v77
  %v84 = vadd.f32 %v61, %v77
  %v85 = vadd.f32 %v62, %v77
  %v86 = vadd.f32 %v63, %v77
  %v87 = vadd.f32 %v64, %v77
  %v88 = vadd.f32 %v65, %v77
  %v89 = vadd.f32 %v66, %v77
  %v90 = vadd.f32 %v67, %v77
  %v91 = vadd.f32 %v68, %v77
  %v92 = vadd.f32 %v69, %v77
  %v93 = vadd.f32 %v70, %v77
  %v94 = vadd.f32 %v71, %v77
  %v95 = vld [vmem:[%s1] sm:$0xf]
  %v96 = vld [vmem:[%s1 + $0x4] sm:$0xf]
  %v97 = vld [vmem:[%s1 + $0x8] sm:$0xf]
  %v98 = vld [vmem:[%s1 + $0xc] sm:$0xf]
  %v99 = vld [vmem:[%s1 + $0x10] sm:$0xf]
  %v100 = vld [vmem:[%s1 + $0x14] sm:$0xf]
  %v101 = vld [vmem:[%s1 + $0x18] sm:$0xf]
  %v102 = vld [vmem:[%s1 + $0x1c] sm:$0xf]
  %v103 = vld [vmem:[%s1 + $0x20] sm:$0xf]
  %v104 = vld [vmem:[%s1 + $0x24] sm:$0xf]
  %v105 = vld [vmem:[%s1 + $0x28] sm:$0xf]
  %v106 = vld [vmem:[%s1 + $0x2c] sm:$0xf]
  %v107 = vld [vmem:[%s1 + $0x30] sm:$0xf]
  %v108 = vld [vmem:[%s1 + $0x34] sm:$0xf]
  %v109 = vld [vmem:[%s1 + $0x38] sm:$0xf]
  %v110 = vld [vmem:[%s1 + $0x3c] sm:$0xf]
  %v111 = vunpack.c.l.bf16 %v95
  %v112 = vunpack.c.l.bf16 %v96
  %v113 = vunpack.c.l.bf16 %v97
  %v114 = vunpack.c.l.bf16 %v98
  %v115 = vunpack.c.l.bf16 %v99
  %v116 = vunpack.c.l.bf16 %v100
  %v117 = vunpack.c.l.bf16 %v101
  %v118 = vunpack.c.l.bf16 %v102
  %v119 = vunpack.c.l.bf16 %v103
  %v120 = vunpack.c.l.bf16 %v104
  %v121 = vunpack.c.l.bf16 %v105
  %v122 = vunpack.c.l.bf16 %v106
  %v123 = vunpack.c.l.bf16 %v107
  %v124 = vunpack.c.l.bf16 %v108
  %v125 = vunpack.c.l.bf16 %v109
  %v126 = vunpack.c.l.bf16 %v110
  %v127 = vadd.f32 %v79, %v111
  %v128 = vadd.f32 %v80, %v112
  %v129 = vadd.f32 %v81, %v113
  %v130 = vadd.f32 %v82, %v114
  %v131 = vadd.f32 %v83, %v115
  %v132 = vadd.f32 %v84, %v116
  %v133 = vadd.f32 %v85, %v117
  %v134 = vadd.f32 %v86, %v118
  %v135 = vadd.f32 %v87, %v119
  %v136 = vadd.f32 %v88, %v120
  %v137 = vadd.f32 %v89, %v121
  %v138 = vadd.f32 %v90, %v122
  %v139 = vadd.f32 %v91, %v123
  %v140 = vadd.f32 %v92, %v124
  %v141 = vadd.f32 %v93, %v125
  %v142 = vadd.f32 %v94, %v126
  %v143 = vxor.u32 %v127, 2147483648
  %v144 = vxor.u32 %v128, 2147483648
  %v145 = vxor.u32 %v129, 2147483648
  %v146 = vxor.u32 %v130, 2147483648
  %v147 = vxor.u32 %v131, 2147483648
  %v148 = vxor.u32 %v132, 2147483648
  %v149 = vxor.u32 %v133, 2147483648
  %v150 = vxor.u32 %v134, 2147483648
  %v151 = vxor.u32 %v135, 2147483648
  %v152 = vxor.u32 %v136, 2147483648
  %v153 = vxor.u32 %v137, 2147483648
  %v154 = vxor.u32 %v138, 2147483648
  %v155 = vxor.u32 %v139, 2147483648
  %v156 = vxor.u32 %v140, 2147483648
  %v157 = vxor.u32 %v141, 2147483648
  %v158 = vxor.u32 %v142, 2147483648
  %v159 = vmul.f32 %v143, 1.442695
  %v160 = vpow.pop %v159
  %v161 = vmul.f32 %v144, 1.442695
  %v162 = vpow.pop %v161
  %v163 = vmul.f32 %v145, 1.442695
  %v164 = vpow.pop %v163
  %v165 = vmul.f32 %v146, 1.442695
  %v166 = vpow.pop %v165
  %v167 = vmul.f32 %v147, 1.442695
  %v168 = vpow.pop %v167
  %v169 = vmul.f32 %v148, 1.442695
  %v170 = vpow.pop %v169
  %v171 = vmul.f32 %v149, 1.442695
  %v172 = vpow.pop %v171
  %v173 = vmul.f32 %v150, 1.442695
  %v174 = vpow.pop %v173
  %v175 = vmul.f32 %v151, 1.442695
  %v176 = vpow.pop %v175
  %v177 = vmul.f32 %v152, 1.442695
  %v178 = vpow.pop %v177
  %v179 = vmul.f32 %v153, 1.442695
  %v180 = vpow.pop %v179
  %v181 = vmul.f32 %v154, 1.442695
  %v182 = vpow.pop %v181
  %v183 = vmul.f32 %v155, 1.442695
  %v184 = vpow.pop %v183
  %v185 = vmul.f32 %v156, 1.442695
  %v186 = vpow.pop %v185
  %v187 = vmul.f32 %v157, 1.442695
  %v188 = vpow.pop %v187
  %v189 = vmul.f32 %v158, 1.442695
  %v190 = vpow.pop %v189
  %v191 = vadd.f32 %v160, 1.0
  %v192 = vadd.f32 %v162, 1.0
  %v193 = vadd.f32 %v164, 1.0
  %v194 = vadd.f32 %v166, 1.0
  %v195 = vadd.f32 %v168, 1.0
  %v196 = vadd.f32 %v170, 1.0
  %v197 = vadd.f32 %v172, 1.0
  %v198 = vadd.f32 %v174, 1.0
  %v199 = vadd.f32 %v176, 1.0
  %v200 = vadd.f32 %v178, 1.0
  %v201 = vadd.f32 %v180, 1.0
  %v202 = vadd.f32 %v182, 1.0
  %v203 = vadd.f32 %v184, 1.0
  %v204 = vadd.f32 %v186, 1.0
  %v205 = vadd.f32 %v188, 1.0
  %v206 = vadd.f32 %v190, 1.0
  %v207 = vrcp.pop %v191
  %v208 = vmul.f32 1.0, %v207
  %v209 = vrcp.pop %v192
  %v210 = vmul.f32 1.0, %v209
  %v211 = vrcp.pop %v193
  %v212 = vmul.f32 1.0, %v211
  %v213 = vrcp.pop %v194
  %v214 = vmul.f32 1.0, %v213
  %v215 = vrcp.pop %v195
  %v216 = vmul.f32 1.0, %v215
  %v217 = vrcp.pop %v196
  %v218 = vmul.f32 1.0, %v217
  %v219 = vrcp.pop %v197
  %v220 = vmul.f32 1.0, %v219
  %v221 = vrcp.pop %v198
  %v222 = vmul.f32 1.0, %v221
  %v223 = vrcp.pop %v199
  %v224 = vmul.f32 1.0, %v223
  %v225 = vrcp.pop %v200
  %v226 = vmul.f32 1.0, %v225
  %v227 = vrcp.pop %v201
  %v228 = vmul.f32 1.0, %v227
  %v229 = vrcp.pop %v202
  %v230 = vmul.f32 1.0, %v229
  %v231 = vrcp.pop %v203
  %v232 = vmul.f32 1.0, %v231
  %v233 = vrcp.pop %v204
  %v234 = vmul.f32 1.0, %v233
  %v235 = vrcp.pop %v205
  %v236 = vmul.f32 1.0, %v235
  %v237 = vrcp.pop %v206
  %v238 = vmul.f32 1.0, %v237
  %v239 = vmul.f32 %v127, %v208
  %v240 = vmul.f32 %v128, %v210
  %v241 = vmul.f32 %v129, %v212
  %v242 = vmul.f32 %v130, %v214
  %v243 = vmul.f32 %v131, %v216
  %v244 = vmul.f32 %v132, %v218
  %v245 = vmul.f32 %v133, %v220
  %v246 = vmul.f32 %v134, %v222
  %v247 = vmul.f32 %v135, %v224
  %v248 = vmul.f32 %v136, %v226
  %v249 = vmul.f32 %v137, %v228
  %v250 = vmul.f32 %v138, %v230
  %v251 = vmul.f32 %v139, %v232
  %v252 = vmul.f32 %v140, %v234
  %v253 = vmul.f32 %v141, %v236
  %v254 = vmul.f32 %v142, %v238
  %255 = vst [vmem:[%s4] sm:$0xff] %v239
  %256 = vst [vmem:[%s4 + $0x8] sm:$0xff] %v240
  %257 = vst [vmem:[%s4 + $0x10] sm:$0xff] %v241
  %258 = vst [vmem:[%s4 + $0x18] sm:$0xff] %v242
  %259 = vst [vmem:[%s4 + $0x20] sm:$0xff] %v243
  %260 = vst [vmem:[%s4 + $0x28] sm:$0xff] %v244
  %261 = vst [vmem:[%s4 + $0x30] sm:$0xff] %v245
  %262 = vst [vmem:[%s4 + $0x38] sm:$0xff] %v246
  %263 = vst [vmem:[%s4 + $0x40] sm:$0xff] %v247
  %264 = vst [vmem:[%s4 + $0x48] sm:$0xff] %v248
  %265 = vst [vmem:[%s4 + $0x50] sm:$0xff] %v249
  %266 = vst [vmem:[%s4 + $0x58] sm:$0xff] %v250
  %267 = vst [vmem:[%s4 + $0x60] sm:$0xff] %v251
  %268 = vst [vmem:[%s4 + $0x68] sm:$0xff] %v252
  %269 = vst [vmem:[%s4 + $0x70] sm:$0xff] %v253
  %270 = vst [vmem:[%s4 + $0x78] sm:$0xff] %v254
  // Predicated region
  $region18: #{res_down_forward.5} parent=0 // pred_check
    _
  $region19: #{res_down_forward.5} parent=0 // pred_check_branch
    %272 = sbr.rel (0) target = $region21
  $region20: #{res_down_forward.5} parent=0 // pred_region
    _
  $region21: #{res_down_forward.5} parent=0 // pred_fallthru
    _
  // Predicated region
  $region22: #{res_down_forward.5} parent=0 // pred_check
    _
  $region23: #{res_down_forward.5} parent=0 // pred_check_branch
    %274 = sbr.rel (0) target = $region25
  $region24: #{res_down_forward.5} parent=0 // pred_region
    _
  $region25: #{res_down_forward.5} parent=0 // pred_fallthru
    _

// kernel: res_down_forward.4
$region0: #{res_down_forward.4}
  #allocation0 [shape = 'u32[]', space=smem, size = 0x4, offset = 0x4, fixed_abs, tag = 'smem constant byte address 0x4 - core index']
  #allocation1 [shape = 'u32[144,128]{1,0:T(1,128)}', space=vmem, size = 0x12000, scoped, tag = 'internal scratch']
  %s0 = inlined_call_operand.vmem [shape: bf16[128,128], index: 0, kind: input, shape index: {}, may-alias: {0,1,2}]
  %s1 = inlined_call_operand.vmem [shape: bf16[128,128], index: 1, kind: input, shape index: {}, may-alias: {0,1,2}]
  %s2 = inlined_call_operand.vmem [shape: bf16[128,128], index: 2, kind: input, shape index: {}, may-alias: {0,1,2}]
  %s3 = inlined_call_operand.vmem [shape: f32[1,128], index: 3, kind: input, shape index: {}]
  %s4 = inlined_call_operand.vmem [shape: f32[1,128], index: 4, kind: input, shape index: {}]
  %s5 = inlined_call_operand.vmem [shape: bf16[3,3,128,128], index: 5, kind: input, shape index: {}]
  %s6 = inlined_call_operand.vmem [shape: bf16[128,128], index: 6, kind: output, shape index: {0}]
  %s7 = inlined_call_operand.vmem [shape: f32[2,2,128], index: 7, kind: output, shape index: {1}]
  %8 = xla_tuple %s6, %s7
  %s9 = sld [smem:[#allocation0]]
  $region65: #{res_down_forward.4} parent=0
    _
  %s11 = ssub.s32 1, %s9
  %s12 = scalar_select 0, %s11, %s9
  loop: start=0, step=1, limit=4
  $region2: #{res_down_forward.4} parent=0 // loop_pre_header
    _
  $region3: #{res_down_forward.4} parent=0 // loop_header
    %s14 = sphi 0, %s18
    %p15 = scmp.ge.s32.totalorder %s14, 4
    %s21 = sphi 0, %s33
    %s22 = sphi 0, %s29
    %s23 = sphi 0, %s21
    %s24 = sphi 0, %s22
    %s25 = sphi 0, %s23
    %s26 = sphi 0, %s24
    %s38 = sphi 0, %s40
    %s41 = sphi 0, %s38
    %s42 = sphi 0, %s41
    %s58 = sphi 0, %s42
    %s72 = sphi 0, %s74
    %s75 = sphi 0, %s72
    %s76 = sphi 0, %s75
    %s92 = sphi 0, %s76
    %s106 = sphi 0, %s108
    %s109 = sphi 0, %s106
    %s110 = sphi 0, %s109
    %s126 = sphi 0, %s110
    %s130 = sphi 0, %s130
    %s132 = sphi 0, %s130
    %s133 = sphi 0, %s132
    %s147 = sphi 0, %s133
    %s151 = sphi 0, %s151
    %s153 = sphi 0, %s151
    %s154 = sphi 0, %s153
    %s168 = sphi 0, %s154
    %s172 = sphi 0, %s172
    %s174 = sphi 0, %s172
    %s175 = sphi 0, %s174
    %s189 = sphi 0, %s175
    %s197 = sphi 0, %s199
    %s200 = sphi 0, %s197
    %s201 = sphi 0, %s200
    %s217 = sphi 0, %s201
    %s225 = sphi 0, %s227
    %s228 = sphi 0, %s225
    %s229 = sphi 0, %s228
    %s245 = sphi 0, %s229
  $region4: #{res_down_forward.4} parent=0 // loop_header_branch
    %17 = sbr.rel (%p15) target = $region8
  $region5: #{res_down_forward.4} parent=0 // loop_body
    %s19 = ssub.s32 %s14, 1
    %s20 = ssub.s32 %s14, 2
    %s27 = sadd.s32 1, %s22
    %p28 = scmp.ge.s32.totalorder %s27, 1
    %s29 = scalar_select %p28, 0, %s27
    %s30 = sadd.s32 1, %s21
    %s31 = scalar_select %p28, %s30, %s21
    %p32 = scmp.ge.s32.totalorder %s31, 2
    %s33 = scalar_select %p32, 0, %s31
    %s34 = sadd.s32 %s21, %s22
    %s35 = sadd.s32 %s33, %s29
    %s36 = ssub.s32 %s34, %s35
    %p37 = scmp.eq.s32.totalorder %s36, 0
    %s39 = sadd.s32 %s38, 1
    %s40 = scalar_select %p37, %s38, %s39
    %p43 = pneg %p37
    %p44 = scmp.eq.s32.totalorder %s14, 1
    %p45 = por %p43, %p44
    %p46 = scmp.ne.s32.totalorder %s38, %s41
    %p47 = scmp.eq.s32.totalorder %s14, 0
    %p48 = por %p46, %p47
    %p49 = scmp.ne.s32.totalorder %s38, %s41
    %p50 = scmp.eq.s32.totalorder %s19, 1
    %p51 = por %p49, %p50
    %p52 = scmp.ne.s32.totalorder %s41, %s42
    %p53 = scmp.eq.s32.totalorder %s19, 0
    %p54 = por %p52, %p53
    %p55 = scmp.ne.s32.totalorder %s41, %s42
    %p56 = scmp.eq.s32.totalorder %s20, 1
    %p57 = por %p55, %p56
    %p59 = scmp.ne.s32.totalorder %s42, %s58
    %p60 = scmp.eq.s32.totalorder %s20, 0
    %p61 = por %p59, %p60
    %s62 = ssub.s32 %s22, 1
    %p63 = scmp.gt.s32.totalorder %s62, 0
    %s64 = scalar_select %p63, %s62, 0
    %s65 = sadd.s32 %s21, %s64
    %s66 = ssub.s32 %s29, 1
    %p67 = scmp.gt.s32.totalorder %s66, 0
    %s68 = scalar_select %p67, %s66, 0
    %s69 = sadd.s32 %s33, %s68
    %s70 = ssub.s32 %s65, %s69
    %p71 = scmp.eq.s32.totalorder %s70, 0
    %s73 = sadd.s32 %s72, 1
    %s74 = scalar_select %p71, %s72, %s73
    %p77 = pneg %p71
    %p78 = scmp.eq.s32.totalorder %s14, 1
    %p79 = por %p77, %p78
    %p80 = scmp.ne.s32.totalorder %s72, %s75
    %p81 = scmp.eq.s32.totalorder %s14, 0
    %p82 = por %p80, %p81
    %p83 = scmp.ne.s32.totalorder %s72, %s75
    %p84 = scmp.eq.s32.totalorder %s19, 1
    %p85 = por %p83, %p84
    %p86 = scmp.ne.s32.totalorder %s75, %s76
    %p87 = scmp.eq.s32.totalorder %s19, 0
    %p88 = por %p86, %p87
    %p89 = scmp.ne.s32.totalorder %s75, %s76
    %p90 = scmp.eq.s32.totalorder %s20, 1
    %p91 = por %p89, %p90
    %p93 = scmp.ne.s32.totalorder %s76, %s92
    %p94 = scmp.eq.s32.totalorder %s20, 0
    %p95 = por %p93, %p94
    %s96 = sadd.s32 %s22, 1
    %p97 = scmp.lt.s32.totalorder %s96, 0
    %s98 = scalar_select %p97, %s96, 0
    %s99 = sadd.s32 %s21, %s98
    %s100 = sadd.s32 %s29, 1
    %p101 = scmp.lt.s32.totalorder %s100, 0
    %s102 = scalar_select %p101, %s100, 0
    %s103 = sadd.s32 %s33, %s102
    %s104 = ssub.s32 %s99, %s103
    %p105 = scmp.eq.s32.totalorder %s104, 0
    %s107 = sadd.s32 %s106, 1
    %s108 = scalar_select %p105, %s106, %s107
    %p111 = pneg %p105
    %p112 = scmp.eq.s32.totalorder %s14, 1
    %p113 = por %p111, %p112
    %p114 = scmp.ne.s32.totalorder %s106, %s109
    %p115 = scmp.eq.s32.totalorder %s14, 0
    %p116 = por %p114, %p115
    %p117 = scmp.ne.s32.totalorder %s106, %s109
    %p118 = scmp.eq.s32.totalorder %s19, 1
    %p119 = por %p117, %p118
    %p120 = scmp.ne.s32.totalorder %s109, %s110
    %p121 = scmp.eq.s32.totalorder %s19, 0
    %p122 = por %p120, %p121
    %p123 = scmp.ne.s32.totalorder %s109, %s110
    %p124 = scmp.eq.s32.totalorder %s20, 1
    %p125 = por %p123, %p124
    %p127 = scmp.ne.s32.totalorder %s110, %s126
    %p128 = scmp.eq.s32.totalorder %s20, 0
    %p129 = por %p127, %p128
    %s131 = sadd.s32 %s130, 1
    %p134 = scmp.eq.s32.totalorder %s14, 1
    %p135 = scmp.ne.s32.totalorder %s130, %s132
    %p136 = scmp.eq.s32.totalorder %s14, 0
    %p137 = por %p135, %p136
    %p138 = scmp.ne.s32.totalorder %s130, %s132
    %p139 = scmp.eq.s32.totalorder %s19, 1
    %p140 = por %p138, %p139
    %p141 = scmp.ne.s32.totalorder %s132, %s133
    %p142 = scmp.eq.s32.totalorder %s19, 0
    %p143 = por %p141, %p142
    %p144 = scmp.ne.s32.totalorder %s132, %s133
    %p145 = scmp.eq.s32.totalorder %s20, 1
    %p146 = por %p144, %p145
    %p148 = scmp.ne.s32.totalorder %s133, %s147
    %p149 = scmp.eq.s32.totalorder %s20, 0
    %p150 = por %p148, %p149
    %s152 = sadd.s32 %s151, 1
    %p155 = scmp.eq.s32.totalorder %s14, 1
    %p156 = scmp.ne.s32.totalorder %s151, %s153
    %p157 = scmp.eq.s32.totalorder %s14, 0
    %p158 = por %p156, %p157
    %p159 = scmp.ne.s32.totalorder %s151, %s153
    %p160 = scmp.eq.s32.totalorder %s19, 1
    %p161 = por %p159, %p160
    %p162 = scmp.ne.s32.totalorder %s153, %s154
    %p163 = scmp.eq.s32.totalorder %s19, 0
    %p164 = por %p162, %p163
    %p165 = scmp.ne.s32.totalorder %s153, %s154
    %p166 = scmp.eq.s32.totalorder %s20, 1
    %p167 = por %p165, %p166
    %p169 = scmp.ne.s32.totalorder %s154, %s168
    %p170 = scmp.eq.s32.totalorder %s20, 0
    %p171 = por %p169, %p170
    %s173 = sadd.s32 %s172, 1
    %p176 = scmp.eq.s32.totalorder %s14, 1
    %p177 = scmp.ne.s32.totalorder %s172, %s174
    %p178 = scmp.eq.s32.totalorder %s14, 0
    %p179 = por %p177, %p178
    %p180 = scmp.ne.s32.totalorder %s172, %s174
    %p181 = scmp.eq.s32.totalorder %s19, 1
    %p182 = por %p180, %p181
    %p183 = scmp.ne.s32.totalorder %s174, %s175
    %p184 = scmp.eq.s32.totalorder %s19, 0
    %p185 = por %p183, %p184
    %p186 = scmp.ne.s32.totalorder %s174, %s175
    %p187 = scmp.eq.s32.totalorder %s20, 1
    %p188 = por %p186, %p187
    %p190 = scmp.ne.s32.totalorder %s175, %s189
    %p191 = scmp.eq.s32.totalorder %s20, 0
    %p192 = por %p190, %p191
    %s193 = sadd.s32 %s21, %s22
    %s194 = sadd.s32 %s33, %s29
    %s195 = ssub.s32 %s193, %s194
    %p196 = scmp.eq.s32.totalorder %s195, 0
    %s198 = sadd.s32 %s197, 1
    %s199 = scalar_select %p196, %s197, %s198
    %p202 = pneg %p196
    %p203 = scmp.eq.s32.totalorder %s14, 1
    %p204 = por %p202, %p203
    %p205 = scmp.ne.s32.totalorder %s197, %s200
    %p206 = scmp.eq.s32.totalorder %s14, 0
    %p207 = por %p205, %p206
    %p208 = scmp.ne.s32.totalorder %s197, %s200
    %p209 = scmp.eq.s32.totalorder %s19, 1
    %p210 = por %p208, %p209
    %p211 = scmp.ne.s32.totalorder %s200, %s201
    %p212 = scmp.eq.s32.totalorder %s19, 0
    %p213 = por %p211, %p212
    %p214 = scmp.ne.s32.totalorder %s200, %s201
    %p215 = scmp.eq.s32.totalorder %s20, 1
    %p216 = por %p214, %p215
    %p218 = scmp.ne.s32.totalorder %s201, %s217
    %p219 = scmp.eq.s32.totalorder %s20, 0
    %p220 = por %p218, %p219
    %s221 = sadd.s32 %s21, %s22
    %s222 = sadd.s32 %s33, %s29
    %s223 = ssub.s32 %s221, %s222
    %p224 = scmp.eq.s32.totalorder %s223, 0
    %s226 = sadd.s32 %s225, 1
    %s227 = scalar_select %p224, %s225, %s226
    %p230 = pneg %p224
    %p231 = scmp.eq.s32.totalorder %s14, 1
    %p232 = por %p230, %p231
    %p233 = scmp.ne.s32.totalorder %s225, %s228
    %p234 = scmp.eq.s32.totalorder %s14, 0
    %p235 = por %p233, %p234
    %p236 = scmp.ne.s32.totalorder %s225, %s228
    %p237 = scmp.eq.s32.totalorder %s19, 1
    %p238 = por %p236, %p237
    %p239 = scmp.ne.s32.totalorder %s228, %s229
    %p240 = scmp.eq.s32.totalorder %s19, 0
    %p241 = por %p239, %p240
    %p242 = scmp.ne.s32.totalorder %s228, %s229
    %p243 = scmp.eq.s32.totalorder %s20, 1
    %p244 = por %p242, %p243
    %p246 = scmp.ne.s32.totalorder %s229, %s245
    %p247 = scmp.eq.s32.totalorder %s20, 0
    %p248 = por %p246, %p247
    %p249 = scmp.le.s32.totalorder 1, %s14
    %p250 = scmp.lt.s32.totalorder %s14, 3
    %p251 = pnand %p249, %p250
    %p252 = pneg %p251
    // Predicated region
    $region9: #{res_down_forward.4} parent=5 // pred_check
      _
    $region10: #{res_down_forward.4} parent=5 // pred_check_branch
      %254 = sbr.rel (%p251) target = $region12
    $region11: #{res_down_forward.4} parent=5 // pred_region
      %s255 = ssub.s32 %s14, 1
      // Predicated region
      $region13: #{res_down_forward.4} parent=11 // pred_check
        %p256 = pneg %p143
      $region14: #{res_down_forward.4} parent=11 // pred_check_branch
        %258 = sbr.rel (%p256) target = $region16
      $region15: #{res_down_forward.4} parent=11 // pred_region
        _
      $region16: #{res_down_forward.4} parent=11 // pred_fallthru
        _
      // Predicated region
      $region17: #{res_down_forward.4} parent=11 // pred_check
        %p259 = pneg %p164
      $region18: #{res_down_forward.4} parent=11 // pred_check_branch
        %261 = sbr.rel (%p259) target = $region20
      $region19: #{res_down_forward.4} parent=11 // pred_region
        _
      $region20: #{res_down_forward.4} parent=11 // pred_fallthru
        _
      // Predicated region
      $region21: #{res_down_forward.4} parent=11 // pred_check
        %p262 = pneg %p185
      $region22: #{res_down_forward.4} parent=11 // pred_check_branch
        %264 = sbr.rel (%p262) target = $region24
      $region23: #{res_down_forward.4} parent=11 // pred_region
        _
      $region24: #{res_down_forward.4} parent=11 // pred_fallthru
        _
    $region12: #{res_down_forward.4} parent=5 // pred_fallthru
      _
    %p265 = scmp.lt.s32.totalorder %s14, 2
    // Predicated region
    $region25: #{res_down_forward.4} parent=5 // pred_check
      %p266 = pneg %p265
    $region26: #{res_down_forward.4} parent=5 // pred_check_branch
      %268 = sbr.rel (%p266) target = $region28
    $region27: #{res_down_forward.4} parent=5 // pred_region
      // Predicated region
      $region29: #{res_down_forward.4} parent=27 // pred_check
        %p269 = pneg %p48
      $region30: #{res_down_forward.4} parent=27 // pred_check_branch
        %271 = sbr.rel (%p269) target = $region32
      $region31: #{res_down_forward.4} parent=27 // pred_region
        %s272 = sadd.s32 %s21, %s22
        %s273 = smul.u32 8, %s272
        %p274 = scmp.lt.s32.totalorder %s273, 15
        %s275 = scalar_select %p274, %s273, 15
        %s276 = smul.addr %s275, 4
        %s277 = scalar_lea.vmem %s0, %s276
        %s278 = sadd.s32 %s21, %s22
        %s279 = smul.u32 8, %s278
      $region32: #{res_down_forward.4} parent=27 // pred_fallthru
        _
      // Predicated region
      $region33: #{res_down_forward.4} parent=27 // pred_check
        %p280 = pneg %p82
      $region34: #{res_down_forward.4} parent=27 // pred_check_branch
        %282 = sbr.rel (%p280) target = $region36
      $region35: #{res_down_forward.4} parent=27 // pred_region
        %s283 = ssub.s32 %s22, 1
        %p284 = scmp.gt.s32.totalorder %s283, 0
        %s285 = scalar_select %p284, %s283, 0
        %s286 = sadd.s32 %s21, %s285
        %s287 = smul.u32 8, %s286
        %p288 = scmp.lt.s32.totalorder %s287, 15
        %s289 = scalar_select %p288, %s287, 15
        %s290 = smul.addr %s289, 4
        %s291 = scalar_lea.vmem %s1, %s290
        %s292 = ssub.s32 %s22, 1
        %p293 = scmp.gt.s32.totalorder %s292, 0
        %s294 = scalar_select %p293, %s292, 0
        %s295 = sadd.s32 %s21, %s294
        %s296 = smul.u32 8, %s295
      $region36: #{res_down_forward.4} parent=27 // pred_fallthru
        _
      // Predicated region
      $region37: #{res_down_forward.4} parent=27 // pred_check
        %p297 = pneg %p116
      $region38: #{res_down_forward.4} parent=27 // pred_check_branch
        %299 = sbr.rel (%p297) target = $region40
      $region39: #{res_down_forward.4} parent=27 // pred_region
        %s300 = sadd.s32 %s22, 1
        %p301 = scmp.lt.s32.totalorder %s300, 0
        %s302 = scalar_select %p301, %s300, 0
        %s303 = sadd.s32 %s21, %s302
        %s304 = smul.u32 8, %s303
        %p305 = scmp.lt.s32.totalorder %s304, 15
        %s306 = scalar_select %p305, %s304, 15
        %s307 = smul.addr %s306, 4
        %s308 = scalar_lea.vmem %s2, %s307
        %s309 = sadd.s32 %s22, 1
        %p310 = scmp.lt.s32.totalorder %s309, 0
        %s311 = scalar_select %p310, %s309, 0
        %s312 = sadd.s32 %s21, %s311
        %s313 = smul.u32 8, %s312
      $region40: #{res_down_forward.4} parent=27 // pred_fallthru
        _
    $region28: #{res_down_forward.4} parent=5 // pred_fallthru
      _
    %p314 = scmp.le.s32.totalorder 1, %s14
    %p315 = scmp.lt.s32.totalorder %s14, 3
    %p316 = pnand %p314, %p315
    %p317 = pneg %p316
    // Predicated region
    $region41: #{res_down_forward.4} parent=5 // pred_check
      _
    $region42: #{res_down_forward.4} parent=5 // pred_check_branch
      %319 = sbr.rel (%p316) target = $region44
    $region43: #{res_down_forward.4} parent=5 // pred_region
      %s320 = ssub.s32 %s14, 1
      %s321 = sadd.s32 %s23, %s24
      %s322 = smul.u32 8, %s321
      %p323 = scmp.lt.s32.totalorder %s322, 15
      %s324 = scalar_select %p323, %s322, 15
      %s325 = smul.addr %s324, 4
      %s326 = scalar_lea.vmem %s0, %s325
      %p327 = pneg %p54
      %p328 = pneg %p51
      %s329 = ssub.s32 %s24, 1
      %p330 = scmp.gt.s32.totalorder %s329, 0
      %s331 = scalar_select %p330, %s329, 0
      %s332 = sadd.s32 %s23, %s331
      %s333 = smul.u32 8, %s332
      %p334 = scmp.lt.s32.totalorder %s333, 15
      %s335 = scalar_select %p334, %s333, 15
      %s336 = smul.addr %s335, 4
      %s337 = scalar_lea.vmem %s1, %s336
      %p338 = pneg %p88
      %p339 = pneg %p85
      %s340 = sadd.s32 %s24, 1
      %p341 = scmp.lt.s32.totalorder %s340, 0
      %s342 = scalar_select %p341, %s340, 0
      %s343 = sadd.s32 %s23, %s342
      %s344 = smul.u32 8, %s343
      %p345 = scmp.lt.s32.totalorder %s344, 15
      %s346 = scalar_select %p345, %s344, 15
      %s347 = smul.addr %s346, 4
      %s348 = scalar_lea.vmem %s2, %s347
      %p349 = pneg %p122
      %p350 = pneg %p119
      %p351 = pneg %p143
      %p352 = pneg %p140
      %p353 = pneg %p164
      %p354 = pneg %p161
      %p355 = pneg %p185
      %p356 = pneg %p182
      %p357 = pneg %p213
      %p358 = pneg %p210
      %s359 = sadd.s32 %s23, %s24
      %s360 = smul.u32 8, %s359
      %p361 = scmp.lt.s32.totalorder %s360, 15
      %s362 = scalar_select %p361, %s360, 15
      %s363 = smul.addr %s362, 4
      %s364 = scalar_lea.vmem %s6, %s363
      %p365 = pneg %p241
      %p366 = pneg %p238
      %s367 = sadd.s32 %s23, %s24
      %p368 = scmp.lt.s32.totalorder %s367, 1
      %s369 = scalar_select %p368, %s367, 1
      %s370 = smul.addr %s369, 2
      %s371 = scalar_lea.vmem %s7, %s370
      %s372 = sadd.s32 %s23, %s24
      %s373 = smul.u32 8, %s372
      %p374 = scmp.lt.s32.totalorder %s373, 15
      %s375 = scalar_select %p374, %s373, 15
      %s376 = smul.addr %s375, 4
      %s377 = scalar_lea.vmem %s0, %s376
      %s378 = sadd.s32 %s23, %s24
      %s379 = smul.u32 8, %s378
      %s380 = ssub.s32 %s24, 1
      %p381 = scmp.gt.s32.totalorder %s380, 0
      %s382 = scalar_select %p381, %s380, 0
      %s383 = sadd.s32 %s23, %s382
      %s384 = smul.u32 8, %s383
      %p385 = scmp.lt.s32.totalorder %s384, 15
      %s386 = scalar_select %p385, %s384, 15
      %s387 = smul.addr %s386, 4
      %s388 = scalar_lea.vmem %s1, %s387
      %s389 = ssub.s32 %s24, 1
      %p390 = scmp.gt.s32.totalorder %s389, 0
      %s391 = scalar_select %p390, %s389, 0
      %s392 = sadd.s32 %s23, %s391
      %s393 = smul.u32 8, %s392
      %s394 = sadd.s32 %s24, 1
      %p395 = scmp.lt.s32.totalorder %s394, 0
      %s396 = scalar_select %p395, %s394, 0
      %s397 = sadd.s32 %s23, %s396
      %s398 = smul.u32 8, %s397
      %p399 = scmp.lt.s32.totalorder %s398, 15
      %s400 = scalar_select %p399, %s398, 15
      %s401 = smul.addr %s400, 4
      %s402 = scalar_lea.vmem %s2, %s401
      %s403 = sadd.s32 %s24, 1
      %p404 = scmp.lt.s32.totalorder %s403, 0
      %s405 = scalar_select %p404, %s403, 0
      %s406 = sadd.s32 %s23, %s405
      %s407 = smul.u32 8, %s406
      %s408 = sadd.s32 %s23, %s24
      %s409 = smul.u32 8, %s408
      %p410 = scmp.lt.s32.totalorder %s409, 15
      %s411 = scalar_select %p410, %s409, 15
      %s412 = smul.addr %s411, 4
      %s413 = scalar_lea.vmem %s6, %s412
      %s414 = sadd.s32 %s23, %s24
      %s415 = smul.u32 8, %s414
      %s416 = sadd.s32 %s23, %s24
      %p417 = scmp.lt.s32.totalorder %s416, 1
      %s418 = scalar_select %p417, %s416, 1
      %s419 = smul.addr %s418, 2
      %s420 = scalar_lea.vmem %s7, %s419
      %s421 = sadd.s32 %s23, %s24
      %v425 = vld [vmem:[%s3] sm:$0x1]
      %v426 = vld [vmem:[%s4] sm:$0x1]
      %p427 = scmp.gt.s32.totalorder %s24, 0
      %s428 = scalar_select %p427, 1.0, 0.0
      %p429 = scmp.lt.s32.totalorder %s24, 0
      %s430 = scalar_select %p429, 1.0, 0.0
      %v431 = vld [vmem:[%s377] sm:$0xf]
      %v432 = vld [vmem:[%s377 + $0x4] sm:$0xf]
      %v433 = vld [vmem:[%s377 + $0x8] sm:$0xf]
      %v434 = vld [vmem:[%s377 + $0xc] sm:$0xf]
      %v435 = vld [vmem:[%s377 + $0x10] sm:$0xf]
      %v436 = vld [vmem:[%s377 + $0x14] sm:$0xf]
      %v437 = vld [vmem:[%s377 + $0x18] sm:$0xf]
      %v438 = vld [vmem:[%s377 + $0x1c] sm:$0xf]
      %v439 = vunpack.c.l.bf16 %v431
      %v440 = vunpack.c.l.bf16 %v432
      %v441 = vunpack.c.l.bf16 %v433
      %v442 = vunpack.c.l.bf16 %v434
      %v443 = vunpack.c.l.bf16 %v435
      %v444 = vunpack.c.l.bf16 %v436
      %v445 = vunpack.c.l.bf16 %v437
      %v446 = vunpack.c.l.bf16 %v438
      %v448 = vlaneseq
      %v449 = vshrl.u32 %v448, 7
      %v450 = vsub.s32 0, %v449
      %v451 = vrot.slane %v425, %v450
      %v453 = vmul.f32 %v439, %v451
      %v454 = vmul.f32 %v440, %v451
      %v455 = vmul.f32 %v441, %v451
      %v456 = vmul.f32 %v442, %v451
      %v457 = vmul.f32 %v443, %v451
      %v458 = vmul.f32 %v444, %v451
      %v459 = vmul.f32 %v445, %v451
      %v460 = vmul.f32 %v446, %v451
      %v462 = vlaneseq
      %v463 = vshrl.u32 %v462, 7
      %v464 = vsub.s32 0, %v463
      %v465 = vrot.slane %v426, %v464
      %v467 = vadd.f32 %v453, %v465
      %v468 = vadd.f32 %v454, %v465
      %v469 = vadd.f32 %v455, %v465
      %v470 = vadd.f32 %v456, %v465
      %v471 = vadd.f32 %v457, %v465
      %v472 = vadd.f32 %v458, %v465
      %v473 = vadd.f32 %v459, %v465
      %v474 = vadd.f32 %v460, %v465
      %v475 = vxor.u32 %v467, 2147483648
      %v476 = vxor.u32 %v468, 2147483648
      %v477 = vxor.u32 %v469, 2147483648
      %v478 = vxor.u32 %v470, 2147483648
      %v479 = vxor.u32 %v471, 2147483648
      %v480 = vxor.u32 %v472, 2147483648
      %v481 = vxor.u32 %v473, 2147483648
      %v482 = vxor.u32 %v474, 2147483648
      %v483 = vmul.f32 %v475, 1.442695
      %v484 = vpow.pop %v483
      %v485 = vmul.f32 %v476, 1.442695
      %v486 = vpow.pop %v485
      %v487 = vmul.f32 %v477, 1.442695
      %v488 = vpow.pop %v487
      %v489 = vmul.f32 %v478, 1.442695
      %v490 = vpow.pop %v489
      %v491 = vmul.f32 %v479, 1.442695
      %v492 = vpow.pop %v491
      %v493 = vmul.f32 %v480, 1.442695
      %v494 = vpow.pop %v493
      %v495 = vmul.f32 %v481, 1.442695
      %v496 = vpow.pop %v495
      %v497 = vmul.f32 %v482, 1.442695
      %v498 = vpow.pop %v497
      %v499 = vadd.f32 %v484, 1.0
      %v500 = vadd.f32 %v486, 1.0
      %v501 = vadd.f32 %v488, 1.0
      %v502 = vadd.f32 %v490, 1.0
      %v503 = vadd.f32 %v492, 1.0
      %v504 = vadd.f32 %v494, 1.0
      %v505 = vadd.f32 %v496, 1.0
      %v506 = vadd.f32 %v498, 1.0
      %v507 = vrcp.pop %v499
      %v508 = vmul.f32 1.0, %v507
      %v509 = vrcp.pop %v500
      %v510 = vmul.f32 1.0, %v509
      %v511 = vrcp.pop %v501
      %v512 = vmul.f32 1.0, %v511
      %v513 = vrcp.pop %v502
      %v514 = vmul.f32 1.0, %v513
      %v515 = vrcp.pop %v503
      %v516 = vmul.f32 1.0, %v515
      %v517 = vrcp.pop %v504
      %v518 = vmul.f32 1.0, %v517
      %v519 = vrcp.pop %v505
      %v520 = vmul.f32 1.0, %v519
      %v521 = vrcp.pop %v506
      %v522 = vmul.f32 1.0, %v521
      %v523 = vmul.f32 %v467, %v508
      %v524 = vmul.f32 %v468, %v510
      %v525 = vmul.f32 %v469, %v512
      %v526 = vmul.f32 %v470, %v514
      %v527 = vmul.f32 %v471, %v516
      %v528 = vmul.f32 %v472, %v518
      %v529 = vmul.f32 %v473, %v520
      %v530 = vmul.f32 %v474, %v522
      %v531 = vpack.c.bf16 %v524, %v523
      %v532 = vpack.c.bf16 %v526, %v525
      %v533 = vpack.c.bf16 %v528, %v527
      %v534 = vpack.c.bf16 %v530, %v529
      %v535 = vld [vmem:[%s388 + $0x1c] sm:$0xf]
      %v536 = vunpack.c.l.bf16 %v535
      %v537 = vmul.f32 %v536, %v451
      %v538 = vadd.f32 %v537, %v465
      %v539 = vxor.u32 %v538, 2147483648
      %v540 = vmul.f32 %v539, 1.442695
      %v541 = vpow.pop %v540
      %v542 = vadd.f32 %v541, 1.0
      %v543 = vrcp.pop %v542
      %v544 = vmul.f32 1.0, %v543
      %v545 = vmul.f32 %v538, %v544
      %v546 = vstv %s428
      %v547 = vmul.f32 %v545, %v546
      %v548 = vpack.c.bf16 %v547, %v547
      %v549 = vld [vmem:[%s402] sm:$0xf]
      %v550 = vunpack.c.l.bf16 %v549
      %v551 = vmul.f32 %v550, %v451
      %v552 = vadd.f32 %v551, %v465
      %v553 = vxor.u32 %v552, 2147483648
      %v554 = vmul.f32 %v553, 1.442695
      %v555 = vpow.pop %v554
      %v556 = vadd.f32 %v555, 1.0
      %v557 = vrcp.pop %v556
      %v558 = vmul.f32 1.0, %v557
      %v559 = vmul.f32 %v552, %v558
      %v560 = vstv %s430
      %v561 = vmul.f32 %v559, %v560
      %v562 = vpack.c.bf16 %v561, %v561
      %v564 = vshrl.u32 %v548, 16
      %v566 = vrot.slane %v564, 7
      %v567 = vshll.u32 %v548, 16
      %v569 = vor.u32 %v566, %v567
      %vm571 = vsmask.f32 4352
      %v573 = vshrl.u32 %v531, 16
      %v575 = vrot.slane %v573, 3
      %v576 = vshll.u32 %v531, 16
      %v578 = vrot.slane %v576, 4
      %v579 = vor.u32 %v575, %v578
      %v581 = vshrl.u32 %v532, 16
      %v583 = vrot.slane %v581, 3
      %v584 = vshll.u32 %v532, 16
      %v586 = vrot.slane %v584, 4
      %v587 = vor.u32 %v583, %v586
      %v588 = vsel %vm571, %v579, %v587
      %v590 = vshrl.u32 %v533, 16
      %v592 = vrot.slane %v590, 3
      %v593 = vshll.u32 %v533, 16
      %v595 = vrot.slane %v593, 4
      %v596 = vor.u32 %v592, %v595
      %v597 = vsel %vm571, %v587, %v596
      %v599 = vshrl.u32 %v534, 16
      %v601 = vrot.slane %v599, 3
      %v602 = vshll.u32 %v534, 16
      %v604 = vrot.slane %v602, 4
      %v605 = vor.u32 %v601, %v604
      %v606 = vsel %vm571, %v596, %v605
      %v613 = vshrl.u32 %v562, 16
      %v615 = vrot.slane %v613, 3
      %v616 = vshll.u32 %v562, 16
      %v618 = vrot.slane %v616, 4
      %v619 = vor.u32 %v615, %v618
      %vm622 = vcmask 1040384
      %vm623 = vsmask.f32 256
      %vm624 = vmand %vm622, %vm623
      %v625 = vsel %vm624, 0, %v569
      %vm626 = vcmask 1044480
      %vm627 = vmand %vm626, %vm571
      %v628 = vsel %vm627, %v625, %v579
      %v629 = vsel %vm627, %v605, %v619
      %v630 = vsel %vm624, %v615, 0
      %v631 = vlaneseq
      %v632 = vshrl.u32 %v631, 7
      %v633 = vadd.s32 %v632, 8
      %v634 = vadd.s32 %v632, 16
      %v635 = vadd.s32 %v632, 24
      %v636 = vadd.s32 %v632, 32
      %v637 = vadd.s32 %v632, 40
      %v638 = vadd.s32 %v632, 48
      %v639 = vadd.s32 %v632, 56
      %vm640 = vcmp.lt.s32.totalorder %v632, 0
      %v641 = vsub.s32 0, %v632
      %v642 = vsel %vm640, %v641, %v632
      %v643 = vshrl.u32 %v642, 3
      %v644 = vand.u32 %v642, 7
      %v645 = vsub.s32 0, %v644
      %v646 = vsel %vm640, %v645, %v644
      %vm647 = vcmp.lt.s32.totalorder %v633, 0
      %v648 = vsub.s32 0, %v633
      %v649 = vsel %vm647, %v648, %v633
      %v650 = vshrl.u32 %v649, 3
      %v651 = vand.u32 %v649, 7
      %v652 = vsub.s32 0, %v651
      %v653 = vsel %vm647, %v652, %v651
      %vm654 = vcmp.lt.s32.totalorder %v634, 0
      %v655 = vsub.s32 0, %v634
      %v656 = vsel %vm654, %v655, %v634
      %v657 = vshrl.u32 %v656, 3
      %v658 = vand.u32 %v656, 7
      %v659 = vsub.s32 0, %v658
      %v660 = vsel %vm654, %v659, %v658
      %vm661 = vcmp.lt.s32.totalorder %v635, 0
      %v662 = vsub.s32 0, %v635
      %v663 = vsel %vm661, %v662, %v635
      %v664 = vshrl.u32 %v663, 3
      %v665 = vand.u32 %v663, 7
      %v666 = vsub.s32 0, %v665
      %v667 = vsel %vm661, %v666, %v665
      %vm668 = vcmp.lt.s32.totalorder %v636, 0
      %v669 = vsub.s32 0, %v636
      %v670 = vsel %vm668, %v669, %v636
      %v671 = vshrl.u32 %v670, 3
      %v672 = vand.u32 %v670, 7
      %v673 = vsub.s32 0, %v672
      %v674 = vsel %vm668, %v673, %v672
      %vm675 = vcmp.lt.s32.totalorder %v637, 0
      %v676 = vsub.s32 0, %v637
      %v677 = vsel %vm675, %v676, %v637
      %v678 = vshrl.u32 %v677, 3
      %v679 = vand.u32 %v677, 7
      %v680 = vsub.s32 0, %v679
      %v681 = vsel %vm675, %v680, %v679
      %vm682 = vcmp.lt.s32.totalorder %v638, 0
      %v683 = vsub.s32 0, %v638
      %v684 = vsel %vm682, %v683, %v638
      %v685 = vshrl.u32 %v684, 3
      %v686 = vand.u32 %v684, 7
      %v687 = vsub.s32 0, %v686
      %v688 = vsel %vm682, %v687, %v686
      %vm689 = vcmp.lt.s32.totalorder %v639, 0
      %v690 = vsub.s32 0, %v639
      %v691 = vsel %vm689, %v690, %v639
      %v692 = vshrl.u32 %v691, 3
      %v693 = vand.u32 %v691, 7
      %v694 = vsub.s32 0, %v693
      %v695 = vsel %vm689, %v694, %v693
      %vm696 = vcmp.ne.s32.totalorder %v646, 0
      %vm697 = vcmp.ne.s32.totalorder %v653, 0
      %vm698 = vcmp.ne.s32.totalorder %v660, 0
      %vm699 = vcmp.ne.s32.totalorder %v667, 0
      %vm700 = vcmp.ne.s32.totalorder %v674, 0
      %vm701 = vcmp.ne.s32.totalorder %v681, 0
      %vm702 = vcmp.ne.s32.totalorder %v688, 0
      %vm703 = vcmp.ne.s32.totalorder %v695, 0
      %vm704 = vcmp.lt.s32.totalorder %v646, 0
      %vm705 = vcmp.lt.s32.totalorder %v653, 0
      %vm706 = vcmp.lt.s32.totalorder %v660, 0
      %vm707 = vcmp.lt.s32.totalorder %v667, 0
      %vm708 = vcmp.lt.s32.totalorder %v674, 0
      %vm709 = vcmp.lt.s32.totalorder %v681, 0
      %vm710 = vcmp.lt.s32.totalorder %v688, 0
      %vm711 = vcmp.lt.s32.totalorder %v695, 0
      %vm712 = vmand %vm704, %vm696
      %vm713 = vmand %vm705, %vm697
      %vm714 = vmand %vm706, %vm698
      %vm715 = vmand %vm707, %vm699
      %vm716 = vmand %vm708, %vm700
      %vm717 = vmand %vm709, %vm701
      %vm718 = vmand %vm710, %vm702
      %vm719 = vmand %vm711, %vm703
      %v720 = vadd.s32 %v646, 8
      %v721 = vadd.s32 %v653, 8
      %v722 = vadd.s32 %v660, 8
      %v723 = vadd.s32 %v667, 8
      %v724 = vadd.s32 %v674, 8
      %v725 = vadd.s32 %v681, 8
      %v726 = vadd.s32 %v688, 8
      %v727 = vadd.s32 %v695, 8
      %v728 = vsel %vm712, %v720, %v646
      %v729 = vsel %vm713, %v721, %v653
      %v730 = vsel %vm714, %v722, %v660
      %v731 = vsel %vm715, %v723, %v667
      %v732 = vsel %vm716, %v724, %v674
      %v733 = vsel %vm717, %v725, %v681
      %v734 = vsel %vm718, %v726, %v688
      %v735 = vsel %vm719, %v727, %v695
      %vm736 = vcmp.gt.s32.totalorder %v728, 0
      %vm737 = vcmp.gt.s32.totalorder %v729, 0
      %vm738 = vcmp.gt.s32.totalorder %v730, 0
      %vm739 = vcmp.gt.s32.totalorder %v731, 0
      %vm740 = vcmp.gt.s32.totalorder %v732, 0
      %vm741 = vcmp.gt.s32.totalorder %v733, 0
      %vm742 = vcmp.gt.s32.totalorder %v734, 0
      %vm743 = vcmp.gt.s32.totalorder %v735, 0
      %vm744 = vcmp.lt.s32.totalorder %v728, 7
      %vm745 = vcmp.lt.s32.totalorder %v729, 7
      %vm746 = vcmp.lt.s32.totalorder %v730, 7
      %vm747 = vcmp.lt.s32.totalorder %v731, 7
      %vm748 = vcmp.lt.s32.totalorder %v732, 7
      %vm749 = vcmp.lt.s32.totalorder %v733, 7
      %vm750 = vcmp.lt.s32.totalorder %v734, 7
      %vm751 = vcmp.lt.s32.totalorder %v735, 7
      %v752 = vsel %vm736, 1, 0
      %v753 = vsel %vm737, 1, 0
      %v754 = vsel %vm738, 1, 0
      %v755 = vsel %vm739, 1, 0
      %v756 = vsel %vm740, 1, 0
      %v757 = vsel %vm741, 1, 0
      %v758 = vsel %vm742, 1, 0
      %v759 = vsel %vm743, 1, 0
      %vm760 = vcmp.eq.s32.totalorder %v752, 1
      %vm761 = vcmp.eq.s32.totalorder %v753, 1
      %vm762 = vcmp.eq.s32.totalorder %v754, 1
      %vm763 = vcmp.eq.s32.totalorder %v755, 1
      %vm764 = vcmp.eq.s32.totalorder %v756, 1
      %vm765 = vcmp.eq.s32.totalorder %v757, 1
      %vm766 = vcmp.eq.s32.totalorder %v758, 1
      %vm767 = vcmp.eq.s32.totalorder %v759, 1
      %vm768 = vmpackc.low %vm760, %vm760
      %vm769 = vmpackc.low %vm761, %vm761
      %vm770 = vmpackc.low %vm762, %vm762
      %vm771 = vmpackc.low %vm763, %vm763
      %vm772 = vmpackc.low %vm764, %vm764
      %vm773 = vmpackc.low %vm765, %vm765
      %vm774 = vmpackc.low %vm766, %vm766
      %vm775 = vmpackc.low %vm767, %vm767
      %v776 = vsel %vm768, 65537, 0
      %v777 = vsel %vm769, 65537, 0
      %v778 = vsel %vm770, 65537, 0
      %v779 = vsel %vm771, 65537, 0
      %v780 = vsel %vm772, 65537, 0
      %v781 = vsel %vm773, 65537, 0
      %v782 = vsel %vm774, 65537, 0
      %v783 = vsel %vm775, 65537, 0
      %v784 = vunpack.c.l.b16 %v776
      %v785 = vunpack.c.l.b16 %v777
      %v786 = vunpack.c.l.b16 %v778
      %v787 = vunpack.c.l.b16 %v779
      %v788 = vunpack.c.l.b16 %v780
      %v789 = vunpack.c.l.b16 %v781
      %v790 = vunpack.c.l.b16 %v782
      %v791 = vunpack.c.l.b16 %v783
      %v792 = vpack.c.b16 %v785, %v784
      %v793 = vpack.c.b16 %v787, %v786
      %v794 = vpack.c.b16 %v789, %v788
      %v795 = vpack.c.b16 %v791, %v790
      %vm796 = vcmp.ne.s16.totalorder %v792, 0
      %vm797 = vcmp.ne.s16.totalorder %v793, 0
      %vm798 = vcmp.ne.s16.totalorder %v794, 0
      %vm799 = vcmp.ne.s16.totalorder %v795, 0
      %v800 = vsel %vm796, %v628, 0
      %v801 = vsel %vm797, %v588, 0
      %v802 = vsel %vm798, %v597, 0
      %v803 = vsel %vm799, %v606, 0
      %v804 = vld [vmem:[%s5] sm:$0xf]
      %v805 = vld [vmem:[%s5 + $0x4] sm:$0xf]
      %v806 = vld [vmem:[%s5 + $0x8] sm:$0xf]
      %v807 = vld [vmem:[%s5 + $0xc] sm:$0xf]
      %v808 = vld [vmem:[%s5 + $0x10] sm:$0xf]
      %v809 = vld [vmem:[%s5 + $0x14] sm:$0xf]
      %v810 = vld [vmem:[%s5 + $0x18] sm:$0xf]
      %v811 = vld [vmem:[%s5 + $0x1c] sm:$0xf]
      %v812 = vld [vmem:[%s5 + $0x20] sm:$0xf]
      %v813 = vld [vmem:[%s5 + $0x24] sm:$0xf]
      %v814 = vld [vmem:[%s5 + $0x28] sm:$0xf]
      %v815 = vld [vmem:[%s5 + $0x2c] sm:$0xf]
      %v816 = vld [vmem:[%s5 + $0x30] sm:$0xf]
      %v817 = vld [vmem:[%s5 + $0x34] sm:$0xf]
      %v818 = vld [vmem:[%s5 + $0x38] sm:$0xf]
      %v819 = vld [vmem:[%s5 + $0x3c] sm:$0xf]
      %s820 = scalar_lea.vmem %s5, 64
      %v821 = vld [vmem:[%s820] sm:$0xf]
      %v822 = vld [vmem:[%s820 + $0x4] sm:$0xf]
      %v823 = vld [vmem:[%s820 + $0x8] sm:$0xf]
      %v824 = vld [vmem:[%s820 + $0xc] sm:$0xf]
      %v825 = vld [vmem:[%s820 + $0x10] sm:$0xf]
      %v826 = vld [vmem:[%s820 + $0x14] sm:$0xf]
      %v827 = vld [vmem:[%s820 + $0x18] sm:$0xf]
      %v828 = vld [vmem:[%s820 + $0x1c] sm:$0xf]
      %v829 = vld [vmem:[%s820 + $0x20] sm:$0xf]
      %v830 = vld [vmem:[%s820 + $0x24] sm:$0xf]
      %v831 = vld [vmem:[%s820 + $0x28] sm:$0xf]
      %v832 = vld [vmem:[%s820 + $0x2c] sm:$0xf]
      %v833 = vld [vmem:[%s820 + $0x30] sm:$0xf]
      %v834 = vld [vmem:[%s820 + $0x34] sm:$0xf]
      %v835 = vld [vmem:[%s820 + $0x38] sm:$0xf]
      %v836 = vld [vmem:[%s820 + $0x3c] sm:$0xf]
      %vm837 = vsmask.f32 7424
      %v839 = vshrl.u32 %v628, 16
      %v841 = vshll.u32 %v628, 16
      %v843 = vrot.slane %v841, 1
      %v844 = vor.u32 %v839, %v843
      %v846 = vshll.u32 %v588, 16
      %v848 = vrot.slane %v846, 1
      %v849 = vsel %vm837, %v844, %v848
      %v850 = vshrl.u32 %v588, 16
      %v852 = vor.u32 %v850, %v848
      %v854 = vshll.u32 %v597, 16
      %v856 = vrot.slane %v854, 1
      %v857 = vsel %vm837, %v852, %v856
      %v858 = vshrl.u32 %v597, 16
      %v860 = vor.u32 %v858, %v856
      %v862 = vshll.u32 %v606, 16
      %v864 = vrot.slane %v862, 1
      %v865 = vsel %vm837, %v860, %v864
      %v866 = vshrl.u32 %v606, 16
      %v868 = vor.u32 %v866, %v864
      %v870 = vshll.u32 %v629, 16
      %v872 = vrot.slane %v870, 1
      %v873 = vsel %vm837, %v868, %v872
      %v894 = vunpack.c.l.b16 %v821
      %v895 = vunpack.c.l.b16 %v822
      %v896 = vunpack.c.l.b16 %v823
      %v897 = vunpack.c.l.b16 %v824
      %v898 = vunpack.c.l.b16 %v825
      %v899 = vunpack.c.l.b16 %v826
      %v900 = vunpack.c.l.b16 %v827
      %v901 = vunpack.c.l.b16 %v828
      %v902 = vunpack.c.l.b16 %v829
      %v903 = vunpack.c.l.b16 %v830
      %v904 = vunpack.c.l.b16 %v831
      %v905 = vunpack.c.l.b16 %v832
      %v906 = vunpack.c.l.b16 %v833
      %v907 = vunpack.c.l.b16 %v834
      %v908 = vunpack.c.l.b16 %v835
      %v909 = vunpack.c.l.b16 %v836
      %v910 = vpack.c.b16 %v895, %v894
      %v911 = vpack.c.b16 %v897, %v896
      %v912 = vpack.c.b16 %v899, %v898
      %v913 = vpack.c.b16 %v901, %v900
      %v914 = vpack.c.b16 %v903, %v902
      %v915 = vpack.c.b16 %v905, %v904
      %v916 = vpack.c.b16 %v907, %v906
      %v917 = vpack.c.b16 %v909, %v908
      %926 = vmatprep.subr.bf16.mxu0 0
      %927 = vmatpush1.bf16.msra.mxu0 %v910
      %928 = vmatprep.subr.bf16.mxu0 0
      %929 = vmatpush1.bf16.msra.mxu0 %v911
      %930 = vmatprep.subr.bf16.mxu0 0
      %931 = vmatpush1.bf16.msra.mxu0 %v912
      %932 = vmatprep.subr.bf16.mxu0 0
      %933 = vmatpush1.bf16.msra.mxu0 %v913
      %934 = vmatprep.subr.bf16.mxu0 0
      %935 = vmatpush1.bf16.msra.mxu0 %v914
      %936 = vmatprep.subr.bf16.mxu0 0
      %937 = vmatpush1.bf16.msra.mxu0 %v915
      %938 = vmatprep.subr.bf16.mxu0 0
      %939 = vmatpush1.bf16.msra.mxu0 %v916
      %940 = vmatprep.subr.bf16.mxu0 0
      %941 = vmatpush1.bf16.msra.mxu0 %v917
      %942 = vmatprep.subr.bf16.mxu0 0
      %943 = vmatpush1.bf16.msra.mxu0 0
      %944 = vmatprep.subr.bf16.mxu0 0
      %945 = vmatpush1.bf16.msra.mxu0 0
      %946 = vmatprep.subr.bf16.mxu0 0
      %947 = vmatpush1.bf16.msra.mxu0 0
      %948 = vmatprep.subr.bf16.mxu0 0
      %949 = vmatpush1.bf16.msra.mxu0 0
      %950 = vmatprep.subr.bf16.mxu0 0
      %951 = vmatpush1.bf16.msra.mxu0 0
      %952 = vmatprep.subr.bf16.mxu0 0
      %953 = vmatpush1.bf16.msra.mxu0 0
      %954 = vmatprep.subr.bf16.mxu0 0
      %955 = vmatpush1.bf16.msra.mxu0 0
      %956 = vmatprep.subr.bf16.mxu0 0
      %957 = vmatpush1.bf16.msra.mxu0 0
      %958 = vmatprep.mubr.bf16.mxu0 0
      %959 = vmatmul.mubr.bf16.gmra.mrb[0].mxu0 %v849
      %v960 = vpop.f32.mrb[0].mxu0
      %v961 = vadd.f32 0.0, %v960
      %v962 = vpop.f32.mrb[0].mxu0
      %v963 = vpop.f32.mrb[0].mxu0
      %v964 = vadd.f32 0.0, %v963
      %v965 = vpop.f32.mrb[0].mxu0
      %966 = vmatprep.mubr.bf16.mxu0 0
      %967 = vmatmul.mubr.bf16.gmra.mrb[0].mxu0 %v857
      %v968 = vpop.f32.mrb[0].mxu0
      %v969 = vadd.f32 0.0, %v968
      %v970 = vpop.f32.mrb[0].mxu0
      %v971 = vpop.f32.mrb[0].mxu0
      %v972 = vadd.f32 0.0, %v971
      %v973 = vpop.f32.mrb[0].mxu0
      %974 = vmatprep.mubr.bf16.mxu0 0
      %975 = vmatmul.mubr.bf16.gmra.mrb[0].mxu0 %v865
      %v976 = vpop.f32.mrb[0].mxu0
      %v977 = vadd.f32 0.0, %v976
      %v978 = vpop.f32.mrb[0].mxu0
      %v979 = vpop.f32.mrb[0].mxu0
      %v980 = vadd.f32 0.0, %v979
      %v981 = vpop.f32.mrb[0].mxu0
      %982 = vmatprep.mubr.bf16.mxu0 0
      %983 = vmatmul.mubr.bf16.gmra.mrb[0].mxu0 %v873
      %v984 = vpop.f32.mrb[0].mxu0
      %v985 = vadd.f32 0.0, %v984
      %v986 = vpop.f32.mrb[0].mxu0
      %v987 = vpop.f32.mrb[0].mxu0
      %v988 = vadd.f32 0.0, %v987
      %v989 = vpop.f32.mrb[0].mxu0
      %990 = vdwg.mxu0
      %v1007 = vunpack.c.l.b16 %v804
      %v1008 = vunpack.c.l.b16 %v805
      %v1009 = vunpack.c.l.b16 %v806
      %v1010 = vunpack.c.l.b16 %v807
      %v1011 = vunpack.c.l.b16 %v808
      %v1012 = vunpack.c.l.b16 %v809
      %v1013 = vunpack.c.l.b16 %v810
      %v1014 = vunpack.c.l.b16 %v811
      %v1015 = vunpack.c.l.b16 %v812
      %v1016 = vunpack.c.l.b16 %v813
      %v1017 = vunpack.c.l.b16 %v814
      %v1018 = vunpack.c.l.b16 %v815
      %v1019 = vunpack.c.l.b16 %v816
      %v1020 = vunpack.c.l.b16 %v817
      %v1021 = vunpack.c.l.b16 %v818
      %v1022 = vunpack.c.l.b16 %v819
      %v1023 = vpack.c.b16 %v1008, %v1007
      %v1024 = vpack.c.b16 %v1010, %v1009
      %v1025 = vpack.c.b16 %v1012, %v1011
      %v1026 = vpack.c.b16 %v1014, %v1013
      %v1027 = vpack.c.b16 %v1016, %v1015
      %v1028 = vpack.c.b16 %v1018, %v1017
      %v1029 = vpack.c.b16 %v1020, %v1019
      %v1030 = vpack.c.b16 %v1022, %v1021
      %1039 = vmatprep.subr.bf16.mxu0 0
      %1040 = vmatpush1.bf16.msra.mxu0 %v1023
      %1041 = vmatprep.subr.bf16.mxu0 0
      %1042 = vmatpush1.bf16.msra.mxu0 %v1024
      %1043 = vmatprep.subr.bf16.mxu0 0
      %1044 = vmatpush1.bf16.msra.mxu0 %v1025
      %1045 = vmatprep.subr.bf16.mxu0 0
      %1046 = vmatpush1.bf16.msra.mxu0 %v1026
      %1047 = vmatprep.subr.bf16.mxu0 0
      %1048 = vmatpush1.bf16.msra.mxu0 %v1027
      %1049 = vmatprep.subr.bf16.mxu0 0
      %1050 = vmatpush1.bf16.msra.mxu0 %v1028
      %1051 = vmatprep.subr.bf16.mxu0 0
      %1052 = vmatpush1.bf16.msra.mxu0 %v1029
      %1053 = vmatprep.subr.bf16.mxu0 0
      %1054 = vmatpush1.bf16.msra.mxu0 %v1030
      %1055 = vmatprep.subr.bf16.mxu0 0
      %1056 = vmatpush1.bf16.msra.mxu0 0
      %1057 = vmatprep.subr.bf16.mxu0 0
      %1058 = vmatpush1.bf16.msra.mxu0 0
      %1059 = vmatprep.subr.bf16.mxu0 0
      %1060 = vmatpush1.bf16.msra.mxu0 0
      %1061 = vmatprep.subr.bf16.mxu0 0
      %1062 = vmatpush1.bf16.msra.mxu0 0
      %1063 = vmatprep.subr.bf16.mxu0 0
      %1064 = vmatpush1.bf16.msra.mxu0 0
      %1065 = vmatprep.subr.bf16.mxu0 0
      %1066 = vmatpush1.bf16.msra.mxu0 0
      %1067 = vmatprep.subr.bf16.mxu0 0
      %1068 = vmatpush1.bf16.msra.mxu0 0
      %1069 = vmatprep.subr.bf16.mxu0 0
      %1070 = vmatpush1.bf16.msra.mxu0 0
      %1071 = vmatprep.mubr.bf16.mxu0 0
      %1072 = vmatmul.mubr.bf16.gmra.mrb[0].mxu0 %v800
      %v1073 = vpop.f32.mrb[0].mxu0
      %v1074 = vadd.f32 %v961, %v1073
      %v1075 = vpop.f32.mrb[0].mxu0
      %v1076 = vpop.f32.mrb[0].mxu0
      %v1077 = vadd.f32 %v964, %v1076
      %v1078 = vpop.f32.mrb[0].mxu0
      %1079 = vmatprep.mubr.bf16.mxu0 0
      %1080 = vmatmul.mubr.bf16.gmra.mrb[0].mxu0 %v801
      %v1081 = vpop.f32.mrb[0].mxu0
      %v1082 = vadd.f32 %v969, %v1081
      %v1083 = vpop.f32.mrb[0].mxu0
      %v1084 = vpop.f32.mrb[0].mxu0
      %v1085 = vadd.f32 %v972, %v1084
      %v1086 = vpop.f32.mrb[0].mxu0
      %1087 = vmatprep.mubr.bf16.mxu0 0
      %1088 = vmatmul.mubr.bf16.gmra.mrb[0].mxu0 %v802
      %v1089 = vpop.f32.mrb[0].mxu0
      %v1090 = vadd.f32 %v977, %v1089
      %v1091 = vpop.f32.mrb[0].mxu0
      %v1092 = vpop.f32.mrb[0].mxu0
      %v1093 = vadd.f32 %v980, %v1092
      %v1094 = vpop.f32.mrb[0].mxu0
      %1095 = vmatprep.mubr.bf16.mxu0 0
      %1096 = vmatmul.mubr.bf16.gmra.mrb[0].mxu0 %v803
      %v1097 = vpop.f32.mrb[0].mxu0
      %v1098 = vadd.f32 %v985, %v1097
      %v1099 = vpop.f32.mrb[0].mxu0
      %v1100 = vpop.f32.mrb[0].mxu0
      %v1101 = vadd.f32 %v988, %v1100
      %v1102 = vpop.f32.mrb[0].mxu0
      %1103 = vdwg.mxu0
      %v1104 = vsel %vm744, 1, 0
      %v1105 = vsel %vm745, 1, 0
      %v1106 = vsel %vm746, 1, 0
      %v1107 = vsel %vm747, 1, 0
      %v1108 = vsel %vm748, 1, 0
      %v1109 = vsel %vm749, 1, 0
      %v1110 = vsel %vm750, 1, 0
      %v1111 = vsel %vm751, 1, 0
      %vm1112 = vcmp.eq.s32.totalorder %v1104, 1
      %vm1113 = vcmp.eq.s32.totalorder %v1105, 1
      %vm1114 = vcmp.eq.s32.totalorder %v1106, 1
      %vm1115 = vcmp.eq.s32.totalorder %v1107, 1
      %vm1116 = vcmp.eq.s32.totalorder %v1108, 1
      %vm1117 = vcmp.eq.s32.totalorder %v1109, 1
      %vm1118 = vcmp.eq.s32.totalorder %v1110, 1
      %vm1119 = vcmp.eq.s32.totalorder %v1111, 1
      %vm1120 = vmpackc.low %vm1112, %vm1112
      %vm1121 = vmpackc.low %vm1113, %vm1113
      %vm1122 = vmpackc.low %vm1114, %vm1114
      %vm1123 = vmpackc.low %vm1115, %vm1115
      %vm1124 = vmpackc.low %vm1116, %vm1116
      %vm1125 = vmpackc.low %vm1117, %vm1117
      %vm1126 = vmpackc.low %vm1118, %vm1118
      %vm1127 = vmpackc.low %vm1119, %vm1119
      %v1128 = vsel %vm1120, 65537, 0
      %v1129 = vsel %vm1121, 65537, 0
      %v1130 = vsel %vm1122, 65537, 0
      %v1131 = vsel %vm1123, 65537, 0
      %v1132 = vsel %vm1124, 65537, 0
      %v1133 = vsel %vm1125, 65537, 0
      %v1134 = vsel %vm1126, 65537, 0
      %v1135 = vsel %vm1127, 65537, 0
      %v1136 = vunpack.c.l.b16 %v1128
      %v1137 = vunpack.c.l.b16 %v1129
      %v1138 = vunpack.c.l.b16 %v1130
      %v1139 = vunpack.c.l.b16 %v1131
      %v1140 = vunpack.c.l.b16 %v1132
      %v1141 = vunpack.c.l.b16 %v1133
      %v1142 = vunpack.c.l.b16 %v1134
      %v1143 = vunpack.c.l.b16 %v1135
      %v1144 = vpack.c.b16 %v1137, %v1136
      %v1145 = vpack.c.b16 %v1139, %v1138
      %v1146 = vpack.c.b16 %v1141, %v1140
      %v1147 = vpack.c.b16 %v1143, %v1142
      %v1148 = vrot.slane %v1144, 7
      %v1149 = vrot.slane %v1145, 7
      %v1150 = vsel %vm622, %v1148, %v1149
      %v1151 = vrot.slane %v1146, 7
      %v1152 = vsel %vm622, %v1149, %v1151
      %v1153 = vrot.slane %v1147, 7
      %v1154 = vsel %vm622, %v1151, %v1153
      %vm1155 = vcmp.ne.s16.totalorder %v1148, 0
      %vm1156 = vcmp.ne.s16.totalorder %v1150, 0
      %vm1157 = vcmp.ne.s16.totalorder %v1152, 0
      %vm1158 = vcmp.ne.s16.totalorder %v1154, 0
      %vm1159 = vcmp.ne.s16.totalorder %v1153, 0
      %v1160 = vsel %vm1155, %v628, 0
      %v1161 = vsel %vm1156, %v588, 0
      %v1162 = vsel %vm1157, %v597, 0
      %v1163 = vsel %vm1158, %v606, 0
      %v1164 = vsel %vm1159, %v629, 0
      %s1165 = scalar_lea.vmem %s5, 128
      %v1166 = vld [vmem:[%s1165] sm:$0xf]
      %v1167 = vld [vmem:[%s1165 + $0x4] sm:$0xf]
      %v1168 = vld [vmem:[%s1165 + $0x8] sm:$0xf]
      %v1169 = vld [vmem:[%s1165 + $0xc] sm:$0xf]
      %v1170 = vld [vmem:[%s1165 + $0x10] sm:$0xf]
      %v1171 = vld [vmem:[%s1165 + $0x14] sm:$0xf]
      %v1172 = vld [vmem:[%s1165 + $0x18] sm:$0xf]
      %v1173 = vld [vmem:[%s1165 + $0x1c] sm:$0xf]
      %v1174 = vld [vmem:[%s1165 + $0x20] sm:$0xf]
      %v1175 = vld [vmem:[%s1165 + $0x24] sm:$0xf]
      %v1176 = vld [vmem:[%s1165 + $0x28] sm:$0xf]
      %v1177 = vld [vmem:[%s1165 + $0x2c] sm:$0xf]
      %v1178 = vld [vmem:[%s1165 + $0x30] sm:$0xf]
      %v1179 = vld [vmem:[%s1165 + $0x34] sm:$0xf]
      %v1180 = vld [vmem:[%s1165 + $0x38] sm:$0xf]
      %v1181 = vld [vmem:[%s1165 + $0x3c] sm:$0xf]
      %vm1187 = vcmask 1046528
      %v1188 = vrot.slane %v1160, 1
      %v1189 = vrot.slane %v1161, 1
      %v1190 = vsel %vm1187, %v1188, %v1189
      %v1191 = vrot.slane %v1162, 1
      %v1192 = vsel %vm1187, %v1189, %v1191
      %v1193 = vrot.slane %v1163, 1
      %v1194 = vsel %vm1187, %v1191, %v1193
      %v1195 = vrot.slane %v1164, 1
      %v1196 = vsel %vm1187, %v1193, %v1195
      %v1217 = vunpack.c.l.b16 %v1166
      %v1218 = vunpack.c.l.b16 %v1167
      %v1219 = vunpack.c.l.b16 %v1168
      %v1220 = vunpack.c.l.b16 %v1169
      %v1221 = vunpack.c.l.b16 %v1170
      %v1222 = vunpack.c.l.b16 %v1171
      %v1223 = vunpack.c.l.b16 %v1172
      %v1224 = vunpack.c.l.b16 %v1173
      %v1225 = vunpack.c.l.b16 %v1174
      %v1226 = vunpack.c.l.b16 %v1175
      %v1227 = vunpack.c.l.b16 %v1176
      %v1228 = vunpack.c.l.b16 %v1177
      %v1229 = vunpack.c.l.b16 %v1178
      %v1230 = vunpack.c.l.b16 %v1179
      %v1231 = vunpack.c.l.b16 %v1180
      %v1232 = vunpack.c.l.b16 %v1181
      %v1233 = vpack.c.b16 %v1218, %v1217
      %v1234 = vpack.c.b16 %v1220, %v1219
      %v1235 = vpack.c.b16 %v1222, %v1221
      %v1236 = vpack.c.b16 %v1224, %v1223
      %v1237 = vpack.c.b16 %v1226, %v1225
      %v1238 = vpack.c.b16 %v1228, %v1227
      %v1239 = vpack.c.b16 %v1230, %v1229
      %v1240 = vpack.c.b16 %v1232, %v1231
      %1249 = vmatprep.subr.bf16.mxu0 0
      %1250 = vmatpush1.bf16.msra.mxu0 %v1233
      %1251 = vmatprep.subr.bf16.mxu0 0
      %1252 = vmatpush1.bf16.msra.mxu0 %v1234
      %1253 = vmatprep.subr.bf16.mxu0 0
      %1254 = vmatpush1.bf16.msra.mxu0 %v1235
      %1255 = vmatprep.subr.bf16.mxu0 0
      %1256 = vmatpush1.bf16.msra.mxu0 %v1236
      %1257 = vmatprep.subr.bf16.mxu0 0
      %1258 = vmatpush1.bf16.msra.mxu0 %v1237
      %1259 = vmatprep.subr.bf16.mxu0 0
      %1260 = vmatpush1.bf16.msra.mxu0 %v1238
      %1261 = vmatprep.subr.bf16.mxu0 0
      %1262 = vmatpush1.bf16.msra.mxu0 %v1239
      %1263 = vmatprep.subr.bf16.mxu0 0
      %1264 = vmatpush1.bf16.msra.mxu0 %v1240
      %1265 = vmatprep.subr.bf16.mxu0 0
      %1266 = vmatpush1.bf16.msra.mxu0 0
      %1267 = vmatprep.subr.bf16.mxu0 0
      %1268 = vmatpush1.bf16.msra.mxu0 0
      %1269 = vmatprep.subr.bf16.mxu0 0
      %1270 = vmatpush1.bf16.msra.mxu0 0
      %1271 = vmatprep.subr.bf16.mxu0 0
      %1272 = vmatpush1.bf16.msra.mxu0 0
      %1273 = vmatprep.subr.bf16.mxu0 0
      %1274 = vmatpush1.bf16.msra.mxu0 0
      %1275 = vmatprep.subr.bf16.mxu0 0
      %1276 = vmatpush1.bf16.msra.mxu0 0
      %1277 = vmatprep.subr.bf16.mxu0 0
      %1278 = vmatpush1.bf16.msra.mxu0 0
      %1279 = vmatprep.subr.bf16.mxu0 0
      %1280 = vmatpush1.bf16.msra.mxu0 0
      %1281 = vmatprep.mubr.bf16.mxu0 0
      %1282 = vmatmul.mubr.bf16.gmra.mrb[0].mxu0 %v1190
      %v1283 = vpop.f32.mrb[0].mxu0
      %v1284 = vadd.f32 0.0, %v1283
      %v1285 = vpop.f32.mrb[0].mxu0
      %v1286 = vpop.f32.mrb[0].mxu0
      %v1287 = vadd.f32 0.0, %v1286
      %v1288 = vpop.f32.mrb[0].mxu0
      %1289 = vmatprep.mubr.bf16.mxu0 0
      %1290 = vmatmul.mubr.bf16.gmra.mrb[0].mxu0 %v1192
      %v1291 = vpop.f32.mrb[0].mxu0
      %v1292 = vadd.f32 0.0, %v1291
      %v1293 = vpop.f32.mrb[0].mxu0
      %v1294 = vpop.f32.mrb[0].mxu0
      %v1295 = vadd.f32 0.0, %v1294
      %v1296 = vpop.f32.mrb[0].mxu0
      %1297 = vmatprep.mubr.bf16.mxu0 0
      %1298 = vmatmul.mubr.bf16.gmra.mrb[0].mxu0 %v1194
      %v1299 = vpop.f32.mrb[0].mxu0
      %v1300 = vadd.f32 0.0, %v1299
      %v1301 = vpop.f32.mrb[0].mxu0
      %v1302 = vpop.f32.mrb[0].mxu0
      %v1303 = vadd.f32 0.0, %v1302
      %v1304 = vpop.f32.mrb[0].mxu0
      %1305 = vmatprep.mubr.bf16.mxu0 0
      %1306 = vmatmul.mubr.bf16.gmra.mrb[0].mxu0 %v1196
      %v1307 = vpop.f32.mrb[0].mxu0
      %v1308 = vadd.f32 0.0, %v1307
      %v1309 = vpop.f32.mrb[0].mxu0
      %v1310 = vpop.f32.mrb[0].mxu0
      %v1311 = vadd.f32 0.0, %v1310
      %v1312 = vpop.f32.mrb[0].mxu0
      %1313 = vdwg.mxu0
      %v1314 = vadd.f32 %v1074, %v1284
      %v1315 = vadd.f32 %v1077, %v1287
      %v1316 = vadd.f32 %v1082, %v1292
      %v1317 = vadd.f32 %v1085, %v1295
      %v1318 = vadd.f32 %v1090, %v1300
      %v1319 = vadd.f32 %v1093, %v1303
      %v1320 = vadd.f32 %v1098, %v1308
      %v1321 = vadd.f32 %v1101, %v1311
      %v1322 = vpack.c.b16 %v784, %v784
      %v1323 = vpack.c.b16 %v786, %v785
      %v1324 = vpack.c.b16 %v788, %v787
      %v1325 = vpack.c.b16 %v790, %v789
      %v1326 = vpack.c.b16 %v791, %v791
      %vm1327 = vcmp.ne.s16.totalorder %v1322, 0
      %vm1328 = vcmp.ne.s16.totalorder %v1323, 0
      %vm1329 = vcmp.ne.s16.totalorder %v1324, 0
      %vm1330 = vcmp.ne.s16.totalorder %v1325, 0
      %vm1331 = vcmp.ne.s16.totalorder %v1326, 0
      %v1332 = vsel %vm1327, %v628, 0
      %v1333 = vsel %vm1328, %v588, 0
      %v1334 = vsel %vm1329, %v597, 0
      %v1335 = vsel %vm1330, %v606, 0
      %v1336 = vsel %vm1331, %v629, 0
      %s1337 = scalar_lea.vmem %s5, 192
      %v1338 = vld [vmem:[%s1337] sm:$0xf]
      %v1339 = vld [vmem:[%s1337 + $0x4] sm:$0xf]
      %v1340 = vld [vmem:[%s1337 + $0x8] sm:$0xf]
      %v1341 = vld [vmem:[%s1337 + $0xc] sm:$0xf]
      %v1342 = vld [vmem:[%s1337 + $0x10] sm:$0xf]
      %v1343 = vld [vmem:[%s1337 + $0x14] sm:$0xf]
      %v1344 = vld [vmem:[%s1337 + $0x18] sm:$0xf]
      %v1345 = vld [vmem:[%s1337 + $0x1c] sm:$0xf]
      %v1346 = vld [vmem:[%s1337 + $0x20] sm:$0xf]
      %v1347 = vld [vmem:[%s1337 + $0x24] sm:$0xf]
      %v1348 = vld [vmem:[%s1337 + $0x28] sm:$0xf]
      %v1349 = vld [vmem:[%s1337 + $0x2c] sm:$0xf]
      %v1350 = vld [vmem:[%s1337 + $0x30] sm:$0xf]
      %v1351 = vld [vmem:[%s1337 + $0x34] sm:$0xf]
      %v1352 = vld [vmem:[%s1337 + $0x38] sm:$0xf]
      %v1353 = vld [vmem:[%s1337 + $0x3c] sm:$0xf]
      %vm1359 = vcmask 1043456
      %v1360 = vrot.slane %v1332, 4
      %v1361 = vrot.slane %v1333, 4
      %v1362 = vsel %vm1359, %v1360, %v1361
      %v1363 = vrot.slane %v1334, 4
      %v1364 = vsel %vm1359, %v1361, %v1363
      %v1365 = vrot.slane %v1335, 4
      %v1366 = vsel %vm1359, %v1363, %v1365
      %v1367 = vrot.slane %v1336, 4
      %v1368 = vsel %vm1359, %v1365, %v1367
      %v1389 = vunpack.c.l.b16 %v1338
      %v1390 = vunpack.c.l.b16 %v1339
      %v1391 = vunpack.c.l.b16 %v1340
      %v1392 = vunpack.c.l.b16 %v1341
      %v1393 = vunpack.c.l.b16 %v1342
      %v1394 = vunpack.c.l.b16 %v1343
      %v1395 = vunpack.c.l.b16 %v1344
      %v1396 = vunpack.c.l.b16 %v1345
      %v1397 = vunpack.c.l.b16 %v1346
      %v1398 = vunpack.c.l.b16 %v1347
      %v1399 = vunpack.c.l.b16 %v1348
      %v1400 = vunpack.c.l.b16 %v1349
      %v1401 = vunpack.c.l.b16 %v1350
      %v1402 = vunpack.c.l.b16 %v1351
      %v1403 = vunpack.c.l.b16 %v1352
      %v1404 = vunpack.c.l.b16 %v1353
      %v1405 = vpack.c.b16 %v1390, %v1389
      %v1406 = vpack.c.b16 %v1392, %v1391
      %v1407 = vpack.c.b16 %v1394, %v1393
      %v1408 = vpack.c.b16 %v1396, %v1395
      %v1409 = vpack.c.b16 %v1398, %v1397
      %v1410 = vpack.c.b16 %v1400, %v1399
      %v1411 = vpack.c.b16 %v1402, %v1401
      %v1412 = vpack.c.b16 %v1404, %v1403
      %1421 = vmatprep.subr.bf16.mxu0 0
      %1422 = vmatpush1.bf16.msra.mxu0 %v1405
      %1423 = vmatprep.subr.bf16.mxu0 0
      %1424 = vmatpush1.bf16.msra.mxu0 %v1406
      %1425 = vmatprep.subr.bf16.mxu0 0
      %1426 = vmatpush1.bf16.msra.mxu0 %v1407
      %1427 = vmatprep.subr.bf16.mxu0 0
      %1428 = vmatpush1.bf16.msra.mxu0 %v1408
      %1429 = vmatprep.subr.bf16.mxu0 0
      %1430 = vmatpush1.bf16.msra.mxu0 %v1409
      %1431 = vmatprep.subr.bf16.mxu0 0
      %1432 = vmatpush1.bf16.msra.mxu0 %v1410
      %1433 = vmatprep.subr.bf16.mxu0 0
      %1434 = vmatpush1.bf16.msra.mxu0 %v1411
      %1435 = vmatprep.subr.bf16.mxu0 0
      %1436 = vmatpush1.bf16.msra.mxu0 %v1412
      %1437 = vmatprep.subr.bf16.mxu0 0
      %1438 = vmatpush1.bf16.msra.mxu0 0
      %1439 = vmatprep.subr.bf16.mxu0 0
      %1440 = vmatpush1.bf16.msra.mxu0 0
      %1441 = vmatprep.subr.bf16.mxu0 0
      %1442 = vmatpush1.bf16.msra.mxu0 0
      %1443 = vmatprep.subr.bf16.mxu0 0
      %1444 = vmatpush1.bf16.msra.mxu0 0
      %1445 = vmatprep.subr.bf16.mxu0 0
      %1446 = vmatpush1.bf16.msra.mxu0 0
      %1447 = vmatprep.subr.bf16.mxu0 0
      %1448 = vmatpush1.bf16.msra.mxu0 0
      %1449 = vmatprep.subr.bf16.mxu0 0
      %1450 = vmatpush1.bf16.msra.mxu0 0
      %1451 = vmatprep.subr.bf16.mxu0 0
      %1452 = vmatpush1.bf16.msra.mxu0 0
      %1453 = vmatprep.mubr.bf16.mxu0 0
      %1454 = vmatmul.mubr.bf16.gmra.mrb[0].mxu0 %v1362
      %v1455 = vpop.f32.mrb[0].mxu0
      %v1456 = vadd.f32 0.0, %v1455
      %v1457 = vpop.f32.mrb[0].mxu0
      %v1458 = vpop.f32.mrb[0].mxu0
      %v1459 = vadd.f32 0.0, %v1458
      %v1460 = vpop.f32.mrb[0].mxu0
      %1461 = vmatprep.mubr.bf16.mxu0 0
      %1462 = vmatmul.mubr.bf16.gmra.mrb[0].mxu0 %v1364
      %v1463 = vpop.f32.mrb[0].mxu0
      %v1464 = vadd.f32 0.0, %v1463
      %v1465 = vpop.f32.mrb[0].mxu0
      %v1466 = vpop.f32.mrb[0].mxu0
      %v1467 = vadd.f32 0.0, %v1466
      %v1468 = vpop.f32.mrb[0].mxu0
      %1469 = vmatprep.mubr.bf16.mxu0 0
      %1470 = vmatmul.mubr.bf16.gmra.mrb[0].mxu0 %v1366
      %v1471 = vpop.f32.mrb[0].mxu0
      %v1472 = vadd.f32 0.0, %v1471
      %v1473 = vpop.f32.mrb[0].mxu0
      %v1474 = vpop.f32.mrb[0].mxu0
      %v1475 = vadd.f32 0.0, %v1474
      %v1476 = vpop.f32.mrb[0].mxu0
      %1477 = vmatprep.mubr.bf16.mxu0 0
      %1478 = vmatmul.mubr.bf16.gmra.mrb[0].mxu0 %v1368
      %v1479 = vpop.f32.mrb[0].mxu0
      %v1480 = vadd.f32 0.0, %v1479
      %v1481 = vpop.f32.mrb[0].mxu0
      %v1482 = vpop.f32.mrb[0].mxu0
      %v1483 = vadd.f32 0.0, %v1482
      %v1484 = vpop.f32.mrb[0].mxu0
      %1485 = vdwg.mxu0
      %v1486 = vadd.f32 %v1314, %v1456
      %v1487 = vadd.f32 %v1315, %v1459
      %v1488 = vadd.f32 %v1316, %v1464
      %v1489 = vadd.f32 %v1317, %v1467
      %v1490 = vadd.f32 %v1318, %v1472
      %v1491 = vadd.f32 %v1319, %v1475
      %v1492 = vadd.f32 %v1320, %v1480
      %v1493 = vadd.f32 %v1321, %v1483
      %s1494 = scalar_lea.vmem %s5, 256
      %v1495 = vld [vmem:[%s1494] sm:$0xf]
      %v1496 = vld [vmem:[%s1494 + $0x4] sm:$0xf]
      %v1497 = vld [vmem:[%s1494 + $0x8] sm:$0xf]
      %v1498 = vld [vmem:[%s1494 + $0xc] sm:$0xf]
      %v1499 = vld [vmem:[%s1494 + $0x10] sm:$0xf]
      %v1500 = vld [vmem:[%s1494 + $0x14] sm:$0xf]
      %v1501 = vld [vmem:[%s1494 + $0x18] sm:$0xf]
      %v1502 = vld [vmem:[%s1494 + $0x1c] sm:$0xf]
      %v1503 = vld [vmem:[%s1494 + $0x20] sm:$0xf]
      %v1504 = vld [vmem:[%s1494 + $0x24] sm:$0xf]
      %v1505 = vld [vmem:[%s1494 + $0x28] sm:$0xf]
      %v1506 = vld [vmem:[%s1494 + $0x2c] sm:$0xf]
      %v1507 = vld [vmem:[%s1494 + $0x30] sm:$0xf]
      %v1508 = vld [vmem:[%s1494 + $0x34] sm:$0xf]
      %v1509 = vld [vmem:[%s1494 + $0x38] sm:$0xf]
      %v1510 = vld [vmem:[%s1494 + $0x3c] sm:$0xf]
      %vm1511 = vsmask.f32 3328
      %v1512 = vrot.slane %v839, 4
      %v1513 = vrot.slane %v841, 5
      %v1514 = vor.u32 %v1512, %v1513
      %v1515 = vrot.slane %v850, 4
      %v1516 = vrot.slane %v846, 5
      %v1517 = vor.u32 %v1515, %v1516
      %v1518 = vsel %vm1511, %v1514, %v1517
      %v1519 = vrot.slane %v858, 4
      %v1520 = vrot.slane %v854, 5
      %v1521 = vor.u32 %v1519, %v1520
      %v1522 = vsel %vm1511, %v1517, %v1521
      %v1523 = vrot.slane %v866, 4
      %v1524 = vrot.slane %v862, 5
      %v1525 = vor.u32 %v1523, %v1524
      %v1526 = vsel %vm1511, %v1521, %v1525
      %v1527 = vshrl.u32 %v629, 16
      %v1529 = vrot.slane %v1527, 4
      %v1530 = vrot.slane %v870, 5
      %v1531 = vor.u32 %v1529, %v1530
      %v1532 = vsel %vm1511, %v1525, %v1531
      %v1553 = vunpack.c.l.b16 %v1495
      %v1554 = vunpack.c.l.b16 %v1496
      %v1555 = vunpack.c.l.b16 %v1497
      %v1556 = vunpack.c.l.b16 %v1498
      %v1557 = vunpack.c.l.b16 %v1499
      %v1558 = vunpack.c.l.b16 %v1500
      %v1559 = vunpack.c.l.b16 %v1501
      %v1560 = vunpack.c.l.b16 %v1502
      %v1561 = vunpack.c.l.b16 %v1503
      %v1562 = vunpack.c.l.b16 %v1504
      %v1563 = vunpack.c.l.b16 %v1505
      %v1564 = vunpack.c.l.b16 %v1506
      %v1565 = vunpack.c.l.b16 %v1507
      %v1566 = vunpack.c.l.b16 %v1508
      %v1567 = vunpack.c.l.b16 %v1509
      %v1568 = vunpack.c.l.b16 %v1510
      %v1569 = vpack.c.b16 %v1554, %v1553
      %v1570 = vpack.c.b16 %v1556, %v1555
      %v1571 = vpack.c.b16 %v1558, %v1557
      %v1572 = vpack.c.b16 %v1560, %v1559
      %v1573 = vpack.c.b16 %v1562, %v1561
      %v1574 = vpack.c.b16 %v1564, %v1563
      %v1575 = vpack.c.b16 %v1566, %v1565
      %v1576 = vpack.c.b16 %v1568, %v1567
      %1585 = vmatprep.subr.bf16.mxu0 0
      %1586 = vmatpush1.bf16.msra.mxu0 %v1569
      %1587 = vmatprep.subr.bf16.mxu0 0
      %1588 = vmatpush1.bf16.msra.mxu0 %v1570
      %1589 = vmatprep.subr.bf16.mxu0 0
      %1590 = vmatpush1.bf16.msra.mxu0 %v1571
      %1591 = vmatprep.subr.bf16.mxu0 0
      %1592 = vmatpush1.bf16.msra.mxu0 %v1572
      %1593 = vmatprep.subr.bf16.mxu0 0
      %1594 = vmatpush1.bf16.msra.mxu0 %v1573
      %1595 = vmatprep.subr.bf16.mxu0 0
      %1596 = vmatpush1.bf16.msra.mxu0 %v1574
      %1597 = vmatprep.subr.bf16.mxu0 0
      %1598 = vmatpush1.bf16.msra.mxu0 %v1575
      %1599 = vmatprep.subr.bf16.mxu0 0
      %1600 = vmatpush1.bf16.msra.mxu0 %v1576
      %1601 = vmatprep.subr.bf16.mxu0 0
      %1602 = vmatpush1.bf16.msra.mxu0 0
      %1603 = vmatprep.subr.bf16.mxu0 0
      %1604 = vmatpush1.bf16.msra.mxu0 0
      %1605 = vmatprep.subr.bf16.mxu0 0
      %1606 = vmatpush1.bf16.msra.mxu0 0
      %1607 = vmatprep.subr.bf16.mxu0 0
      %1608 = vmatpush1.bf16.msra.mxu0 0
      %1609 = vmatprep.subr.bf16.mxu0 0
      %1610 = vmatpush1.bf16.msra.mxu0 0
      %1611 = vmatprep.subr.bf16.mxu0 0
      %1612 = vmatpush1.bf16.msra.mxu0 0
      %1613 = vmatprep.subr.bf16.mxu0 0
      %1614 = vmatpush1.bf16.msra.mxu0 0
      %1615 = vmatprep.subr.bf16.mxu0 0
      %1616 = vmatpush1.bf16.msra.mxu0 0
      %1617 = vmatprep.mubr.bf16.mxu0 0
      %1618 = vmatmul.mubr.bf16.gmra.mrb[0].mxu0 %v1518
      %v1619 = vpop.f32.mrb[0].mxu0
      %v1620 = vadd.f32 0.0, %v1619
      %v1621 = vpop.f32.mrb[0].mxu0
      %v1622 = vpop.f32.mrb[0].mxu0
      %v1623 = vadd.f32 0.0, %v1622
      %v1624 = vpop.f32.mrb[0].mxu0
      %1625 = vmatprep.mubr.bf16.mxu0 0
      %1626 = vmatmul.mubr.bf16.gmra.mrb[0].mxu0 %v1522
      %v1627 = vpop.f32.mrb[0].mxu0
      %v1628 = vadd.f32 0.0, %v1627
      %v1629 = vpop.f32.mrb[0].mxu0
      %v1630 = vpop.f32.mrb[0].mxu0
      %v1631 = vadd.f32 0.0, %v1630
      %v1632 = vpop.f32.mrb[0].mxu0
      %1633 = vmatprep.mubr.bf16.mxu0 0
      %1634 = vmatmul.mubr.bf16.gmra.mrb[0].mxu0 %v1526
      %v1635 = vpop.f32.mrb[0].mxu0
      %v1636 = vadd.f32 0.0, %v1635
      %v1637 = vpop.f32.mrb[0].mxu0
      %v1638 = vpop.f32.mrb[0].mxu0
      %v1639 = vadd.f32 0.0, %v1638
      %v1640 = vpop.f32.mrb[0].mxu0
      %1641 = vmatprep.mubr.bf16.mxu0 0
      %1642 = vmatmul.mubr.bf16.gmra.mrb[0].mxu0 %v1532
      %v1643 = vpop.f32.mrb[0].mxu0
      %v1644 = vadd.f32 0.0, %v1643
      %v1645 = vpop.f32.mrb[0].mxu0
      %v1646 = vpop.f32.mrb[0].mxu0
      %v1647 = vadd.f32 0.0, %v1646
      %v1648 = vpop.f32.mrb[0].mxu0
      %1649 = vdwg.mxu0
      %v1650 = vadd.f32 %v1486, %v1620
      %v1651 = vadd.f32 %v1487, %v1623
      %v1652 = vadd.f32 %v1488, %v1628
      %v1653 = vadd.f32 %v1489, %v1631
      %v1654 = vadd.f32 %v1490, %v1636
      %v1655 = vadd.f32 %v1491, %v1639
      %v1656 = vadd.f32 %v1492, %v1644
      %v1657 = vadd.f32 %v1493, %v1647
      %v1658 = vrot.slane %v1144, 3
      %v1659 = vrot.slane %v1145, 3
      %v1660 = vsel %vm626, %v1658, %v1659
      %v1661 = vrot.slane %v1146, 3
      %v1662 = vsel %vm626, %v1659, %v1661
      %v1663 = vrot.slane %v1147, 3
      %v1664 = vsel %vm626, %v1661, %v1663
      %vm1665 = vcmp.ne.s16.totalorder %v1658, 0
      %vm1666 = vcmp.ne.s16.totalorder %v1660, 0
      %vm1667 = vcmp.ne.s16.totalorder %v1662, 0
      %vm1668 = vcmp.ne.s16.totalorder %v1664, 0
      %vm1669 = vcmp.ne.s16.totalorder %v1663, 0
      %v1670 = vsel %vm1665, %v628, 0
      %v1671 = vsel %vm1666, %v588, 0
      %v1672 = vsel %vm1667, %v597, 0
      %v1673 = vsel %vm1668, %v606, 0
      %v1674 = vsel %vm1669, %v629, 0
      %s1675 = scalar_lea.vmem %s5, 320
      %v1676 = vld [vmem:[%s1675] sm:$0xf]
      %v1677 = vld [vmem:[%s1675 + $0x4] sm:$0xf]
      %v1678 = vld [vmem:[%s1675 + $0x8] sm:$0xf]
      %v1679 = vld [vmem:[%s1675 + $0xc] sm:$0xf]
      %v1680 = vld [vmem:[%s1675 + $0x10] sm:$0xf]
      %v1681 = vld [vmem:[%s1675 + $0x14] sm:$0xf]
      %v1682 = vld [vmem:[%s1675 + $0x18] sm:$0xf]
      %v1683 = vld [vmem:[%s1675 + $0x1c] sm:$0xf]
      %v1684 = vld [vmem:[%s1675 + $0x20] sm:$0xf]
      %v1685 = vld [vmem:[%s1675 + $0x24] sm:$0xf]
      %v1686 = vld [vmem:[%s1675 + $0x28] sm:$0xf]
      %v1687 = vld [vmem:[%s1675 + $0x2c] sm:$0xf]
      %v1688 = vld [vmem:[%s1675 + $0x30] sm:$0xf]
      %v1689 = vld [vmem:[%s1675 + $0x34] sm:$0xf]
      %v1690 = vld [vmem:[%s1675 + $0x38] sm:$0xf]
      %v1691 = vld [vmem:[%s1675 + $0x3c] sm:$0xf]
      %vm1697 = vcmask 1042432
      %v1698 = vrot.slane %v1670, 5
      %v1699 = vrot.slane %v1671, 5
      %v1700 = vsel %vm1697, %v1698, %v1699
      %v1701 = vrot.slane %v1672, 5
      %v1702 = vsel %vm1697, %v1699, %v1701
      %v1703 = vrot.slane %v1673, 5
      %v1704 = vsel %vm1697, %v1701, %v1703
      %v1705 = vrot.slane %v1674, 5
      %v1706 = vsel %vm1697, %v1703, %v1705
      %v1727 = vunpack.c.l.b16 %v1676
      %v1728 = vunpack.c.l.b16 %v1677
      %v1729 = vunpack.c.l.b16 %v1678
      %v1730 = vunpack.c.l.b16 %v1679
      %v1731 = vunpack.c.l.b16 %v1680
      %v1732 = vunpack.c.l.b16 %v1681
      %v1733 = vunpack.c.l.b16 %v1682
      %v1734 = vunpack.c.l.b16 %v1683
      %v1735 = vunpack.c.l.b16 %v1684
      %v1736 = vunpack.c.l.b16 %v1685
      %v1737 = vunpack.c.l.b16 %v1686
      %v1738 = vunpack.c.l.b16 %v1687
      %v1739 = vunpack.c.l.b16 %v1688
      %v1740 = vunpack.c.l.b16 %v1689
      %v1741 = vunpack.c.l.b16 %v1690
      %v1742 = vunpack.c.l.b16 %v1691
      %v1743 = vpack.c.b16 %v1728, %v1727
      %v1744 = vpack.c.b16 %v1730, %v1729
      %v1745 = vpack.c.b16 %v1732, %v1731
      %v1746 = vpack.c.b16 %v1734, %v1733
      %v1747 = vpack.c.b16 %v1736, %v1735
      %v1748 = vpack.c.b16 %v1738, %v1737
      %v1749 = vpack.c.b16 %v1740, %v1739
      %v1750 = vpack.c.b16 %v1742, %v1741
      %1759 = vmatprep.subr.bf16.mxu0 0
      %1760 = vmatpush1.bf16.msra.mxu0 %v1743
      %1761 = vmatprep.subr.bf16.mxu0 0
      %1762 = vmatpush1.bf16.msra.mxu0 %v1744
      %1763 = vmatprep.subr.bf16.mxu0 0
      %1764 = vmatpush1.bf16.msra.mxu0 %v1745
      %1765 = vmatprep.subr.bf16.mxu0 0
      %1766 = vmatpush1.bf16.msra.mxu0 %v1746
      %1767 = vmatprep.subr.bf16.mxu0 0
      %1768 = vmatpush1.bf16.msra.mxu0 %v1747
      %1769 = vmatprep.subr.bf16.mxu0 0
      %1770 = vmatpush1.bf16.msra.mxu0 %v1748
      %1771 = vmatprep.subr.bf16.mxu0 0
      %1772 = vmatpush1.bf16.msra.mxu0 %v1749
      %1773 = vmatprep.subr.bf16.mxu0 0
      %1774 = vmatpush1.bf16.msra.mxu0 %v1750
      %1775 = vmatprep.subr.bf16.mxu0 0
      %1776 = vmatpush1.bf16.msra.mxu0 0
      %1777 = vmatprep.subr.bf16.mxu0 0
      %1778 = vmatpush1.bf16.msra.mxu0 0
      %1779 = vmatprep.subr.bf16.mxu0 0
      %1780 = vmatpush1.bf16.msra.mxu0 0
      %1781 = vmatprep.subr.bf16.mxu0 0
      %1782 = vmatpush1.bf16.msra.mxu0 0
      %1783 = vmatprep.subr.bf16.mxu0 0
      %1784 = vmatpush1.bf16.msra.mxu0 0
      %1785 = vmatprep.subr.bf16.mxu0 0
      %1786 = vmatpush1.bf16.msra.mxu0 0
      %1787 = vmatprep.subr.bf16.mxu0 0
      %1788 = vmatpush1.bf16.msra.mxu0 0
      %1789 = vmatprep.subr.bf16.mxu0 0
      %1790 = vmatpush1.bf16.msra.mxu0 0
      %1791 = vmatprep.mubr.bf16.mxu0 0
      %1792 = vmatmul.mubr.bf16.gmra.mrb[0].mxu0 %v1700
      %v1793 = vpop.f32.mrb[0].mxu0
      %v1794 = vadd.f32 0.0, %v1793
      %v1795 = vpop.f32.mrb[0].mxu0
      %v1796 = vpop.f32.mrb[0].mxu0
      %v1797 = vadd.f32 0.0, %v1796
      %v1798 = vpop.f32.mrb[0].mxu0
      %1799 = vmatprep.mubr.bf16.mxu0 0
      %1800 = vmatmul.mubr.bf16.gmra.mrb[0].mxu0 %v1702
      %v1801 = vpop.f32.mrb[0].mxu0
      %v1802 = vadd.f32 0.0, %v1801
      %v1803 = vpop.f32.mrb[0].mxu0
      %v1804 = vpop.f32.mrb[0].mxu0
      %v1805 = vadd.f32 0.0, %v1804
      %v1806 = vpop.f32.mrb[0].mxu0
      %1807 = vmatprep.mubr.bf16.mxu0 0
      %1808 = vmatmul.mubr.bf16.gmra.mrb[0].mxu0 %v1704
      %v1809 = vpop.f32.mrb[0].mxu0
      %v1810 = vadd.f32 0.0, %v1809
      %v1811 = vpop.f32.mrb[0].mxu0
      %v1812 = vpop.f32.mrb[0].mxu0
      %v1813 = vadd.f32 0.0, %v1812
      %v1814 = vpop.f32.mrb[0].mxu0
      %1815 = vmatprep.mubr.bf16.mxu0 0
      %1816 = vmatmul.mubr.bf16.gmra.mrb[0].mxu0 %v1706
      %v1817 = vpop.f32.mrb[0].mxu0
      %v1818 = vadd.f32 0.0, %v1817
      %v1819 = vpop.f32.mrb[0].mxu0
      %v1820 = vpop.f32.mrb[0].mxu0
      %v1821 = vadd.f32 0.0, %v1820
      %v1822 = vpop.f32.mrb[0].mxu0
      %1823 = vdwg.mxu0
      %v1824 = vadd.f32 %v1650, %v1794
      %v1825 = vadd.f32 %v1651, %v1797
      %v1826 = vadd.f32 %v1652, %v1802
      %v1827 = vadd.f32 %v1653, %v1805
      %v1828 = vadd.f32 %v1654, %v1810
      %v1829 = vadd.f32 %v1655, %v1813
      %v1830 = vadd.f32 %v1656, %v1818
      %v1831 = vadd.f32 %v1657, %v1821
      %v1832 = vsel %vm796, %v588, 0
      %v1833 = vsel %vm797, %v597, 0
      %v1834 = vsel %vm798, %v606, 0
      %v1835 = vsel %vm799, %v629, 0
      %s1836 = scalar_lea.vmem %s5, 384
      %v1837 = vld [vmem:[%s1836] sm:$0xf]
      %v1838 = vld [vmem:[%s1836 + $0x4] sm:$0xf]
      %v1839 = vld [vmem:[%s1836 + $0x8] sm:$0xf]
      %v1840 = vld [vmem:[%s1836 + $0xc] sm:$0xf]
      %v1841 = vld [vmem:[%s1836 + $0x10] sm:$0xf]
      %v1842 = vld [vmem:[%s1836 + $0x14] sm:$0xf]
      %v1843 = vld [vmem:[%s1836 + $0x18] sm:$0xf]
      %v1844 = vld [vmem:[%s1836 + $0x1c] sm:$0xf]
      %v1845 = vld [vmem:[%s1836 + $0x20] sm:$0xf]
      %v1846 = vld [vmem:[%s1836 + $0x24] sm:$0xf]
      %v1847 = vld [vmem:[%s1836 + $0x28] sm:$0xf]
      %v1848 = vld [vmem:[%s1836 + $0x2c] sm:$0xf]
      %v1849 = vld [vmem:[%s1836 + $0x30] sm:$0xf]
      %v1850 = vld [vmem:[%s1836 + $0x34] sm:$0xf]
      %v1851 = vld [vmem:[%s1836 + $0x38] sm:$0xf]
      %v1852 = vld [vmem:[%s1836 + $0x3c] sm:$0xf]
      %v1869 = vunpack.c.l.b16 %v1837
      %v1870 = vunpack.c.l.b16 %v1838
      %v1871 = vunpack.c.l.b16 %v1839
      %v1872 = vunpack.c.l.b16 %v1840
      %v1873 = vunpack.c.l.b16 %v1841
      %v1874 = vunpack.c.l.b16 %v1842
      %v1875 = vunpack.c.l.b16 %v1843
      %v1876 = vunpack.c.l.b16 %v1844
      %v1877 = vunpack.c.l.b16 %v1845
      %v1878 = vunpack.c.l.b16 %v1846
      %v1879 = vunpack.c.l.b16 %v1847
      %v1880 = vunpack.c.l.b16 %v1848
      %v1881 = vunpack.c.l.b16 %v1849
      %v1882 = vunpack.c.l.b16 %v1850
      %v1883 = vunpack.c.l.b16 %v1851
      %v1884 = vunpack.c.l.b16 %v1852
      %v1885 = vpack.c.b16 %v1870, %v1869
      %v1886 = vpack.c.b16 %v1872, %v1871
      %v1887 = vpack.c.b16 %v1874, %v1873
      %v1888 = vpack.c.b16 %v1876, %v1875
      %v1889 = vpack.c.b16 %v1878, %v1877
      %v1890 = vpack.c.b16 %v1880, %v1879
      %v1891 = vpack.c.b16 %v1882, %v1881
      %v1892 = vpack.c.b16 %v1884, %v1883
      %1901 = vmatprep.subr.bf16.mxu0 0
      %1902 = vmatpush1.bf16.msra.mxu0 %v1885
      %1903 = vmatprep.subr.bf16.mxu0 0
      %1904 = vmatpush1.bf16.msra.mxu0 %v1886
      %1905 = vmatprep.subr.bf16.mxu0 0
      %1906 = vmatpush1.bf16.msra.mxu0 %v1887
      %1907 = vmatprep.subr.bf16.mxu0 0
      %1908 = vmatpush1.bf16.msra.mxu0 %v1888
      %1909 = vmatprep.subr.bf16.mxu0 0
      %1910 = vmatpush1.bf16.msra.mxu0 %v1889
      %1911 = vmatprep.subr.bf16.mxu0 0
      %1912 = vmatpush1.bf16.msra.mxu0 %v1890
      %1913 = vmatprep.subr.bf16.mxu0 0
      %1914 = vmatpush1.bf16.msra.mxu0 %v1891
      %1915 = vmatprep.subr.bf16.mxu0 0
      %1916 = vmatpush1.bf16.msra.mxu0 %v1892
      %1917 = vmatprep.subr.bf16.mxu0 0
      %1918 = vmatpush1.bf16.msra.mxu0 0
      %1919 = vmatprep.subr.bf16.mxu0 0
      %1920 = vmatpush1.bf16.msra.mxu0 0
      %1921 = vmatprep.subr.bf16.mxu0 0
      %1922 = vmatpush1.bf16.msra.mxu0 0
      %1923 = vmatprep.subr.bf16.mxu0 0
      %1924 = vmatpush1.bf16.msra.mxu0 0
      %1925 = vmatprep.subr.bf16.mxu0 0
      %1926 = vmatpush1.bf16.msra.mxu0 0
      %1927 = vmatprep.subr.bf16.mxu0 0
      %1928 = vmatpush1.bf16.msra.mxu0 0
      %1929 = vmatprep.subr.bf16.mxu0 0
      %1930 = vmatpush1.bf16.msra.mxu0 0
      %1931 = vmatprep.subr.bf16.mxu0 0
      %1932 = vmatpush1.bf16.msra.mxu0 0
      %1933 = vmatprep.mubr.bf16.mxu0 0
      %1934 = vmatmul.mubr.bf16.gmra.mrb[0].mxu0 %v1832
      %v1935 = vpop.f32.mrb[0].mxu0
      %v1936 = vadd.f32 0.0, %v1935
      %v1937 = vpop.f32.mrb[0].mxu0
      %v1938 = vpop.f32.mrb[0].mxu0
      %v1939 = vadd.f32 0.0, %v1938
      %v1940 = vpop.f32.mrb[0].mxu0
      %1941 = vmatprep.mubr.bf16.mxu0 0
      %1942 = vmatmul.mubr.bf16.gmra.mrb[0].mxu0 %v1833
      %v1943 = vpop.f32.mrb[0].mxu0
      %v1944 = vadd.f32 0.0, %v1943
      %v1945 = vpop.f32.mrb[0].mxu0
      %v1946 = vpop.f32.mrb[0].mxu0
      %v1947 = vadd.f32 0.0, %v1946
      %v1948 = vpop.f32.mrb[0].mxu0
      %1949 = vmatprep.mubr.bf16.mxu0 0
      %1950 = vmatmul.mubr.bf16.gmra.mrb[0].mxu0 %v1834
      %v1951 = vpop.f32.mrb[0].mxu0
      %v1952 = vadd.f32 0.0, %v1951
      %v1953 = vpop.f32.mrb[0].mxu0
      %v1954 = vpop.f32.mrb[0].mxu0
      %v1955 = vadd.f32 0.0, %v1954
      %v1956 = vpop.f32.mrb[0].mxu0
      %1957 = vmatprep.mubr.bf16.mxu0 0
      %1958 = vmatmul.mubr.bf16.gmra.mrb[0].mxu0 %v1835
      %v1959 = vpop.f32.mrb[0].mxu0
      %v1960 = vadd.f32 0.0, %v1959
      %v1961 = vpop.f32.mrb[0].mxu0
      %v1962 = vpop.f32.mrb[0].mxu0
      %v1963 = vadd.f32 0.0, %v1962
      %v1964 = vpop.f32.mrb[0].mxu0
      %1965 = vdwg.mxu0
      %v1966 = vadd.f32 %v1824, %v1936
      %v1967 = vadd.f32 %v1825, %v1939
      %v1968 = vadd.f32 %v1826, %v1944
      %v1969 = vadd.f32 %v1827, %v1947
      %v1970 = vadd.f32 %v1828, %v1952
      %v1971 = vadd.f32 %v1829, %v1955
      %v1972 = vadd.f32 %v1830, %v1960
      %v1973 = vadd.f32 %v1831, %v1963
      %s1974 = scalar_lea.vmem %s5, 448
      %v1975 = vld [vmem:[%s1974] sm:$0xf]
      %v1976 = vld [vmem:[%s1974 + $0x4] sm:$0xf]
      %v1977 = vld [vmem:[%s1974 + $0x8] sm:$0xf]
      %v1978 = vld [vmem:[%s1974 + $0xc] sm:$0xf]
      %v1979 = vld [vmem:[%s1974 + $0x10] sm:$0xf]
      %v1980 = vld [vmem:[%s1974 + $0x14] sm:$0xf]
      %v1981 = vld [vmem:[%s1974 + $0x18] sm:$0xf]
      %v1982 = vld [vmem:[%s1974 + $0x1c] sm:$0xf]
      %v1983 = vld [vmem:[%s1974 + $0x20] sm:$0xf]
      %v1984 = vld [vmem:[%s1974 + $0x24] sm:$0xf]
      %v1985 = vld [vmem:[%s1974 + $0x28] sm:$0xf]
      %v1986 = vld [vmem:[%s1974 + $0x2c] sm:$0xf]
      %v1987 = vld [vmem:[%s1974 + $0x30] sm:$0xf]
      %v1988 = vld [vmem:[%s1974 + $0x34] sm:$0xf]
      %v1989 = vld [vmem:[%s1974 + $0x38] sm:$0xf]
      %v1990 = vld [vmem:[%s1974 + $0x3c] sm:$0xf]
      %v1991 = vor.u32 %v1527, %v872
      %v1993 = vshll.u32 %v630, 16
      %v1995 = vrot.slane %v1993, 1
      %v1996 = vsel %vm837, %v1991, %v1995
      %v2014 = vunpack.c.l.b16 %v1975
      %v2015 = vunpack.c.l.b16 %v1976
      %v2016 = vunpack.c.l.b16 %v1977
      %v2017 = vunpack.c.l.b16 %v1978
      %v2018 = vunpack.c.l.b16 %v1979
      %v2019 = vunpack.c.l.b16 %v1980
      %v2020 = vunpack.c.l.b16 %v1981
      %v2021 = vunpack.c.l.b16 %v1982
      %v2022 = vunpack.c.l.b16 %v1983
      %v2023 = vunpack.c.l.b16 %v1984
      %v2024 = vunpack.c.l.b16 %v1985
      %v2025 = vunpack.c.l.b16 %v1986
      %v2026 = vunpack.c.l.b16 %v1987
      %v2027 = vunpack.c.l.b16 %v1988
      %v2028 = vunpack.c.l.b16 %v1989
      %v2029 = vunpack.c.l.b16 %v1990
      %v2030 = vpack.c.b16 %v2015, %v2014
      %v2031 = vpack.c.b16 %v2017, %v2016
      %v2032 = vpack.c.b16 %v2019, %v2018
      %v2033 = vpack.c.b16 %v2021, %v2020
      %v2034 = vpack.c.b16 %v2023, %v2022
      %v2035 = vpack.c.b16 %v2025, %v2024
      %v2036 = vpack.c.b16 %v2027, %v2026
      %v2037 = vpack.c.b16 %v2029, %v2028
      %2046 = vmatprep.subr.bf16.mxu0 0
      %2047 = vmatpush1.bf16.msra.mxu0 %v2030
      %2048 = vmatprep.subr.bf16.mxu0 0
      %2049 = vmatpush1.bf16.msra.mxu0 %v2031
      %2050 = vmatprep.subr.bf16.mxu0 0
      %2051 = vmatpush1.bf16.msra.mxu0 %v2032
      %2052 = vmatprep.subr.bf16.mxu0 0
      %2053 = vmatpush1.bf16.msra.mxu0 %v2033
      %2054 = vmatprep.subr.bf16.mxu0 0
      %2055 = vmatpush1.bf16.msra.mxu0 %v2034
      %2056 = vmatprep.subr.bf16.mxu0 0
      %2057 = vmatpush1.bf16.msra.mxu0 %v2035
      %2058 = vmatprep.subr.bf16.mxu0 0
      %2059 = vmatpush1.bf16.msra.mxu0 %v2036
      %2060 = vmatprep.subr.bf16.mxu0 0
      %2061 = vmatpush1.bf16.msra.mxu0 %v2037
      %2062 = vmatprep.subr.bf16.mxu0 0
      %2063 = vmatpush1.bf16.msra.mxu0 0
      %2064 = vmatprep.subr.bf16.mxu0 0
      %2065 = vmatpush1.bf16.msra.mxu0 0
      %2066 = vmatprep.subr.bf16.mxu0 0
      %2067 = vmatpush1.bf16.msra.mxu0 0
      %2068 = vmatprep.subr.bf16.mxu0 0
      %2069 = vmatpush1.bf16.msra.mxu0 0
      %2070 = vmatprep.subr.bf16.mxu0 0
      %2071 = vmatpush1.bf16.msra.mxu0 0
      %2072 = vmatprep.subr.bf16.mxu0 0
      %2073 = vmatpush1.bf16.msra.mxu0 0
      %2074 = vmatprep.subr.bf16.mxu0 0
      %2075 = vmatpush1.bf16.msra.mxu0 0
      %2076 = vmatprep.subr.bf16.mxu0 0
      %2077 = vmatpush1.bf16.msra.mxu0 0
      %2078 = vmatprep.mubr.bf16.mxu0 0
      %2079 = vmatmul.mubr.bf16.gmra.mrb[0].mxu0 %v857
      %v2080 = vpop.f32.mrb[0].mxu0
      %v2081 = vadd.f32 0.0, %v2080
      %v2082 = vpop.f32.mrb[0].mxu0
      %v2083 = vpop.f32.mrb[0].mxu0
      %v2084 = vadd.f32 0.0, %v2083
      %v2085 = vpop.f32.mrb[0].mxu0
      %2086 = vmatprep.mubr.bf16.mxu0 0
      %2087 = vmatmul.mubr.bf16.gmra.mrb[0].mxu0 %v865
      %v2088 = vpop.f32.mrb[0].mxu0
      %v2089 = vadd.f32 0.0, %v2088
      %v2090 = vpop.f32.mrb[0].mxu0
      %v2091 = vpop.f32.mrb[0].mxu0
      %v2092 = vadd.f32 0.0, %v2091
      %v2093 = vpop.f32.mrb[0].mxu0
      %2094 = vmatprep.mubr.bf16.mxu0 0
      %2095 = vmatmul.mubr.bf16.gmra.mrb[0].mxu0 %v873
      %v2096 = vpop.f32.mrb[0].mxu0
      %v2097 = vadd.f32 0.0, %v2096
      %v2098 = vpop.f32.mrb[0].mxu0
      %v2099 = vpop.f32.mrb[0].mxu0
      %v2100 = vadd.f32 0.0, %v2099
      %v2101 = vpop.f32.mrb[0].mxu0
      %2102 = vmatprep.mubr.bf16.mxu0 0
      %2103 = vmatmul.mubr.bf16.gmra.mrb[0].mxu0 %v1996
      %v2104 = vpop.f32.mrb[0].mxu0
      %v2105 = vadd.f32 0.0, %v2104
      %v2106 = vpop.f32.mrb[0].mxu0
      %v2107 = vpop.f32.mrb[0].mxu0
      %v2108 = vadd.f32 0.0, %v2107
      %v2109 = vpop.f32.mrb[0].mxu0
      %2110 = vdwg.mxu0
      %v2111 = vadd.f32 %v1966, %v2081
      %v2112 = vadd.f32 %v1967, %v2084
      %v2113 = vadd.f32 %v1968, %v2089
      %v2114 = vadd.f32 %v1969, %v2092
      %v2115 = vadd.f32 %v1970, %v2097
      %v2116 = vadd.f32 %v1971, %v2100
      %v2117 = vadd.f32 %v1972, %v2105
      %v2118 = vadd.f32 %v1973, %v2108
      %v2119 = vsel %vm1155, %v588, 0
      %v2120 = vsel %vm1156, %v597, 0
      %v2121 = vsel %vm1157, %v606, 0
      %v2122 = vsel %vm1158, %v629, 0
      %v2123 = vsel %vm1159, %v630, 0
      %s2124 = scalar_lea.vmem %s5, 512
      %v2125 = vld [vmem:[%s2124] sm:$0xf]
      %v2126 = vld [vmem:[%s2124 + $0x4] sm:$0xf]
      %v2127 = vld [vmem:[%s2124 + $0x8] sm:$0xf]
      %v2128 = vld [vmem:[%s2124 + $0xc] sm:$0xf]
      %v2129 = vld [vmem:[%s2124 + $0x10] sm:$0xf]
      %v2130 = vld [vmem:[%s2124 + $0x14] sm:$0xf]
      %v2131 = vld [vmem:[%s2124 + $0x18] sm:$0xf]
      %v2132 = vld [vmem:[%s2124 + $0x1c] sm:$0xf]
      %v2133 = vld [vmem:[%s2124 + $0x20] sm:$0xf]
      %v2134 = vld [vmem:[%s2124 + $0x24] sm:$0xf]
      %v2135 = vld [vmem:[%s2124 + $0x28] sm:$0xf]
      %v2136 = vld [vmem:[%s2124 + $0x2c] sm:$0xf]
      %v2137 = vld [vmem:[%s2124 + $0x30] sm:$0xf]
      %v2138 = vld [vmem:[%s2124 + $0x34] sm:$0xf]
      %v2139 = vld [vmem:[%s2124 + $0x38] sm:$0xf]
      %v2140 = vld [vmem:[%s2124 + $0x3c] sm:$0xf]
      %v2146 = vrot.slane %v2119, 1
      %v2147 = vrot.slane %v2120, 1
      %v2148 = vsel %vm1187, %v2146, %v2147
      %v2149 = vrot.slane %v2121, 1
      %v2150 = vsel %vm1187, %v2147, %v2149
      %v2151 = vrot.slane %v2122, 1
      %v2152 = vsel %vm1187, %v2149, %v2151
      %v2153 = vrot.slane %v2123, 1
      %v2154 = vsel %vm1187, %v2151, %v2153
      %v2175 = vunpack.c.l.b16 %v2125
      %v2176 = vunpack.c.l.b16 %v2126
      %v2177 = vunpack.c.l.b16 %v2127
      %v2178 = vunpack.c.l.b16 %v2128
      %v2179 = vunpack.c.l.b16 %v2129
      %v2180 = vunpack.c.l.b16 %v2130
      %v2181 = vunpack.c.l.b16 %v2131
      %v2182 = vunpack.c.l.b16 %v2132
      %v2183 = vunpack.c.l.b16 %v2133
      %v2184 = vunpack.c.l.b16 %v2134
      %v2185 = vunpack.c.l.b16 %v2135
      %v2186 = vunpack.c.l.b16 %v2136
      %v2187 = vunpack.c.l.b16 %v2137
      %v2188 = vunpack.c.l.b16 %v2138
      %v2189 = vunpack.c.l.b16 %v2139
      %v2190 = vunpack.c.l.b16 %v2140
      %v2191 = vpack.c.b16 %v2176, %v2175
      %v2192 = vpack.c.b16 %v2178, %v2177
      %v2193 = vpack.c.b16 %v2180, %v2179
      %v2194 = vpack.c.b16 %v2182, %v2181
      %v2195 = vpack.c.b16 %v2184, %v2183
      %v2196 = vpack.c.b16 %v2186, %v2185
      %v2197 = vpack.c.b16 %v2188, %v2187
      %v2198 = vpack.c.b16 %v2190, %v2189
      %2207 = vmatprep.subr.bf16.mxu0 0
      %2208 = vmatpush1.bf16.msra.mxu0 %v2191
      %2209 = vmatprep.subr.bf16.mxu0 0
      %2210 = vmatpush1.bf16.msra.mxu0 %v2192
      %2211 = vmatprep.subr.bf16.mxu0 0
      %2212 = vmatpush1.bf16.msra.mxu0 %v2193
      %2213 = vmatprep.subr.bf16.mxu0 0
      %2214 = vmatpush1.bf16.msra.mxu0 %v2194
      %2215 = vmatprep.subr.bf16.mxu0 0
      %2216 = vmatpush1.bf16.msra.mxu0 %v2195
      %2217 = vmatprep.subr.bf16.mxu0 0
      %2218 = vmatpush1.bf16.msra.mxu0 %v2196
      %2219 = vmatprep.subr.bf16.mxu0 0
      %2220 = vmatpush1.bf16.msra.mxu0 %v2197
      %2221 = vmatprep.subr.bf16.mxu0 0
      %2222 = vmatpush1.bf16.msra.mxu0 %v2198
      %2223 = vmatprep.subr.bf16.mxu0 0
      %2224 = vmatpush1.bf16.msra.mxu0 0
      %2225 = vmatprep.subr.bf16.mxu0 0
      %2226 = vmatpush1.bf16.msra.mxu0 0
      %2227 = vmatprep.subr.bf16.mxu0 0
      %2228 = vmatpush1.bf16.msra.mxu0 0
      %2229 = vmatprep.subr.bf16.mxu0 0
      %2230 = vmatpush1.bf16.msra.mxu0 0
      %2231 = vmatprep.subr.bf16.mxu0 0
      %2232 = vmatpush1.bf16.msra.mxu0 0
      %2233 = vmatprep.subr.bf16.mxu0 0
      %2234 = vmatpush1.bf16.msra.mxu0 0
      %2235 = vmatprep.subr.bf16.mxu0 0
      %2236 = vmatpush1.bf16.msra.mxu0 0
      %2237 = vmatprep.subr.bf16.mxu0 0
      %2238 = vmatpush1.bf16.msra.mxu0 0
      %2239 = vmatprep.mubr.bf16.mxu0 0
      %2240 = vmatmul.mubr.bf16.gmra.mrb[0].mxu0 %v2148
      %v2241 = vpop.f32.mrb[0].mxu0
      %v2242 = vadd.f32 0.0, %v2241
      %v2243 = vpop.f32.mrb[0].mxu0
      %v2244 = vpop.f32.mrb[0].mxu0
      %v2245 = vadd.f32 0.0, %v2244
      %v2246 = vpop.f32.mrb[0].mxu0
      %2247 = vmatprep.mubr.bf16.mxu0 0
      %2248 = vmatmul.mubr.bf16.gmra.mrb[0].mxu0 %v2150
      %v2249 = vpop.f32.mrb[0].mxu0
      %v2250 = vadd.f32 0.0, %v2249
      %v2251 = vpop.f32.mrb[0].mxu0
      %v2252 = vpop.f32.mrb[0].mxu0
      %v2253 = vadd.f32 0.0, %v2252
      %v2254 = vpop.f32.mrb[0].mxu0
      %2255 = vmatprep.mubr.bf16.mxu0 0
      %2256 = vmatmul.mubr.bf16.gmra.mrb[0].mxu0 %v2152
      %v2257 = vpop.f32.mrb[0].mxu0
      %v2258 = vadd.f32 0.0, %v2257
      %v2259 = vpop.f32.mrb[0].mxu0
      %v2260 = vpop.f32.mrb[0].mxu0
      %v2261 = vadd.f32 0.0, %v2260
      %v2262 = vpop.f32.mrb[0].mxu0
      %2263 = vmatprep.mubr.bf16.mxu0 0
      %2264 = vmatmul.mubr.bf16.gmra.mrb[0].mxu0 %v2154
      %v2265 = vpop.f32.mrb[0].mxu0
      %v2266 = vadd.f32 0.0, %v2265
      %v2267 = vpop.f32.mrb[0].mxu0
      %v2268 = vpop.f32.mrb[0].mxu0
      %v2269 = vadd.f32 0.0, %v2268
      %v2270 = vpop.f32.mrb[0].mxu0
      %2271 = vdwg.mxu0
      %v2272 = vadd.f32 %v2111, %v2242
      %v2273 = vadd.f32 %v2112, %v2245
      %v2274 = vadd.f32 %v2113, %v2250
      %v2275 = vadd.f32 %v2114, %v2253
      %v2276 = vadd.f32 %v2115, %v2258
      %v2277 = vadd.f32 %v2116, %v2261
      %v2278 = vadd.f32 %v2117, %v2266
      %v2279 = vadd.f32 %v2118, %v2269
      %v2280 = vpack.c.bf16 %v2273, %v2272
      %v2281 = vpack.c.bf16 %v2275, %v2274
      %v2282 = vpack.c.bf16 %v2277, %v2276
      %v2283 = vpack.c.bf16 %v2279, %v2278
      %v2288 = vunpack.c.l.b16 %v2280
      %v2289 = vunpack.c.h.b16 %v2280
      %v2290 = vunpack.c.l.b16 %v2281
      %v2291 = vunpack.c.h.b16 %v2281
      %v2292 = vunpack.c.l.b16 %v2282
      %v2293 = vunpack.c.h.b16 %v2282
      %v2294 = vunpack.c.l.b16 %v2283
      %v2295 = vunpack.c.h.b16 %v2283
      %v2296 = vpack.c.b16 %v2288, %v2288
      %v2297 = vpack.c.b16 %v2289, %v2289
      %v2298 = vpack.c.b16 %v2290, %v2290
      %v2299 = vpack.c.b16 %v2291, %v2291
      %v2300 = vpack.c.b16 %v2292, %v2292
      %v2301 = vpack.c.b16 %v2293, %v2293
      %v2302 = vpack.c.b16 %v2294, %v2294
      %v2303 = vpack.c.b16 %v2295, %v2295
      %2312 = vst [vmem:[%s413] sm:$0xf] %v2296
      %2313 = vst [vmem:[%s413 + $0x4] sm:$0xf] %v2297
      %2314 = vst [vmem:[%s413 + $0x8] sm:$0xf] %v2298
      %2315 = vst [vmem:[%s413 + $0xc] sm:$0xf] %v2299
      %2316 = vst [vmem:[%s413 + $0x10] sm:$0xf] %v2300
      %2317 = vst [vmem:[%s413 + $0x14] sm:$0xf] %v2301
      %2318 = vst [vmem:[%s413 + $0x18] sm:$0xf] %v2302
      %2319 = vst [vmem:[%s413 + $0x1c] sm:$0xf] %v2303
      %v2320 = vadd.f32 %v2272, %v2273
      %v2321 = vadd.f32 %v2320, %v2274
      %v2322 = vadd.f32 %v2321, %v2275
      %v2323 = vadd.f32 %v2322, %v2276
      %v2324 = vadd.f32 %v2323, %v2277
      %v2325 = vadd.f32 %v2324, %v2278
      %v2326 = vadd.f32 %v2325, %v2279
      %v2327 = vrot.slane %v2326, 4
      %v2328 = vadd.f32 %v2326, %v2327
      %v2329 = vrot.slane %v2328, 2
      %v2330 = vadd.f32 %v2328, %v2329
      %v2331 = vrot.slane %v2330, 1
      %v2332 = vadd.f32 %v2330, %v2331
      %v2333 = vmul.f32 %v2272, %v2272
      %v2334 = vmul.f32 %v2273, %v2273
      %v2335 = vmul.f32 %v2274, %v2274
      %v2336 = vmul.f32 %v2275, %v2275
      %v2337 = vmul.f32 %v2276, %v2276
      %v2338 = vmul.f32 %v2277, %v2277
      %v2339 = vmul.f32 %v2278, %v2278
      %v2340 = vmul.f32 %v2279, %v2279
      %v2341 = vadd.f32 %v2333, %v2334
      %v2342 = vadd.f32 %v2341, %v2335
      %v2343 = vadd.f32 %v2342, %v2336
      %v2344 = vadd.f32 %v2343, %v2337
      %v2345 = vadd.f32 %v2344, %v2338
      %v2346 = vadd.f32 %v2345, %v2339
      %v2347 = vadd.f32 %v2346, %v2340
      %v2348 = vrot.slane %v2347, 4
      %v2349 = vadd.f32 %v2347, %v2348
      %v2350 = vrot.slane %v2349, 2
      %v2351 = vadd.f32 %v2349, %v2350
      %v2352 = vrot.slane %v2351, 1
      %v2353 = vadd.f32 %v2351, %v2352
      %vm2354 = vcmask 1040384
      %v2355 = vsel %vm2354, %v2332, %v2353
      %2356 = vst [vmem:[%s420] sm:$0x3] %v2355
      %s2357 = sadd.s32 %s23, %s24
      %s2358 = smul.u32 8, %s2357
      %p2359 = scmp.lt.s32.totalorder %s2358, 15
      %s2360 = scalar_select %p2359, %s2358, 15
      %s2361 = smul.addr %s2360, 4
      %s2362 = scalar_lea.vmem %s6, %s2361
      %s2363 = sadd.s32 %s23, %s24
      %p2364 = scmp.lt.s32.totalorder %s2363, 1
      %s2365 = scalar_select %p2364, %s2363, 1
      %s2366 = smul.addr %s2365, 2
      %s2367 = scalar_lea.vmem %s7, %s2366
      // Predicated region
      $region45: #{res_down_forward.4} parent=43 // pred_check
        %p2368 = pneg %p210
      $region46: #{res_down_forward.4} parent=43 // pred_check_branch
        %2370 = sbr.rel (%p2368) target = $region48
      $region47: #{res_down_forward.4} parent=43 // pred_region
        %s2371 = sadd.s32 %s23, %s24
        %s2372 = smul.u32 8, %s2371
      $region48: #{res_down_forward.4} parent=43 // pred_fallthru
        _
      // Predicated region
      $region49: #{res_down_forward.4} parent=43 // pred_check
        %p2373 = pneg %p238
      $region50: #{res_down_forward.4} parent=43 // pred_check_branch
        %2375 = sbr.rel (%p2373) target = $region52
      $region51: #{res_down_forward.4} parent=43 // pred_region
        %s2376 = sadd.s32 %s23, %s24
      $region52: #{res_down_forward.4} parent=43 // pred_fallthru
        _
    $region44: #{res_down_forward.4} parent=5 // pred_fallthru
      _
    %p2377 = scmp.le.s32.totalorder 2, %s14
    // Predicated region
    $region53: #{res_down_forward.4} parent=5 // pred_check
      %p2378 = pneg %p2377
    $region54: #{res_down_forward.4} parent=5 // pred_check_branch
      %2380 = sbr.rel (%p2378) target = $region56
    $region55: #{res_down_forward.4} parent=5 // pred_region
      %s2381 = ssub.s32 %s14, 2
      // Predicated region
      $region57: #{res_down_forward.4} parent=55 // pred_check
        %p2382 = pneg %p216
      $region58: #{res_down_forward.4} parent=55 // pred_check_branch
        %2384 = sbr.rel (%p2382) target = $region60
      $region59: #{res_down_forward.4} parent=55 // pred_region
        %s2385 = sadd.s32 %s25, %s26
        %s2386 = smul.u32 8, %s2385
        %p2387 = scmp.lt.s32.totalorder %s2386, 15
        %s2388 = scalar_select %p2387, %s2386, 15
        %s2389 = smul.addr %s2388, 4
        %s2390 = scalar_lea.vmem %s6, %s2389
      $region60: #{res_down_forward.4} parent=55 // pred_fallthru
        _
      // Predicated region
      $region61: #{res_down_forward.4} parent=55 // pred_check
        %p2391 = pneg %p244
      $region62: #{res_down_forward.4} parent=55 // pred_check_branch
        %2393 = sbr.rel (%p2391) target = $region64
      $region63: #{res_down_forward.4} parent=55 // pred_region
        %s2394 = sadd.s32 %s25, %s26
        %p2395 = scmp.lt.s32.totalorder %s2394, 1
        %s2396 = scalar_select %p2395, %s2394, 1
        %s2397 = smul.addr %s2396, 2
        %s2398 = scalar_lea.vmem %s7, %s2397
      $region64: #{res_down_forward.4} parent=55 // pred_fallthru
        _
    $region56: #{res_down_forward.4} parent=5 // pred_fallthru
      _
  $region6: #{res_down_forward.4} parent=0 // loop_footer
    %s18 = sadd.s32 1, %s14
  $region7: #{res_down_forward.4} parent=0 // loop_footer_branch
    %13 = sbr.rel target = $region3
  $region8: #{res_down_forward.4} parent=0 // loop_exit
    _

</llo_original>
